<compile_context>
chip_gen: v5e
topology: v5e:2x2
jax: 0.10.0
libtpu: 0.0.40
codegen_flags: <defaults>
</compile_context>

<pallas_src>
import functools

import jax
import jax.numpy as jnp
from jax.experimental import pallas as pl
from jax.experimental.pallas import tpu as pltpu


def _round_up(a, m):
    return ((a + m - 1) // m) * m


# ----------------------------------------------------------------------------
# Pallas kernel: full NeRF MLP for one tile of rows.
# ----------------------------------------------------------------------------
def _nerf_kernel(xx_ref, xd_ref, *args, D, skips):
    out_ref = args[-1]
    p = args[:-1]  # flat param refs (see _flatten_params for layout)

    f32 = jnp.float32
    bf16 = jnp.bfloat16

    input_x = xx_ref[...]                    # (TM, in_x) f32
    input_d = xd_ref[...]                    # (TM, in_d) f32
    ix_bf = input_x.astype(bf16)
    id_bf = input_d.astype(bf16)

    def mxu(a_bf, w_ref):
        return jnp.dot(a_bf, w_ref[...], preferred_element_type=f32)

    # --- trunk: D linear+ReLU layers; skip-concat replaced by split matmul ---
    idx = 0
    h = input_x
    for i in range(D):
        if i > 0 and (i - 1) in skips:
            w_h, w_x, b = p[idx], p[idx + 1], p[idx + 2]
            idx += 3
            acc = mxu(h.astype(bf16), w_h) + mxu(ix_bf, w_x) + b[...]
        else:
            w, b = p[idx], p[idx + 1]
            idx += 2
            acc = mxu(h.astype(bf16), w) + b[...]
        h = jnp.maximum(acc, 0.0)
    h_bf = h.astype(bf16)

    # --- density head: W -> 128 lanes (density weights live in lane 3) -------
    w_den = p[idx]
    idx += 1
    den128 = mxu(h_bf, w_den)                        # (TM, 128)

    # --- feature head: W -> W -------------------------------------------------
    w_feat, b_feat = p[idx], p[idx + 1]
    idx += 2
    feature = mxu(h_bf, w_feat) + b_feat[...]        # (TM, W)

    # --- view-dir layer: split matmul (no concat), then ReLU ------------------
    w_df, w_dd, b_dir = p[idx], p[idx + 1], p[idx + 2]
    idx += 3
    h2 = jnp.maximum(
        mxu(feature.astype(bf16), w_df) + mxu(id_bf, w_dd) + b_dir[...], 0.0)

    # --- color head: W//2 -> 128 lanes (color in lanes 0..2); merged bias ----
    w_col, b_out = p[idx], p[idx + 1]
    idx += 2

    # Lane-dense store: lanes 0..2 color, lane 3 density, rest zeros.
    out_ref[...] = (mxu(h2.astype(bf16), w_col) + den128
                    + b_out[...]).astype(out_ref.dtype)


# ----------------------------------------------------------------------------
# Host-side parameter preparation: split / pad / cast to bf16 once.
# ----------------------------------------------------------------------------
def _flatten_params(params, *, D, W, in_x, in_d, skips):
    bf16 = jnp.bfloat16
    f32 = jnp.float32
    flat = []
    # trunk
    for i in range(D):
        w, b = params[i]
        if i > 0 and (i - 1) in skips:
            # concat order in the module is [input_x, h] -> rows [:in_x] hit x.
            w_x = w[:in_x, :].astype(bf16)
            w_h = w[in_x:, :].astype(bf16)
            flat += [w_h, w_x, b.astype(f32)]
        else:
            flat += [w.astype(bf16), b.astype(f32)]
    # density head (W -> 1), padded to 128 lanes with density in lane 3.
    w_den, b_den = params[D]
    w_den_pad = jnp.zeros((W, 128), bf16).at[:, 3:4].set(w_den.astype(bf16))
    flat += [w_den_pad]
    # feature head (W -> W)
    w, b = params[D + 1]
    flat += [w.astype(bf16), b.astype(f32)]
    # view-dir layer ((W + in_d) -> W//2), split: rows [:W] hit feature.
    w, b = params[D + 2]
    flat += [w[:W, :].astype(bf16), w[W:, :].astype(bf16), b.astype(f32)]
    # color head (W//2 -> 3), padded to 128 lanes with color in lanes 0..2;
    # merge color bias (lanes 0..2) and density bias (lane 3) into one bias.
    w_col, b_col = params[D + 3]
    w_col_pad = jnp.zeros((W // 2, 128), bf16).at[:, 0:3].set(w_col.astype(bf16))
    b_out = (jnp.zeros((1, 128), f32)
             .at[:, 0:3].set(b_col.astype(f32))
             .at[:, 3:4].set(b_den.astype(f32)))
    flat += [w_col_pad, b_out]
    return flat


# ----------------------------------------------------------------------------
# Wrapper: one NeRF forward via pallas_call (grid over batch rows).
# ----------------------------------------------------------------------------
@functools.partial(jax.jit,
                   static_argnames=("D", "in_x", "in_d", "skips", "tile_m"))
def nerf_forward_pallas(x, flat_params, *, D, in_x, in_d, skips, tile_m=1024):
    N, C = x.shape
    assert C == in_x + in_d

    tm = min(tile_m, _round_up(N, 8))
    n_pad = _round_up(N, tm)
    if n_pad != N:
        x = jnp.pad(x, ((0, n_pad - N), (0, 0)))

    x_x = x[:, :in_x]
    x_d = x[:, in_x:in_x + in_d]

    in_specs = [
        pl.BlockSpec((tm, in_x), lambda i: (i, 0)),
        pl.BlockSpec((tm, in_d), lambda i: (i, 0)),
    ]
    for a in flat_params:
        in_specs.append(pl.BlockSpec(a.shape, lambda i: (0, 0)))

    kernel = functools.partial(_nerf_kernel, D=D, skips=tuple(skips))

    out = pl.pallas_call(
        kernel,
        out_shape=jax.ShapeDtypeStruct((n_pad, 128), jnp.float32),
        grid_spec=pltpu.PrefetchScalarGridSpec(
            num_scalar_prefetch=0,
            grid=(n_pad // tm,),
            in_specs=in_specs,
            out_specs=pl.BlockSpec((tm, 128), lambda i: (i, 0)),
        ),
        compiler_params=pltpu.CompilerParams(
            dimension_semantics=("parallel",),
            vmem_limit_bytes=32 * 1024 * 1024),
    )(x_x, x_d, *flat_params)

    return out[:N, :4].astype(x.dtype)


# ----------------------------------------------------------------------------
# Deterministic parameter init (xavier_uniform weights, PyTorch-style biases).
# ----------------------------------------------------------------------------
def _xavier(key, fan_in, fan_out):
    bound = (6.0 / (fan_in + fan_out)) ** 0.5
    return jax.random.uniform(key, (fan_in, fan_out), jnp.float32, -bound, bound)


def init_nerf_params(key, D, W, in_x, in_d, skips):
    params = []
    # trunk linear_x layers
    for i in range(D):
        if i == 0:
            fi = in_x
        elif (i - 1) in skips:          # layer right after a skip-concat
            fi = W + in_x
        else:
            fi = W
        key, kw, kb = jax.random.split(key, 3)
        w = _xavier(kw, fi, W)
        bb = 1.0 / (fi ** 0.5)
        b = jax.random.uniform(kb, (1, W), jnp.float32, -bb, bb)
        params.append((w, b))
    # heads: density (W->1), feat (W->W), dir ((W+in_d)->W//2), color (W//2->3)
    for fi, fo in [(W, 1), (W, W), (W + in_d, W // 2), (W // 2, 3)]:
        key, kw, kb = jax.random.split(key, 3)
        bb = 1.0 / (fi ** 0.5)
        params.append((_xavier(kw, fi, fo),
                       jax.random.uniform(kb, (1, fo), jnp.float32, -bb, bb)))
    return params


class NeRFsPallas:
    """Mirror of the PyTorch NeRFs module: coarse + fine NeRF MLPs."""

    def __init__(self, key, D, W, input_ch, input_ch_d, skips=(4,), tile_m=1024):
        self.D, self.W = D, W
        self.in_x, self.in_d = input_ch, input_ch_d
        self.skips = tuple(skips)
        self.tile_m = tile_m
        kc, kf = jax.random.split(key)
        self.params_c = init_nerf_params(kc, D, W, input_ch, input_ch_d, self.skips)
        self.params_f = init_nerf_params(kf, D, W, input_ch, input_ch_d, self.skips)
        kw = dict(D=D, W=W, in_x=input_ch, in_d=input_ch_d, skips=self.skips)
        self.flat_c = _flatten_params(self.params_c, **kw)
        self.flat_f = _flatten_params(self.params_f, **kw)

    def __call__(self, x, is_fine=False):
        flat = self.flat_f if is_fine else self.flat_c
        return nerf_forward_pallas(
            x, flat, D=self.D, in_x=self.in_x, in_d=self.in_d,
            skips=self.skips, tile_m=self.tile_m)


# ----------------------------------------------------------------------------
# Pure-JAX reference (mirrors the kernel's bf16 matmul inputs / f32 accumulate
# so the correctness check is tight; math follows the PyTorch module exactly).
# ----------------------------------------------------------------------------
def nerf_forward_ref(x, params, D, in_x, in_d, skips):
    def mm(a, w):
        return jnp.dot(a.astype(jnp.bfloat16), w.astype(jnp.bfloat16),
                       preferred_element_type=jnp.float32)

    input_x, input_d = x[:, :in_x], x[:, in_x:]
    h = input_x
    for i in range(D):
        w, b = params[i]
        h = jnp.maximum(mm(h, w) + b, 0.0)
        if i in skips:
            h = jnp.concatenate([input_x, h], axis=-1)
    w, b = params[D]
    density = mm(h, w) + b
    w, b = params[D + 1]
    feature = mm(h, w) + b
    h2 = jnp.concatenate([feature, input_d], axis=-1)
    w, b = params[D + 2]
    h2 = jnp.maximum(mm(h2, w) + b, 0.0)
    w, b = params[D + 3]
    color = mm(h2, w) + b
    return jnp.concatenate([color, density], axis=-1)


if __name__ == "__main__":
    # Small shapes consistent with the module (D layers, width W, pos-enc dims).
    D, W, input_ch, input_ch_d = 8, 32, 16, 8
    skips = (4,)
    N = 512                                  # number of sample points (rows)

    key = jax.random.PRNGKey(0)
    kx, kp = jax.random.split(key)
    x = jax.random.normal(kx, (N, input_ch + input_ch_d), jnp.float32)

    # tile_m=256 -> 2 grid steps at this demo size (keeps both TCs busy on v7x).
    model = NeRFsPallas(kp, D, W, input_ch, input_ch_d, skips, tile_m=256)

    out_c = model(x, is_fine=False)          # coarse network
    out_f = model(x, is_fine=True)           # fine network
    jax.block_until_ready(out_c)
    jax.block_until_ready(out_f)

    assert out_c.shape == (N, 4) and out_f.shape == (N, 4)

    ref_c = nerf_forward_ref(x, model.params_c, D, input_ch, input_ch_d, skips)
    ref_f = nerf_forward_ref(x, model.params_f, D, input_ch, input_ch_d, skips)
    assert jnp.allclose(out_c, ref_c, atol=2e-3, rtol=2e-3)
    assert jnp.allclose(out_f, ref_f, atol=2e-3, rtol=2e-3)

    print("KERNEL_OK")
</pallas_src>

<mosaic_0001>
module attributes {stable_mosaic.version = 11 : i64} {
  func.func @_nerf_kernel(%arg0: i32, %arg1: memref<256x16xf32, #tpu.memory_space<vmem>>, %arg2: memref<256x8xf32, #tpu.memory_space<vmem>>, %arg3: memref<16x32xbf16, #tpu.memory_space<vmem>>, %arg4: memref<1x32xf32, #tpu.memory_space<vmem>>, %arg5: memref<32x32xbf16, #tpu.memory_space<vmem>>, %arg6: memref<1x32xf32, #tpu.memory_space<vmem>>, %arg7: memref<32x32xbf16, #tpu.memory_space<vmem>>, %arg8: memref<1x32xf32, #tpu.memory_space<vmem>>, %arg9: memref<32x32xbf16, #tpu.memory_space<vmem>>, %arg10: memref<1x32xf32, #tpu.memory_space<vmem>>, %arg11: memref<32x32xbf16, #tpu.memory_space<vmem>>, %arg12: memref<1x32xf32, #tpu.memory_space<vmem>>, %arg13: memref<32x32xbf16, #tpu.memory_space<vmem>>, %arg14: memref<16x32xbf16, #tpu.memory_space<vmem>>, %arg15: memref<1x32xf32, #tpu.memory_space<vmem>>, %arg16: memref<32x32xbf16, #tpu.memory_space<vmem>>, %arg17: memref<1x32xf32, #tpu.memory_space<vmem>>, %arg18: memref<32x32xbf16, #tpu.memory_space<vmem>>, %arg19: memref<1x32xf32, #tpu.memory_space<vmem>>, %arg20: memref<32x128xbf16, #tpu.memory_space<vmem>>, %arg21: memref<32x32xbf16, #tpu.memory_space<vmem>>, %arg22: memref<1x32xf32, #tpu.memory_space<vmem>>, %arg23: memref<32x16xbf16, #tpu.memory_space<vmem>>, %arg24: memref<8x16xbf16, #tpu.memory_space<vmem>>, %arg25: memref<1x16xf32, #tpu.memory_space<vmem>>, %arg26: memref<16x128xbf16, #tpu.memory_space<vmem>>, %arg27: memref<1x128xf32, #tpu.memory_space<vmem>>, %arg28: memref<256x128xf32, #tpu.memory_space<vmem>>) attributes {dimension_semantics = [#tpu.dimension_semantics<parallel>], iteration_bounds = array<i64: 2>, scalar_prefetch = 0 : i64, scratch_operands = 0 : i64, tpu.core_type = #tpu.core_type<tc>, window_params = [{transform_indices = @transform_0, window_bounds = array<i64: 256, 16>}, {transform_indices = @transform_1, window_bounds = array<i64: 256, 8>}, {pipeline_mode = #tpu.pipeline_mode<synchronous>, transform_indices = @transform_2, window_bounds = array<i64: 16, 32>}, {pipeline_mode = #tpu.pipeline_mode<synchronous>, transform_indices = @transform_3, window_bounds = array<i64: 1, 32>}, {pipeline_mode = #tpu.pipeline_mode<synchronous>, transform_indices = @transform_4, window_bounds = array<i64: 32, 32>}, {pipeline_mode = #tpu.pipeline_mode<synchronous>, transform_indices = @transform_5, window_bounds = array<i64: 1, 32>}, {pipeline_mode = #tpu.pipeline_mode<synchronous>, transform_indices = @transform_6, window_bounds = array<i64: 32, 32>}, {pipeline_mode = #tpu.pipeline_mode<synchronous>, transform_indices = @transform_7, window_bounds = array<i64: 1, 32>}, {pipeline_mode = #tpu.pipeline_mode<synchronous>, transform_indices = @transform_8, window_bounds = array<i64: 32, 32>}, {pipeline_mode = #tpu.pipeline_mode<synchronous>, transform_indices = @transform_9, window_bounds = array<i64: 1, 32>}, {pipeline_mode = #tpu.pipeline_mode<synchronous>, transform_indices = @transform_10, window_bounds = array<i64: 32, 32>}, {pipeline_mode = #tpu.pipeline_mode<synchronous>, transform_indices = @transform_11, window_bounds = array<i64: 1, 32>}, {pipeline_mode = #tpu.pipeline_mode<synchronous>, transform_indices = @transform_12, window_bounds = array<i64: 32, 32>}, {pipeline_mode = #tpu.pipeline_mode<synchronous>, transform_indices = @transform_13, window_bounds = array<i64: 16, 32>}, {pipeline_mode = #tpu.pipeline_mode<synchronous>, transform_indices = @transform_14, window_bounds = array<i64: 1, 32>}, {pipeline_mode = #tpu.pipeline_mode<synchronous>, transform_indices = @transform_15, window_bounds = array<i64: 32, 32>}, {pipeline_mode = #tpu.pipeline_mode<synchronous>, transform_indices = @transform_16, window_bounds = array<i64: 1, 32>}, {pipeline_mode = #tpu.pipeline_mode<synchronous>, transform_indices = @transform_17, window_bounds = array<i64: 32, 32>}, {pipeline_mode = #tpu.pipeline_mode<synchronous>, transform_indices = @transform_18, window_bounds = array<i64: 1, 32>}, {pipeline_mode = #tpu.pipeline_mode<synchronous>, transform_indices = @transform_19, window_bounds = array<i64: 32, 128>}, {pipeline_mode = #tpu.pipeline_mode<synchronous>, transform_indices = @transform_20, window_bounds = array<i64: 32, 32>}, {pipeline_mode = #tpu.pipeline_mode<synchronous>, transform_indices = @transform_21, window_bounds = array<i64: 1, 32>}, {pipeline_mode = #tpu.pipeline_mode<synchronous>, transform_indices = @transform_22, window_bounds = array<i64: 32, 16>}, {pipeline_mode = #tpu.pipeline_mode<synchronous>, transform_indices = @transform_23, window_bounds = array<i64: 8, 16>}, {pipeline_mode = #tpu.pipeline_mode<synchronous>, transform_indices = @transform_24, window_bounds = array<i64: 1, 16>}, {pipeline_mode = #tpu.pipeline_mode<synchronous>, transform_indices = @transform_25, window_bounds = array<i64: 16, 128>}, {pipeline_mode = #tpu.pipeline_mode<synchronous>, transform_indices = @transform_26, window_bounds = array<i64: 1, 128>}, {transform_indices = @transform_27, window_bounds = array<i64: 256, 128>}]} {
    %c0 = arith.constant 0 : index
    %c0_0 = arith.constant 0 : index
    %0 = vector.load %arg1[%c0, %c0_0] : memref<256x16xf32, #tpu.memory_space<vmem>>, vector<256x16xf32>
    %c0_1 = arith.constant 0 : index
    %c0_2 = arith.constant 0 : index
    %1 = vector.load %arg2[%c0_1, %c0_2] : memref<256x8xf32, #tpu.memory_space<vmem>>, vector<256x8xf32>
    %2 = arith.truncf %0 : vector<256x16xf32> to vector<256x16xbf16>
    %3 = arith.truncf %1 : vector<256x8xf32> to vector<256x8xbf16>
    %4 = arith.truncf %0 : vector<256x16xf32> to vector<256x16xbf16>
    %c0_3 = arith.constant 0 : index
    %c0_4 = arith.constant 0 : index
    %5 = vector.load %arg3[%c0_3, %c0_4] : memref<16x32xbf16, #tpu.memory_space<vmem>>, vector<16x32xbf16>
    %cst = arith.constant dense<0.000000e+00> : vector<256x32xf32>
    %6 = tpu.matmul %4, %5, %cst {dimension_numbers = #tpu.dot_dimension_numbers<[1], [0], [0], [1], [0, 0, 1, 1], [], []>} : vector<256x16xbf16>, vector<16x32xbf16>, vector<256x32xf32> -> vector<256x32xf32>
    %c0_5 = arith.constant 0 : index
    %c0_6 = arith.constant 0 : index
    %7 = vector.load %arg4[%c0_5, %c0_6] : memref<1x32xf32, #tpu.memory_space<vmem>>, vector<1x32xf32>
    %8 = vector.broadcast %7 : vector<1x32xf32> to vector<256x32xf32>
    %9 = arith.addf %6, %8 : vector<256x32xf32>
    %cst_7 = arith.constant 0.000000e+00 : f32
    %10 = vector.broadcast %cst_7 : f32 to vector<256x32xf32>
    %11 = arith.maximumf %9, %10 : vector<256x32xf32>
    %12 = arith.truncf %11 : vector<256x32xf32> to vector<256x32xbf16>
    %c0_8 = arith.constant 0 : index
    %c0_9 = arith.constant 0 : index
    %13 = vector.load %arg5[%c0_8, %c0_9] : memref<32x32xbf16, #tpu.memory_space<vmem>>, vector<32x32xbf16>
    %cst_10 = arith.constant dense<0.000000e+00> : vector<256x32xf32>
    %14 = tpu.matmul %12, %13, %cst_10 {dimension_numbers = #tpu.dot_dimension_numbers<[1], [0], [0], [1], [0, 0, 1, 1], [], []>} : vector<256x32xbf16>, vector<32x32xbf16>, vector<256x32xf32> -> vector<256x32xf32>
    %c0_11 = arith.constant 0 : index
    %c0_12 = arith.constant 0 : index
    %15 = vector.load %arg6[%c0_11, %c0_12] : memref<1x32xf32, #tpu.memory_space<vmem>>, vector<1x32xf32>
    %16 = vector.broadcast %15 : vector<1x32xf32> to vector<256x32xf32>
    %17 = arith.addf %14, %16 : vector<256x32xf32>
    %cst_13 = arith.constant 0.000000e+00 : f32
    %18 = vector.broadcast %cst_13 : f32 to vector<256x32xf32>
    %19 = arith.maximumf %17, %18 : vector<256x32xf32>
    %20 = arith.truncf %19 : vector<256x32xf32> to vector<256x32xbf16>
    %c0_14 = arith.constant 0 : index
    %c0_15 = arith.constant 0 : index
    %21 = vector.load %arg7[%c0_14, %c0_15] : memref<32x32xbf16, #tpu.memory_space<vmem>>, vector<32x32xbf16>
    %cst_16 = arith.constant dense<0.000000e+00> : vector<256x32xf32>
    %22 = tpu.matmul %20, %21, %cst_16 {dimension_numbers = #tpu.dot_dimension_numbers<[1], [0], [0], [1], [0, 0, 1, 1], [], []>} : vector<256x32xbf16>, vector<32x32xbf16>, vector<256x32xf32> -> vector<256x32xf32>
    %c0_17 = arith.constant 0 : index
    %c0_18 = arith.constant 0 : index
    %23 = vector.load %arg8[%c0_17, %c0_18] : memref<1x32xf32, #tpu.memory_space<vmem>>, vector<1x32xf32>
    %24 = vector.broadcast %23 : vector<1x32xf32> to vector<256x32xf32>
    %25 = arith.addf %22, %24 : vector<256x32xf32>
    %cst_19 = arith.constant 0.000000e+00 : f32
    %26 = vector.broadcast %cst_19 : f32 to vector<256x32xf32>
    %27 = arith.maximumf %25, %26 : vector<256x32xf32>
    %28 = arith.truncf %27 : vector<256x32xf32> to vector<256x32xbf16>
    %c0_20 = arith.constant 0 : index
    %c0_21 = arith.constant 0 : index
    %29 = vector.load %arg9[%c0_20, %c0_21] : memref<32x32xbf16, #tpu.memory_space<vmem>>, vector<32x32xbf16>
    %cst_22 = arith.constant dense<0.000000e+00> : vector<256x32xf32>
    %30 = tpu.matmul %28, %29, %cst_22 {dimension_numbers = #tpu.dot_dimension_numbers<[1], [0], [0], [1], [0, 0, 1, 1], [], []>} : vector<256x32xbf16>, vector<32x32xbf16>, vector<256x32xf32> -> vector<256x32xf32>
    %c0_23 = arith.constant 0 : index
    %c0_24 = arith.constant 0 : index
    %31 = vector.load %arg10[%c0_23, %c0_24] : memref<1x32xf32, #tpu.memory_space<vmem>>, vector<1x32xf32>
    %32 = vector.broadcast %31 : vector<1x32xf32> to vector<256x32xf32>
    %33 = arith.addf %30, %32 : vector<256x32xf32>
    %cst_25 = arith.constant 0.000000e+00 : f32
    %34 = vector.broadcast %cst_25 : f32 to vector<256x32xf32>
    %35 = arith.maximumf %33, %34 : vector<256x32xf32>
    %36 = arith.truncf %35 : vector<256x32xf32> to vector<256x32xbf16>
    %c0_26 = arith.constant 0 : index
    %c0_27 = arith.constant 0 : index
    %37 = vector.load %arg11[%c0_26, %c0_27] : memref<32x32xbf16, #tpu.memory_space<vmem>>, vector<32x32xbf16>
    %cst_28 = arith.constant dense<0.000000e+00> : vector<256x32xf32>
    %38 = tpu.matmul %36, %37, %cst_28 {dimension_numbers = #tpu.dot_dimension_numbers<[1], [0], [0], [1], [0, 0, 1, 1], [], []>} : vector<256x32xbf16>, vector<32x32xbf16>, vector<256x32xf32> -> vector<256x32xf32>
    %c0_29 = arith.constant 0 : index
    %c0_30 = arith.constant 0 : index
    %39 = vector.load %arg12[%c0_29, %c0_30] : memref<1x32xf32, #tpu.memory_space<vmem>>, vector<1x32xf32>
    %40 = vector.broadcast %39 : vector<1x32xf32> to vector<256x32xf32>
    %41 = arith.addf %38, %40 : vector<256x32xf32>
    %cst_31 = arith.constant 0.000000e+00 : f32
    %42 = vector.broadcast %cst_31 : f32 to vector<256x32xf32>
    %43 = arith.maximumf %41, %42 : vector<256x32xf32>
    %44 = arith.truncf %43 : vector<256x32xf32> to vector<256x32xbf16>
    %c0_32 = arith.constant 0 : index
    %c0_33 = arith.constant 0 : index
    %45 = vector.load %arg13[%c0_32, %c0_33] : memref<32x32xbf16, #tpu.memory_space<vmem>>, vector<32x32xbf16>
    %cst_34 = arith.constant dense<0.000000e+00> : vector<256x32xf32>
    %46 = tpu.matmul %44, %45, %cst_34 {dimension_numbers = #tpu.dot_dimension_numbers<[1], [0], [0], [1], [0, 0, 1, 1], [], []>} : vector<256x32xbf16>, vector<32x32xbf16>, vector<256x32xf32> -> vector<256x32xf32>
    %c0_35 = arith.constant 0 : index
    %c0_36 = arith.constant 0 : index
    %47 = vector.load %arg14[%c0_35, %c0_36] : memref<16x32xbf16, #tpu.memory_space<vmem>>, vector<16x32xbf16>
    %cst_37 = arith.constant dense<0.000000e+00> : vector<256x32xf32>
    %48 = tpu.matmul %2, %47, %cst_37 {dimension_numbers = #tpu.dot_dimension_numbers<[1], [0], [0], [1], [0, 0, 1, 1], [], []>} : vector<256x16xbf16>, vector<16x32xbf16>, vector<256x32xf32> -> vector<256x32xf32>
    %49 = arith.addf %46, %48 : vector<256x32xf32>
    %c0_38 = arith.constant 0 : index
    %c0_39 = arith.constant 0 : index
    %50 = vector.load %arg15[%c0_38, %c0_39] : memref<1x32xf32, #tpu.memory_space<vmem>>, vector<1x32xf32>
    %51 = vector.broadcast %50 : vector<1x32xf32> to vector<256x32xf32>
    %52 = arith.addf %49, %51 : vector<256x32xf32>
    %cst_40 = arith.constant 0.000000e+00 : f32
    %53 = vector.broadcast %cst_40 : f32 to vector<256x32xf32>
    %54 = arith.maximumf %52, %53 : vector<256x32xf32>
    %55 = arith.truncf %54 : vector<256x32xf32> to vector<256x32xbf16>
    %c0_41 = arith.constant 0 : index
    %c0_42 = arith.constant 0 : index
    %56 = vector.load %arg16[%c0_41, %c0_42] : memref<32x32xbf16, #tpu.memory_space<vmem>>, vector<32x32xbf16>
    %cst_43 = arith.constant dense<0.000000e+00> : vector<256x32xf32>
    %57 = tpu.matmul %55, %56, %cst_43 {dimension_numbers = #tpu.dot_dimension_numbers<[1], [0], [0], [1], [0, 0, 1, 1], [], []>} : vector<256x32xbf16>, vector<32x32xbf16>, vector<256x32xf32> -> vector<256x32xf32>
    %c0_44 = arith.constant 0 : index
    %c0_45 = arith.constant 0 : index
    %58 = vector.load %arg17[%c0_44, %c0_45] : memref<1x32xf32, #tpu.memory_space<vmem>>, vector<1x32xf32>
    %59 = vector.broadcast %58 : vector<1x32xf32> to vector<256x32xf32>
    %60 = arith.addf %57, %59 : vector<256x32xf32>
    %cst_46 = arith.constant 0.000000e+00 : f32
    %61 = vector.broadcast %cst_46 : f32 to vector<256x32xf32>
    %62 = arith.maximumf %60, %61 : vector<256x32xf32>
    %63 = arith.truncf %62 : vector<256x32xf32> to vector<256x32xbf16>
    %c0_47 = arith.constant 0 : index
    %c0_48 = arith.constant 0 : index
    %64 = vector.load %arg18[%c0_47, %c0_48] : memref<32x32xbf16, #tpu.memory_space<vmem>>, vector<32x32xbf16>
    %cst_49 = arith.constant dense<0.000000e+00> : vector<256x32xf32>
    %65 = tpu.matmul %63, %64, %cst_49 {dimension_numbers = #tpu.dot_dimension_numbers<[1], [0], [0], [1], [0, 0, 1, 1], [], []>} : vector<256x32xbf16>, vector<32x32xbf16>, vector<256x32xf32> -> vector<256x32xf32>
    %c0_50 = arith.constant 0 : index
    %c0_51 = arith.constant 0 : index
    %66 = vector.load %arg19[%c0_50, %c0_51] : memref<1x32xf32, #tpu.memory_space<vmem>>, vector<1x32xf32>
    %67 = vector.broadcast %66 : vector<1x32xf32> to vector<256x32xf32>
    %68 = arith.addf %65, %67 : vector<256x32xf32>
    %cst_52 = arith.constant 0.000000e+00 : f32
    %69 = vector.broadcast %cst_52 : f32 to vector<256x32xf32>
    %70 = arith.maximumf %68, %69 : vector<256x32xf32>
    %71 = arith.truncf %70 : vector<256x32xf32> to vector<256x32xbf16>
    %c0_53 = arith.constant 0 : index
    %c0_54 = arith.constant 0 : index
    %72 = vector.load %arg20[%c0_53, %c0_54] : memref<32x128xbf16, #tpu.memory_space<vmem>>, vector<32x128xbf16>
    %cst_55 = arith.constant dense<0.000000e+00> : vector<256x128xf32>
    %73 = tpu.matmul %71, %72, %cst_55 {dimension_numbers = #tpu.dot_dimension_numbers<[1], [0], [0], [1], [0, 0, 1, 1], [], []>} : vector<256x32xbf16>, vector<32x128xbf16>, vector<256x128xf32> -> vector<256x128xf32>
    %c0_56 = arith.constant 0 : index
    %c0_57 = arith.constant 0 : index
    %74 = vector.load %arg21[%c0_56, %c0_57] : memref<32x32xbf16, #tpu.memory_space<vmem>>, vector<32x32xbf16>
    %cst_58 = arith.constant dense<0.000000e+00> : vector<256x32xf32>
    %75 = tpu.matmul %71, %74, %cst_58 {dimension_numbers = #tpu.dot_dimension_numbers<[1], [0], [0], [1], [0, 0, 1, 1], [], []>} : vector<256x32xbf16>, vector<32x32xbf16>, vector<256x32xf32> -> vector<256x32xf32>
    %c0_59 = arith.constant 0 : index
    %c0_60 = arith.constant 0 : index
    %76 = vector.load %arg22[%c0_59, %c0_60] : memref<1x32xf32, #tpu.memory_space<vmem>>, vector<1x32xf32>
    %77 = vector.broadcast %76 : vector<1x32xf32> to vector<256x32xf32>
    %78 = arith.addf %75, %77 : vector<256x32xf32>
    %79 = arith.truncf %78 : vector<256x32xf32> to vector<256x32xbf16>
    %c0_61 = arith.constant 0 : index
    %c0_62 = arith.constant 0 : index
    %80 = vector.load %arg23[%c0_61, %c0_62] : memref<32x16xbf16, #tpu.memory_space<vmem>>, vector<32x16xbf16>
    %cst_63 = arith.constant dense<0.000000e+00> : vector<256x16xf32>
    %81 = tpu.matmul %79, %80, %cst_63 {dimension_numbers = #tpu.dot_dimension_numbers<[1], [0], [0], [1], [0, 0, 1, 1], [], []>} : vector<256x32xbf16>, vector<32x16xbf16>, vector<256x16xf32> -> vector<256x16xf32>
    %c0_64 = arith.constant 0 : index
    %c0_65 = arith.constant 0 : index
    %82 = vector.load %arg24[%c0_64, %c0_65] : memref<8x16xbf16, #tpu.memory_space<vmem>>, vector<8x16xbf16>
    %cst_66 = arith.constant dense<0.000000e+00> : vector<256x16xf32>
    %83 = tpu.matmul %3, %82, %cst_66 {dimension_numbers = #tpu.dot_dimension_numbers<[1], [0], [0], [1], [0, 0, 1, 1], [], []>} : vector<256x8xbf16>, vector<8x16xbf16>, vector<256x16xf32> -> vector<256x16xf32>
    %84 = arith.addf %81, %83 : vector<256x16xf32>
    %c0_67 = arith.constant 0 : index
    %c0_68 = arith.constant 0 : index
    %85 = vector.load %arg25[%c0_67, %c0_68] : memref<1x16xf32, #tpu.memory_space<vmem>>, vector<1x16xf32>
    %86 = vector.broadcast %85 : vector<1x16xf32> to vector<256x16xf32>
    %87 = arith.addf %84, %86 : vector<256x16xf32>
    %cst_69 = arith.constant 0.000000e+00 : f32
    %88 = vector.broadcast %cst_69 : f32 to vector<256x16xf32>
    %89 = arith.maximumf %87, %88 : vector<256x16xf32>
    %90 = arith.truncf %89 : vector<256x16xf32> to vector<256x16xbf16>
    %c0_70 = arith.constant 0 : index
    %c0_71 = arith.constant 0 : index
    %91 = vector.load %arg26[%c0_70, %c0_71] : memref<16x128xbf16, #tpu.memory_space<vmem>>, vector<16x128xbf16>
    %cst_72 = arith.constant dense<0.000000e+00> : vector<256x128xf32>
    %92 = tpu.matmul %90, %91, %cst_72 {dimension_numbers = #tpu.dot_dimension_numbers<[1], [0], [0], [1], [0, 0, 1, 1], [], []>} : vector<256x16xbf16>, vector<16x128xbf16>, vector<256x128xf32> -> vector<256x128xf32>
    %93 = arith.addf %92, %73 : vector<256x128xf32>
    %c0_73 = arith.constant 0 : index
    %c0_74 = arith.constant 0 : index
    %94 = vector.load %arg27[%c0_73, %c0_74] : memref<1x128xf32, #tpu.memory_space<vmem>>, vector<1x128xf32>
    %95 = vector.broadcast %94 : vector<1x128xf32> to vector<256x128xf32>
    %96 = arith.addf %93, %95 : vector<256x128xf32>
    %c0_75 = arith.constant 0 : index
    %c0_76 = arith.constant 0 : index
    %97 = vector.load %arg28[%c0_75, %c0_76] : memref<256x128xf32, #tpu.memory_space<vmem>>, vector<256x128xf32>
    tpu.vector_store %arg28[%c0_75, %c0_76], %96 {strides = array<i32>} : memref<256x128xf32, #tpu.memory_space<vmem>>, vector<256x128xf32>,
    return
  }
  func.func @transform_0(%arg0: i32) -> (i32, i32) {
    %c0_i32 = arith.constant 0 : i32
    %c0_i32_0 = arith.constant 0 : i32
    return %arg0, %c0_i32 : i32, i32
  }
  func.func @transform_1(%arg0: i32) -> (i32, i32) {
    %c0_i32 = arith.constant 0 : i32
    %c0_i32_0 = arith.constant 0 : i32
    return %arg0, %c0_i32 : i32, i32
  }
  func.func @transform_2(%arg0: i32) -> (i32, i32) {
    %c0_i32 = arith.constant 0 : i32
    %c0_i32_0 = arith.constant 0 : i32
    %c0_i32_1 = arith.constant 0 : i32
    return %c0_i32, %c0_i32_0 : i32, i32
  }
  func.func @transform_3(%arg0: i32) -> (i32, i32) {
    %c0_i32 = arith.constant 0 : i32
    %c0_i32_0 = arith.constant 0 : i32
    %c0_i32_1 = arith.constant 0 : i32
    return %c0_i32, %c0_i32_0 : i32, i32
  }
  func.func @transform_4(%arg0: i32) -> (i32, i32) {
    %c0_i32 = arith.constant 0 : i32
    %c0_i32_0 = arith.constant 0 : i32
    %c0_i32_1 = arith.constant 0 : i32
    return %c0_i32, %c0_i32_0 : i32, i32
  }
  func.func @transform_5(%arg0: i32) -> (i32, i32) {
    %c0_i32 = arith.constant 0 : i32
    %c0_i32_0 = arith.constant 0 : i32
    %c0_i32_1 = arith.constant 0 : i32
    return %c0_i32, %c0_i32_0 : i32, i32
  }
  func.func @transform_6(%arg0: i32) -> (i32, i32) {
    %c0_i32 = arith.constant 0 : i32
    %c0_i32_0 = arith.constant 0 : i32
    %c0_i32_1 = arith.constant 0 : i32
    return %c0_i32, %c0_i32_0 : i32, i32
  }
  func.func @transform_7(%arg0: i32) -> (i32, i32) {
    %c0_i32 = arith.constant 0 : i32
    %c0_i32_0 = arith.constant 0 : i32
    %c0_i32_1 = arith.constant 0 : i32
    return %c0_i32, %c0_i32_0 : i32, i32
  }
  func.func @transform_8(%arg0: i32) -> (i32, i32) {
    %c0_i32 = arith.constant 0 : i32
    %c0_i32_0 = arith.constant 0 : i32
    %c0_i32_1 = arith.constant 0 : i32
    return %c0_i32, %c0_i32_0 : i32, i32
  }
  func.func @transform_9(%arg0: i32) -> (i32, i32) {
    %c0_i32 = arith.constant 0 : i32
    %c0_i32_0 = arith.constant 0 : i32
    %c0_i32_1 = arith.constant 0 : i32
    return %c0_i32, %c0_i32_0 : i32, i32
  }
  func.func @transform_10(%arg0: i32) -> (i32, i32) {
    %c0_i32 = arith.constant 0 : i32
    %c0_i32_0 = arith.constant 0 : i32
    %c0_i32_1 = arith.constant 0 : i32
    return %c0_i32, %c0_i32_0 : i32, i32
  }
  func.func @transform_11(%arg0: i32) -> (i32, i32) {
    %c0_i32 = arith.constant 0 : i32
    %c0_i32_0 = arith.constant 0 : i32
    %c0_i32_1 = arith.constant 0 : i32
    return %c0_i32, %c0_i32_0 : i32, i32
  }
  func.func @transform_12(%arg0: i32) -> (i32, i32) {
    %c0_i32 = arith.constant 0 : i32
    %c0_i32_0 = arith.constant 0 : i32
    %c0_i32_1 = arith.constant 0 : i32
    return %c0_i32, %c0_i32_0 : i32, i32
  }
  func.func @transform_13(%arg0: i32) -> (i32, i32) {
    %c0_i32 = arith.constant 0 : i32
    %c0_i32_0 = arith.constant 0 : i32
    %c0_i32_1 = arith.constant 0 : i32
    return %c0_i32, %c0_i32_0 : i32, i32
  }
  func.func @transform_14(%arg0: i32) -> (i32, i32) {
    %c0_i32 = arith.constant 0 : i32
    %c0_i32_0 = arith.constant 0 : i32
    %c0_i32_1 = arith.constant 0 : i32
    return %c0_i32, %c0_i32_0 : i32, i32
  }
  func.func @transform_15(%arg0: i32) -> (i32, i32) {
    %c0_i32 = arith.constant 0 : i32
    %c0_i32_0 = arith.constant 0 : i32
    %c0_i32_1 = arith.constant 0 : i32
    return %c0_i32, %c0_i32_0 : i32, i32
  }
  func.func @transform_16(%arg0: i32) -> (i32, i32) {
    %c0_i32 = arith.constant 0 : i32
    %c0_i32_0 = arith.constant 0 : i32
    %c0_i32_1 = arith.constant 0 : i32
    return %c0_i32, %c0_i32_0 : i32, i32
  }
  func.func @transform_17(%arg0: i32) -> (i32, i32) {
    %c0_i32 = arith.constant 0 : i32
    %c0_i32_0 = arith.constant 0 : i32
    %c0_i32_1 = arith.constant 0 : i32
    return %c0_i32, %c0_i32_0 : i32, i32
  }
  func.func @transform_18(%arg0: i32) -> (i32, i32) {
    %c0_i32 = arith.constant 0 : i32
    %c0_i32_0 = arith.constant 0 : i32
    %c0_i32_1 = arith.constant 0 : i32
    return %c0_i32, %c0_i32_0 : i32, i32
  }
  func.func @transform_19(%arg0: i32) -> (i32, i32) {
    %c0_i32 = arith.constant 0 : i32
    %c0_i32_0 = arith.constant 0 : i32
    %c0_i32_1 = arith.constant 0 : i32
    return %c0_i32, %c0_i32_0 : i32, i32
  }
  func.func @transform_20(%arg0: i32) -> (i32, i32) {
    %c0_i32 = arith.constant 0 : i32
    %c0_i32_0 = arith.constant 0 : i32
    %c0_i32_1 = arith.constant 0 : i32
    return %c0_i32, %c0_i32_0 : i32, i32
  }
  func.func @transform_21(%arg0: i32) -> (i32, i32) {
    %c0_i32 = arith.constant 0 : i32
    %c0_i32_0 = arith.constant 0 : i32
    %c0_i32_1 = arith.constant 0 : i32
    return %c0_i32, %c0_i32_0 : i32, i32
  }
  func.func @transform_22(%arg0: i32) -> (i32, i32) {
    %c0_i32 = arith.constant 0 : i32
    %c0_i32_0 = arith.constant 0 : i32
    %c0_i32_1 = arith.constant 0 : i32
    return %c0_i32, %c0_i32_0 : i32, i32
  }
  func.func @transform_23(%arg0: i32) -> (i32, i32) {
    %c0_i32 = arith.constant 0 : i32
    %c0_i32_0 = arith.constant 0 : i32
    %c0_i32_1 = arith.constant 0 : i32
    return %c0_i32, %c0_i32_0 : i32, i32
  }
  func.func @transform_24(%arg0: i32) -> (i32, i32) {
    %c0_i32 = arith.constant 0 : i32
    %c0_i32_0 = arith.constant 0 : i32
    %c0_i32_1 = arith.constant 0 : i32
    return %c0_i32, %c0_i32_0 : i32, i32
  }
  func.func @transform_25(%arg0: i32) -> (i32, i32) {
    %c0_i32 = arith.constant 0 : i32
    %c0_i32_0 = arith.constant 0 : i32
    %c0_i32_1 = arith.constant 0 : i32
    return %c0_i32, %c0_i32_0 : i32, i32
  }
  func.func @transform_26(%arg0: i32) -> (i32, i32) {
    %c0_i32 = arith.constant 0 : i32
    %c0_i32_0 = arith.constant 0 : i32
    %c0_i32_1 = arith.constant 0 : i32
    return %c0_i32, %c0_i32_0 : i32, i32
  }
  func.func @transform_27(%arg0: i32) -> (i32, i32) {
    %c0_i32 = arith.constant 0 : i32
    %c0_i32_0 = arith.constant 0 : i32
    return %arg0, %c0_i32 : i32, i32
  }
}

</mosaic_0001>

<llo_original>
// kernel: nerf_forward_pallas.1
$region0: #{nerf_forward_pallas.1}
  #allocation0 [shape = 'u32[]', space=smem, size = 0x4, offset = 0x4, fixed_abs, tag = 'smem constant byte address 0x4 - core index']
  #allocation1 [shape = 'u32[72,128]{1,0:T(1,128)}', space=vmem, size = 0x9000, scoped, tag = 'internal scratch']
  %s0 = inlined_call_operand.vmem [shape: f32[512,16], index: 0, kind: input, shape index: {}]
  %s1 = inlined_call_operand.vmem [shape: f32[512,8], index: 1, kind: input, shape index: {}]
  %s2 = inlined_call_operand.vmem [shape: bf16[16,32], index: 2, kind: input, shape index: {}]
  %s3 = inlined_call_operand.vmem [shape: f32[1,32], index: 3, kind: input, shape index: {}]
  %s4 = inlined_call_operand.vmem [shape: bf16[32,32], index: 4, kind: input, shape index: {}]
  %s5 = inlined_call_operand.vmem [shape: f32[1,32], index: 5, kind: input, shape index: {}]
  %s6 = inlined_call_operand.vmem [shape: bf16[32,32], index: 6, kind: input, shape index: {}]
  %s7 = inlined_call_operand.vmem [shape: f32[1,32], index: 7, kind: input, shape index: {}]
  %s8 = inlined_call_operand.vmem [shape: bf16[32,32], index: 8, kind: input, shape index: {}]
  %s9 = inlined_call_operand.vmem [shape: f32[1,32], index: 9, kind: input, shape index: {}]
  %s10 = inlined_call_operand.vmem [shape: bf16[32,32], index: 10, kind: input, shape index: {}]
  %s11 = inlined_call_operand.vmem [shape: f32[1,32], index: 11, kind: input, shape index: {}]
  %s12 = inlined_call_operand.vmem [shape: bf16[32,32], index: 12, kind: input, shape index: {}]
  %s13 = inlined_call_operand.vmem [shape: bf16[16,32], index: 13, kind: input, shape index: {}]
  %s14 = inlined_call_operand.vmem [shape: f32[1,32], index: 14, kind: input, shape index: {}]
  %s15 = inlined_call_operand.vmem [shape: bf16[32,32], index: 15, kind: input, shape index: {}]
  %s16 = inlined_call_operand.vmem [shape: f32[1,32], index: 16, kind: input, shape index: {}]
  %s17 = inlined_call_operand.vmem [shape: bf16[32,32], index: 17, kind: input, shape index: {}]
  %s18 = inlined_call_operand.vmem [shape: f32[1,32], index: 18, kind: input, shape index: {}]
  %s19 = inlined_call_operand.vmem [shape: bf16[32,128], index: 19, kind: input, shape index: {}]
  %s20 = inlined_call_operand.vmem [shape: bf16[32,32], index: 20, kind: input, shape index: {}]
  %s21 = inlined_call_operand.vmem [shape: f32[1,32], index: 21, kind: input, shape index: {}]
  %s22 = inlined_call_operand.vmem [shape: bf16[32,16], index: 22, kind: input, shape index: {}]
  %s23 = inlined_call_operand.vmem [shape: bf16[8,16], index: 23, kind: input, shape index: {}]
  %s24 = inlined_call_operand.vmem [shape: f32[1,16], index: 24, kind: input, shape index: {}]
  %s25 = inlined_call_operand.vmem [shape: bf16[16,128], index: 25, kind: input, shape index: {}]
  %s26 = inlined_call_operand.vmem [shape: f32[1,128], index: 26, kind: input, shape index: {}]
  %s27 = inlined_call_operand.vmem [shape: f32[512,128], index: 27, kind: output, shape index: {}]
  %s28 = sld [smem:[#allocation0]]
  $region141: #{nerf_forward_pallas.1} parent=0
    _
  %s30 = ssub.s32 1, %s28
  %s31 = scalar_select 0, %s30, %s28
  loop: start=0, step=1, limit=4
  $region2: #{nerf_forward_pallas.1} parent=0 // loop_pre_header
    _
  $region3: #{nerf_forward_pallas.1} parent=0 // loop_header
    %s33 = sphi 0, %s37
    %p34 = scmp.ge.s32.totalorder %s33, 4
    %s43 = sphi 0, %s45
    %s46 = sphi 0, %s43
    %s47 = sphi 0, %s46
    %s63 = sphi 0, %s47
    %s69 = sphi 0, %s71
    %s72 = sphi 0, %s69
    %s73 = sphi 0, %s72
    %s89 = sphi 0, %s73
    %s93 = sphi 0, %s93
    %s95 = sphi 0, %s93
    %s96 = sphi 0, %s95
    %s110 = sphi 0, %s96
    %s114 = sphi 0, %s114
    %s116 = sphi 0, %s114
    %s117 = sphi 0, %s116
    %s131 = sphi 0, %s117
    %s135 = sphi 0, %s135
    %s137 = sphi 0, %s135
    %s138 = sphi 0, %s137
    %s152 = sphi 0, %s138
    %s156 = sphi 0, %s156
    %s158 = sphi 0, %s156
    %s159 = sphi 0, %s158
    %s173 = sphi 0, %s159
    %s177 = sphi 0, %s177
    %s179 = sphi 0, %s177
    %s180 = sphi 0, %s179
    %s194 = sphi 0, %s180
    %s198 = sphi 0, %s198
    %s200 = sphi 0, %s198
    %s201 = sphi 0, %s200
    %s215 = sphi 0, %s201
    %s219 = sphi 0, %s219
    %s221 = sphi 0, %s219
    %s222 = sphi 0, %s221
    %s236 = sphi 0, %s222
    %s240 = sphi 0, %s240
    %s242 = sphi 0, %s240
    %s243 = sphi 0, %s242
    %s257 = sphi 0, %s243
    %s261 = sphi 0, %s261
    %s263 = sphi 0, %s261
    %s264 = sphi 0, %s263
    %s278 = sphi 0, %s264
    %s282 = sphi 0, %s282
    %s284 = sphi 0, %s282
    %s285 = sphi 0, %s284
    %s299 = sphi 0, %s285
    %s303 = sphi 0, %s303
    %s305 = sphi 0, %s303
    %s306 = sphi 0, %s305
    %s320 = sphi 0, %s306
    %s324 = sphi 0, %s324
    %s326 = sphi 0, %s324
    %s327 = sphi 0, %s326
    %s341 = sphi 0, %s327
    %s345 = sphi 0, %s345
    %s347 = sphi 0, %s345
    %s348 = sphi 0, %s347
    %s362 = sphi 0, %s348
    %s366 = sphi 0, %s366
    %s368 = sphi 0, %s366
    %s369 = sphi 0, %s368
    %s383 = sphi 0, %s369
    %s387 = sphi 0, %s387
    %s389 = sphi 0, %s387
    %s390 = sphi 0, %s389
    %s404 = sphi 0, %s390
    %s408 = sphi 0, %s408
    %s410 = sphi 0, %s408
    %s411 = sphi 0, %s410
    %s425 = sphi 0, %s411
    %s429 = sphi 0, %s429
    %s431 = sphi 0, %s429
    %s432 = sphi 0, %s431
    %s446 = sphi 0, %s432
    %s450 = sphi 0, %s450
    %s452 = sphi 0, %s450
    %s453 = sphi 0, %s452
    %s467 = sphi 0, %s453
    %s471 = sphi 0, %s471
    %s473 = sphi 0, %s471
    %s474 = sphi 0, %s473
    %s488 = sphi 0, %s474
    %s492 = sphi 0, %s492
    %s494 = sphi 0, %s492
    %s495 = sphi 0, %s494
    %s509 = sphi 0, %s495
    %s513 = sphi 0, %s513
    %s515 = sphi 0, %s513
    %s516 = sphi 0, %s515
    %s530 = sphi 0, %s516
    %s534 = sphi 0, %s534
    %s536 = sphi 0, %s534
    %s537 = sphi 0, %s536
    %s551 = sphi 0, %s537
    %s555 = sphi 0, %s555
    %s557 = sphi 0, %s555
    %s558 = sphi 0, %s557
    %s572 = sphi 0, %s558
    %s576 = sphi 0, %s576
    %s578 = sphi 0, %s576
    %s579 = sphi 0, %s578
    %s593 = sphi 0, %s579
    %s597 = sphi 0, %s597
    %s599 = sphi 0, %s597
    %s600 = sphi 0, %s599
    %s614 = sphi 0, %s600
    %s620 = sphi 0, %s622
    %s623 = sphi 0, %s620
    %s624 = sphi 0, %s623
    %s640 = sphi 0, %s624
  $region4: #{nerf_forward_pallas.1} parent=0 // loop_header_branch
    %36 = sbr.rel (%p34) target = $region8
  $region5: #{nerf_forward_pallas.1} parent=0 // loop_body
    %s38 = ssub.s32 %s33, 1
    %s39 = ssub.s32 %s33, 2
    %s40 = sadd.s32 %s33, 1
    %s41 = ssub.s32 %s33, %s40
    %p42 = scmp.eq.s32.totalorder %s41, 0
    %s44 = sadd.s32 %s43, 1
    %s45 = scalar_select %p42, %s43, %s44
    %p48 = pneg %p42
    %p49 = scmp.eq.s32.totalorder %s33, 1
    %p50 = por %p48, %p49
    %p51 = scmp.ne.s32.totalorder %s43, %s46
    %p52 = scmp.eq.s32.totalorder %s33, 0
    %p53 = por %p51, %p52
    %p54 = scmp.ne.s32.totalorder %s43, %s46
    %p55 = scmp.eq.s32.totalorder %s38, 1
    %p56 = por %p54, %p55
    %p57 = scmp.ne.s32.totalorder %s46, %s47
    %p58 = scmp.eq.s32.totalorder %s38, 0
    %p59 = por %p57, %p58
    %p60 = scmp.ne.s32.totalorder %s46, %s47
    %p61 = scmp.eq.s32.totalorder %s39, 1
    %p62 = por %p60, %p61
    %p64 = scmp.ne.s32.totalorder %s47, %s63
    %p65 = scmp.eq.s32.totalorder %s39, 0
    %p66 = por %p64, %p65
    %s67 = ssub.s32 %s33, %s40
    %p68 = scmp.eq.s32.totalorder %s67, 0
    %s70 = sadd.s32 %s69, 1
    %s71 = scalar_select %p68, %s69, %s70
    %p74 = pneg %p68
    %p75 = scmp.eq.s32.totalorder %s33, 1
    %p76 = por %p74, %p75
    %p77 = scmp.ne.s32.totalorder %s69, %s72
    %p78 = scmp.eq.s32.totalorder %s33, 0
    %p79 = por %p77, %p78
    %p80 = scmp.ne.s32.totalorder %s69, %s72
    %p81 = scmp.eq.s32.totalorder %s38, 1
    %p82 = por %p80, %p81
    %p83 = scmp.ne.s32.totalorder %s72, %s73
    %p84 = scmp.eq.s32.totalorder %s38, 0
    %p85 = por %p83, %p84
    %p86 = scmp.ne.s32.totalorder %s72, %s73
    %p87 = scmp.eq.s32.totalorder %s39, 1
    %p88 = por %p86, %p87
    %p90 = scmp.ne.s32.totalorder %s73, %s89
    %p91 = scmp.eq.s32.totalorder %s39, 0
    %p92 = por %p90, %p91
    %s94 = sadd.s32 %s93, 1
    %p97 = scmp.eq.s32.totalorder %s33, 1
    %p98 = scmp.ne.s32.totalorder %s93, %s95
    %p99 = scmp.eq.s32.totalorder %s33, 0
    %p100 = por %p98, %p99
    %p101 = scmp.ne.s32.totalorder %s93, %s95
    %p102 = scmp.eq.s32.totalorder %s38, 1
    %p103 = por %p101, %p102
    %p104 = scmp.ne.s32.totalorder %s95, %s96
    %p105 = scmp.eq.s32.totalorder %s38, 0
    %p106 = por %p104, %p105
    %p107 = scmp.ne.s32.totalorder %s95, %s96
    %p108 = scmp.eq.s32.totalorder %s39, 1
    %p109 = por %p107, %p108
    %p111 = scmp.ne.s32.totalorder %s96, %s110
    %p112 = scmp.eq.s32.totalorder %s39, 0
    %p113 = por %p111, %p112
    %s115 = sadd.s32 %s114, 1
    %p118 = scmp.eq.s32.totalorder %s33, 1
    %p119 = scmp.ne.s32.totalorder %s114, %s116
    %p120 = scmp.eq.s32.totalorder %s33, 0
    %p121 = por %p119, %p120
    %p122 = scmp.ne.s32.totalorder %s114, %s116
    %p123 = scmp.eq.s32.totalorder %s38, 1
    %p124 = por %p122, %p123
    %p125 = scmp.ne.s32.totalorder %s116, %s117
    %p126 = scmp.eq.s32.totalorder %s38, 0
    %p127 = por %p125, %p126
    %p128 = scmp.ne.s32.totalorder %s116, %s117
    %p129 = scmp.eq.s32.totalorder %s39, 1
    %p130 = por %p128, %p129
    %p132 = scmp.ne.s32.totalorder %s117, %s131
    %p133 = scmp.eq.s32.totalorder %s39, 0
    %p134 = por %p132, %p133
    %s136 = sadd.s32 %s135, 1
    %p139 = scmp.eq.s32.totalorder %s33, 1
    %p140 = scmp.ne.s32.totalorder %s135, %s137
    %p141 = scmp.eq.s32.totalorder %s33, 0
    %p142 = por %p140, %p141
    %p143 = scmp.ne.s32.totalorder %s135, %s137
    %p144 = scmp.eq.s32.totalorder %s38, 1
    %p145 = por %p143, %p144
    %p146 = scmp.ne.s32.totalorder %s137, %s138
    %p147 = scmp.eq.s32.totalorder %s38, 0
    %p148 = por %p146, %p147
    %p149 = scmp.ne.s32.totalorder %s137, %s138
    %p150 = scmp.eq.s32.totalorder %s39, 1
    %p151 = por %p149, %p150
    %p153 = scmp.ne.s32.totalorder %s138, %s152
    %p154 = scmp.eq.s32.totalorder %s39, 0
    %p155 = por %p153, %p154
    %s157 = sadd.s32 %s156, 1
    %p160 = scmp.eq.s32.totalorder %s33, 1
    %p161 = scmp.ne.s32.totalorder %s156, %s158
    %p162 = scmp.eq.s32.totalorder %s33, 0
    %p163 = por %p161, %p162
    %p164 = scmp.ne.s32.totalorder %s156, %s158
    %p165 = scmp.eq.s32.totalorder %s38, 1
    %p166 = por %p164, %p165
    %p167 = scmp.ne.s32.totalorder %s158, %s159
    %p168 = scmp.eq.s32.totalorder %s38, 0
    %p169 = por %p167, %p168
    %p170 = scmp.ne.s32.totalorder %s158, %s159
    %p171 = scmp.eq.s32.totalorder %s39, 1
    %p172 = por %p170, %p171
    %p174 = scmp.ne.s32.totalorder %s159, %s173
    %p175 = scmp.eq.s32.totalorder %s39, 0
    %p176 = por %p174, %p175
    %s178 = sadd.s32 %s177, 1
    %p181 = scmp.eq.s32.totalorder %s33, 1
    %p182 = scmp.ne.s32.totalorder %s177, %s179
    %p183 = scmp.eq.s32.totalorder %s33, 0
    %p184 = por %p182, %p183
    %p185 = scmp.ne.s32.totalorder %s177, %s179
    %p186 = scmp.eq.s32.totalorder %s38, 1
    %p187 = por %p185, %p186
    %p188 = scmp.ne.s32.totalorder %s179, %s180
    %p189 = scmp.eq.s32.totalorder %s38, 0
    %p190 = por %p188, %p189
    %p191 = scmp.ne.s32.totalorder %s179, %s180
    %p192 = scmp.eq.s32.totalorder %s39, 1
    %p193 = por %p191, %p192
    %p195 = scmp.ne.s32.totalorder %s180, %s194
    %p196 = scmp.eq.s32.totalorder %s39, 0
    %p197 = por %p195, %p196
    %s199 = sadd.s32 %s198, 1
    %p202 = scmp.eq.s32.totalorder %s33, 1
    %p203 = scmp.ne.s32.totalorder %s198, %s200
    %p204 = scmp.eq.s32.totalorder %s33, 0
    %p205 = por %p203, %p204
    %p206 = scmp.ne.s32.totalorder %s198, %s200
    %p207 = scmp.eq.s32.totalorder %s38, 1
    %p208 = por %p206, %p207
    %p209 = scmp.ne.s32.totalorder %s200, %s201
    %p210 = scmp.eq.s32.totalorder %s38, 0
    %p211 = por %p209, %p210
    %p212 = scmp.ne.s32.totalorder %s200, %s201
    %p213 = scmp.eq.s32.totalorder %s39, 1
    %p214 = por %p212, %p213
    %p216 = scmp.ne.s32.totalorder %s201, %s215
    %p217 = scmp.eq.s32.totalorder %s39, 0
    %p218 = por %p216, %p217
    %s220 = sadd.s32 %s219, 1
    %p223 = scmp.eq.s32.totalorder %s33, 1
    %p224 = scmp.ne.s32.totalorder %s219, %s221
    %p225 = scmp.eq.s32.totalorder %s33, 0
    %p226 = por %p224, %p225
    %p227 = scmp.ne.s32.totalorder %s219, %s221
    %p228 = scmp.eq.s32.totalorder %s38, 1
    %p229 = por %p227, %p228
    %p230 = scmp.ne.s32.totalorder %s221, %s222
    %p231 = scmp.eq.s32.totalorder %s38, 0
    %p232 = por %p230, %p231
    %p233 = scmp.ne.s32.totalorder %s221, %s222
    %p234 = scmp.eq.s32.totalorder %s39, 1
    %p235 = por %p233, %p234
    %p237 = scmp.ne.s32.totalorder %s222, %s236
    %p238 = scmp.eq.s32.totalorder %s39, 0
    %p239 = por %p237, %p238
    %s241 = sadd.s32 %s240, 1
    %p244 = scmp.eq.s32.totalorder %s33, 1
    %p245 = scmp.ne.s32.totalorder %s240, %s242
    %p246 = scmp.eq.s32.totalorder %s33, 0
    %p247 = por %p245, %p246
    %p248 = scmp.ne.s32.totalorder %s240, %s242
    %p249 = scmp.eq.s32.totalorder %s38, 1
    %p250 = por %p248, %p249
    %p251 = scmp.ne.s32.totalorder %s242, %s243
    %p252 = scmp.eq.s32.totalorder %s38, 0
    %p253 = por %p251, %p252
    %p254 = scmp.ne.s32.totalorder %s242, %s243
    %p255 = scmp.eq.s32.totalorder %s39, 1
    %p256 = por %p254, %p255
    %p258 = scmp.ne.s32.totalorder %s243, %s257
    %p259 = scmp.eq.s32.totalorder %s39, 0
    %p260 = por %p258, %p259
    %s262 = sadd.s32 %s261, 1
    %p265 = scmp.eq.s32.totalorder %s33, 1
    %p266 = scmp.ne.s32.totalorder %s261, %s263
    %p267 = scmp.eq.s32.totalorder %s33, 0
    %p268 = por %p266, %p267
    %p269 = scmp.ne.s32.totalorder %s261, %s263
    %p270 = scmp.eq.s32.totalorder %s38, 1
    %p271 = por %p269, %p270
    %p272 = scmp.ne.s32.totalorder %s263, %s264
    %p273 = scmp.eq.s32.totalorder %s38, 0
    %p274 = por %p272, %p273
    %p275 = scmp.ne.s32.totalorder %s263, %s264
    %p276 = scmp.eq.s32.totalorder %s39, 1
    %p277 = por %p275, %p276
    %p279 = scmp.ne.s32.totalorder %s264, %s278
    %p280 = scmp.eq.s32.totalorder %s39, 0
    %p281 = por %p279, %p280
    %s283 = sadd.s32 %s282, 1
    %p286 = scmp.eq.s32.totalorder %s33, 1
    %p287 = scmp.ne.s32.totalorder %s282, %s284
    %p288 = scmp.eq.s32.totalorder %s33, 0
    %p289 = por %p287, %p288
    %p290 = scmp.ne.s32.totalorder %s282, %s284
    %p291 = scmp.eq.s32.totalorder %s38, 1
    %p292 = por %p290, %p291
    %p293 = scmp.ne.s32.totalorder %s284, %s285
    %p294 = scmp.eq.s32.totalorder %s38, 0
    %p295 = por %p293, %p294
    %p296 = scmp.ne.s32.totalorder %s284, %s285
    %p297 = scmp.eq.s32.totalorder %s39, 1
    %p298 = por %p296, %p297
    %p300 = scmp.ne.s32.totalorder %s285, %s299
    %p301 = scmp.eq.s32.totalorder %s39, 0
    %p302 = por %p300, %p301
    %s304 = sadd.s32 %s303, 1
    %p307 = scmp.eq.s32.totalorder %s33, 1
    %p308 = scmp.ne.s32.totalorder %s303, %s305
    %p309 = scmp.eq.s32.totalorder %s33, 0
    %p310 = por %p308, %p309
    %p311 = scmp.ne.s32.totalorder %s303, %s305
    %p312 = scmp.eq.s32.totalorder %s38, 1
    %p313 = por %p311, %p312
    %p314 = scmp.ne.s32.totalorder %s305, %s306
    %p315 = scmp.eq.s32.totalorder %s38, 0
    %p316 = por %p314, %p315
    %p317 = scmp.ne.s32.totalorder %s305, %s306
    %p318 = scmp.eq.s32.totalorder %s39, 1
    %p319 = por %p317, %p318
    %p321 = scmp.ne.s32.totalorder %s306, %s320
    %p322 = scmp.eq.s32.totalorder %s39, 0
    %p323 = por %p321, %p322
    %s325 = sadd.s32 %s324, 1
    %p328 = scmp.eq.s32.totalorder %s33, 1
    %p329 = scmp.ne.s32.totalorder %s324, %s326
    %p330 = scmp.eq.s32.totalorder %s33, 0
    %p331 = por %p329, %p330
    %p332 = scmp.ne.s32.totalorder %s324, %s326
    %p333 = scmp.eq.s32.totalorder %s38, 1
    %p334 = por %p332, %p333
    %p335 = scmp.ne.s32.totalorder %s326, %s327
    %p336 = scmp.eq.s32.totalorder %s38, 0
    %p337 = por %p335, %p336
    %p338 = scmp.ne.s32.totalorder %s326, %s327
    %p339 = scmp.eq.s32.totalorder %s39, 1
    %p340 = por %p338, %p339
    %p342 = scmp.ne.s32.totalorder %s327, %s341
    %p343 = scmp.eq.s32.totalorder %s39, 0
    %p344 = por %p342, %p343
    %s346 = sadd.s32 %s345, 1
    %p349 = scmp.eq.s32.totalorder %s33, 1
    %p350 = scmp.ne.s32.totalorder %s345, %s347
    %p351 = scmp.eq.s32.totalorder %s33, 0
    %p352 = por %p350, %p351
    %p353 = scmp.ne.s32.totalorder %s345, %s347
    %p354 = scmp.eq.s32.totalorder %s38, 1
    %p355 = por %p353, %p354
    %p356 = scmp.ne.s32.totalorder %s347, %s348
    %p357 = scmp.eq.s32.totalorder %s38, 0
    %p358 = por %p356, %p357
    %p359 = scmp.ne.s32.totalorder %s347, %s348
    %p360 = scmp.eq.s32.totalorder %s39, 1
    %p361 = por %p359, %p360
    %p363 = scmp.ne.s32.totalorder %s348, %s362
    %p364 = scmp.eq.s32.totalorder %s39, 0
    %p365 = por %p363, %p364
    %s367 = sadd.s32 %s366, 1
    %p370 = scmp.eq.s32.totalorder %s33, 1
    %p371 = scmp.ne.s32.totalorder %s366, %s368
    %p372 = scmp.eq.s32.totalorder %s33, 0
    %p373 = por %p371, %p372
    %p374 = scmp.ne.s32.totalorder %s366, %s368
    %p375 = scmp.eq.s32.totalorder %s38, 1
    %p376 = por %p374, %p375
    %p377 = scmp.ne.s32.totalorder %s368, %s369
    %p378 = scmp.eq.s32.totalorder %s38, 0
    %p379 = por %p377, %p378
    %p380 = scmp.ne.s32.totalorder %s368, %s369
    %p381 = scmp.eq.s32.totalorder %s39, 1
    %p382 = por %p380, %p381
    %p384 = scmp.ne.s32.totalorder %s369, %s383
    %p385 = scmp.eq.s32.totalorder %s39, 0
    %p386 = por %p384, %p385
    %s388 = sadd.s32 %s387, 1
    %p391 = scmp.eq.s32.totalorder %s33, 1
    %p392 = scmp.ne.s32.totalorder %s387, %s389
    %p393 = scmp.eq.s32.totalorder %s33, 0
    %p394 = por %p392, %p393
    %p395 = scmp.ne.s32.totalorder %s387, %s389
    %p396 = scmp.eq.s32.totalorder %s38, 1
    %p397 = por %p395, %p396
    %p398 = scmp.ne.s32.totalorder %s389, %s390
    %p399 = scmp.eq.s32.totalorder %s38, 0
    %p400 = por %p398, %p399
    %p401 = scmp.ne.s32.totalorder %s389, %s390
    %p402 = scmp.eq.s32.totalorder %s39, 1
    %p403 = por %p401, %p402
    %p405 = scmp.ne.s32.totalorder %s390, %s404
    %p406 = scmp.eq.s32.totalorder %s39, 0
    %p407 = por %p405, %p406
    %s409 = sadd.s32 %s408, 1
    %p412 = scmp.eq.s32.totalorder %s33, 1
    %p413 = scmp.ne.s32.totalorder %s408, %s410
    %p414 = scmp.eq.s32.totalorder %s33, 0
    %p415 = por %p413, %p414
    %p416 = scmp.ne.s32.totalorder %s408, %s410
    %p417 = scmp.eq.s32.totalorder %s38, 1
    %p418 = por %p416, %p417
    %p419 = scmp.ne.s32.totalorder %s410, %s411
    %p420 = scmp.eq.s32.totalorder %s38, 0
    %p421 = por %p419, %p420
    %p422 = scmp.ne.s32.totalorder %s410, %s411
    %p423 = scmp.eq.s32.totalorder %s39, 1
    %p424 = por %p422, %p423
    %p426 = scmp.ne.s32.totalorder %s411, %s425
    %p427 = scmp.eq.s32.totalorder %s39, 0
    %p428 = por %p426, %p427
    %s430 = sadd.s32 %s429, 1
    %p433 = scmp.eq.s32.totalorder %s33, 1
    %p434 = scmp.ne.s32.totalorder %s429, %s431
    %p435 = scmp.eq.s32.totalorder %s33, 0
    %p436 = por %p434, %p435
    %p437 = scmp.ne.s32.totalorder %s429, %s431
    %p438 = scmp.eq.s32.totalorder %s38, 1
    %p439 = por %p437, %p438
    %p440 = scmp.ne.s32.totalorder %s431, %s432
    %p441 = scmp.eq.s32.totalorder %s38, 0
    %p442 = por %p440, %p441
    %p443 = scmp.ne.s32.totalorder %s431, %s432
    %p444 = scmp.eq.s32.totalorder %s39, 1
    %p445 = por %p443, %p444
    %p447 = scmp.ne.s32.totalorder %s432, %s446
    %p448 = scmp.eq.s32.totalorder %s39, 0
    %p449 = por %p447, %p448
    %s451 = sadd.s32 %s450, 1
    %p454 = scmp.eq.s32.totalorder %s33, 1
    %p455 = scmp.ne.s32.totalorder %s450, %s452
    %p456 = scmp.eq.s32.totalorder %s33, 0
    %p457 = por %p455, %p456
    %p458 = scmp.ne.s32.totalorder %s450, %s452
    %p459 = scmp.eq.s32.totalorder %s38, 1
    %p460 = por %p458, %p459
    %p461 = scmp.ne.s32.totalorder %s452, %s453
    %p462 = scmp.eq.s32.totalorder %s38, 0
    %p463 = por %p461, %p462
    %p464 = scmp.ne.s32.totalorder %s452, %s453
    %p465 = scmp.eq.s32.totalorder %s39, 1
    %p466 = por %p464, %p465
    %p468 = scmp.ne.s32.totalorder %s453, %s467
    %p469 = scmp.eq.s32.totalorder %s39, 0
    %p470 = por %p468, %p469
    %s472 = sadd.s32 %s471, 1
    %p475 = scmp.eq.s32.totalorder %s33, 1
    %p476 = scmp.ne.s32.totalorder %s471, %s473
    %p477 = scmp.eq.s32.totalorder %s33, 0
    %p478 = por %p476, %p477
    %p479 = scmp.ne.s32.totalorder %s471, %s473
    %p480 = scmp.eq.s32.totalorder %s38, 1
    %p481 = por %p479, %p480
    %p482 = scmp.ne.s32.totalorder %s473, %s474
    %p483 = scmp.eq.s32.totalorder %s38, 0
    %p484 = por %p482, %p483
    %p485 = scmp.ne.s32.totalorder %s473, %s474
    %p486 = scmp.eq.s32.totalorder %s39, 1
    %p487 = por %p485, %p486
    %p489 = scmp.ne.s32.totalorder %s474, %s488
    %p490 = scmp.eq.s32.totalorder %s39, 0
    %p491 = por %p489, %p490
    %s493 = sadd.s32 %s492, 1
    %p496 = scmp.eq.s32.totalorder %s33, 1
    %p497 = scmp.ne.s32.totalorder %s492, %s494
    %p498 = scmp.eq.s32.totalorder %s33, 0
    %p499 = por %p497, %p498
    %p500 = scmp.ne.s32.totalorder %s492, %s494
    %p501 = scmp.eq.s32.totalorder %s38, 1
    %p502 = por %p500, %p501
    %p503 = scmp.ne.s32.totalorder %s494, %s495
    %p504 = scmp.eq.s32.totalorder %s38, 0
    %p505 = por %p503, %p504
    %p506 = scmp.ne.s32.totalorder %s494, %s495
    %p507 = scmp.eq.s32.totalorder %s39, 1
    %p508 = por %p506, %p507
    %p510 = scmp.ne.s32.totalorder %s495, %s509
    %p511 = scmp.eq.s32.totalorder %s39, 0
    %p512 = por %p510, %p511
    %s514 = sadd.s32 %s513, 1
    %p517 = scmp.eq.s32.totalorder %s33, 1
    %p518 = scmp.ne.s32.totalorder %s513, %s515
    %p519 = scmp.eq.s32.totalorder %s33, 0
    %p520 = por %p518, %p519
    %p521 = scmp.ne.s32.totalorder %s513, %s515
    %p522 = scmp.eq.s32.totalorder %s38, 1
    %p523 = por %p521, %p522
    %p524 = scmp.ne.s32.totalorder %s515, %s516
    %p525 = scmp.eq.s32.totalorder %s38, 0
    %p526 = por %p524, %p525
    %p527 = scmp.ne.s32.totalorder %s515, %s516
    %p528 = scmp.eq.s32.totalorder %s39, 1
    %p529 = por %p527, %p528
    %p531 = scmp.ne.s32.totalorder %s516, %s530
    %p532 = scmp.eq.s32.totalorder %s39, 0
    %p533 = por %p531, %p532
    %s535 = sadd.s32 %s534, 1
    %p538 = scmp.eq.s32.totalorder %s33, 1
    %p539 = scmp.ne.s32.totalorder %s534, %s536
    %p540 = scmp.eq.s32.totalorder %s33, 0
    %p541 = por %p539, %p540
    %p542 = scmp.ne.s32.totalorder %s534, %s536
    %p543 = scmp.eq.s32.totalorder %s38, 1
    %p544 = por %p542, %p543
    %p545 = scmp.ne.s32.totalorder %s536, %s537
    %p546 = scmp.eq.s32.totalorder %s38, 0
    %p547 = por %p545, %p546
    %p548 = scmp.ne.s32.totalorder %s536, %s537
    %p549 = scmp.eq.s32.totalorder %s39, 1
    %p550 = por %p548, %p549
    %p552 = scmp.ne.s32.totalorder %s537, %s551
    %p553 = scmp.eq.s32.totalorder %s39, 0
    %p554 = por %p552, %p553
    %s556 = sadd.s32 %s555, 1
    %p559 = scmp.eq.s32.totalorder %s33, 1
    %p560 = scmp.ne.s32.totalorder %s555, %s557
    %p561 = scmp.eq.s32.totalorder %s33, 0
    %p562 = por %p560, %p561
    %p563 = scmp.ne.s32.totalorder %s555, %s557
    %p564 = scmp.eq.s32.totalorder %s38, 1
    %p565 = por %p563, %p564
    %p566 = scmp.ne.s32.totalorder %s557, %s558
    %p567 = scmp.eq.s32.totalorder %s38, 0
    %p568 = por %p566, %p567
    %p569 = scmp.ne.s32.totalorder %s557, %s558
    %p570 = scmp.eq.s32.totalorder %s39, 1
    %p571 = por %p569, %p570
    %p573 = scmp.ne.s32.totalorder %s558, %s572
    %p574 = scmp.eq.s32.totalorder %s39, 0
    %p575 = por %p573, %p574
    %s577 = sadd.s32 %s576, 1
    %p580 = scmp.eq.s32.totalorder %s33, 1
    %p581 = scmp.ne.s32.totalorder %s576, %s578
    %p582 = scmp.eq.s32.totalorder %s33, 0
    %p583 = por %p581, %p582
    %p584 = scmp.ne.s32.totalorder %s576, %s578
    %p585 = scmp.eq.s32.totalorder %s38, 1
    %p586 = por %p584, %p585
    %p587 = scmp.ne.s32.totalorder %s578, %s579
    %p588 = scmp.eq.s32.totalorder %s38, 0
    %p589 = por %p587, %p588
    %p590 = scmp.ne.s32.totalorder %s578, %s579
    %p591 = scmp.eq.s32.totalorder %s39, 1
    %p592 = por %p590, %p591
    %p594 = scmp.ne.s32.totalorder %s579, %s593
    %p595 = scmp.eq.s32.totalorder %s39, 0
    %p596 = por %p594, %p595
    %s598 = sadd.s32 %s597, 1
    %p601 = scmp.eq.s32.totalorder %s33, 1
    %p602 = scmp.ne.s32.totalorder %s597, %s599
    %p603 = scmp.eq.s32.totalorder %s33, 0
    %p604 = por %p602, %p603
    %p605 = scmp.ne.s32.totalorder %s597, %s599
    %p606 = scmp.eq.s32.totalorder %s38, 1
    %p607 = por %p605, %p606
    %p608 = scmp.ne.s32.totalorder %s599, %s600
    %p609 = scmp.eq.s32.totalorder %s38, 0
    %p610 = por %p608, %p609
    %p611 = scmp.ne.s32.totalorder %s599, %s600
    %p612 = scmp.eq.s32.totalorder %s39, 1
    %p613 = por %p611, %p612
    %p615 = scmp.ne.s32.totalorder %s600, %s614
    %p616 = scmp.eq.s32.totalorder %s39, 0
    %p617 = por %p615, %p616
    %s618 = ssub.s32 %s33, %s40
    %p619 = scmp.eq.s32.totalorder %s618, 0
    %s621 = sadd.s32 %s620, 1
    %s622 = scalar_select %p619, %s620, %s621
    %p625 = pneg %p619
    %p626 = scmp.eq.s32.totalorder %s33, 1
    %p627 = por %p625, %p626
    %p628 = scmp.ne.s32.totalorder %s620, %s623
    %p629 = scmp.eq.s32.totalorder %s33, 0
    %p630 = por %p628, %p629
    %p631 = scmp.ne.s32.totalorder %s620, %s623
    %p632 = scmp.eq.s32.totalorder %s38, 1
    %p633 = por %p631, %p632
    %p634 = scmp.ne.s32.totalorder %s623, %s624
    %p635 = scmp.eq.s32.totalorder %s38, 0
    %p636 = por %p634, %p635
    %p637 = scmp.ne.s32.totalorder %s623, %s624
    %p638 = scmp.eq.s32.totalorder %s39, 1
    %p639 = por %p637, %p638
    %p641 = scmp.ne.s32.totalorder %s624, %s640
    %p642 = scmp.eq.s32.totalorder %s39, 0
    %p643 = por %p641, %p642
    %p644 = scmp.le.s32.totalorder 1, %s33
    %p645 = scmp.lt.s32.totalorder %s33, 3
    %p646 = pnand %p644, %p645
    %p647 = pneg %p646
    // Predicated region
    $region9: #{nerf_forward_pallas.1} parent=5 // pred_check
      _
    $region10: #{nerf_forward_pallas.1} parent=5 // pred_check_branch
      %649 = sbr.rel (%p646) target = $region12
    $region11: #{nerf_forward_pallas.1} parent=5 // pred_region
      %s650 = ssub.s32 %s33, 1
      // Predicated region
      $region13: #{nerf_forward_pallas.1} parent=11 // pred_check
        %p651 = pneg %p106
      $region14: #{nerf_forward_pallas.1} parent=11 // pred_check_branch
        %653 = sbr.rel (%p651) target = $region16
      $region15: #{nerf_forward_pallas.1} parent=11 // pred_region
        _
      $region16: #{nerf_forward_pallas.1} parent=11 // pred_fallthru
        _
      // Predicated region
      $region17: #{nerf_forward_pallas.1} parent=11 // pred_check
        %p654 = pneg %p127
      $region18: #{nerf_forward_pallas.1} parent=11 // pred_check_branch
        %656 = sbr.rel (%p654) target = $region20
      $region19: #{nerf_forward_pallas.1} parent=11 // pred_region
        _
      $region20: #{nerf_forward_pallas.1} parent=11 // pred_fallthru
        _
      // Predicated region
      $region21: #{nerf_forward_pallas.1} parent=11 // pred_check
        %p657 = pneg %p148
      $region22: #{nerf_forward_pallas.1} parent=11 // pred_check_branch
        %659 = sbr.rel (%p657) target = $region24
      $region23: #{nerf_forward_pallas.1} parent=11 // pred_region
        _
      $region24: #{nerf_forward_pallas.1} parent=11 // pred_fallthru
        _
      // Predicated region
      $region25: #{nerf_forward_pallas.1} parent=11 // pred_check
        %p660 = pneg %p169
      $region26: #{nerf_forward_pallas.1} parent=11 // pred_check_branch
        %662 = sbr.rel (%p660) target = $region28
      $region27: #{nerf_forward_pallas.1} parent=11 // pred_region
        _
      $region28: #{nerf_forward_pallas.1} parent=11 // pred_fallthru
        _
      // Predicated region
      $region29: #{nerf_forward_pallas.1} parent=11 // pred_check
        %p663 = pneg %p190
      $region30: #{nerf_forward_pallas.1} parent=11 // pred_check_branch
        %665 = sbr.rel (%p663) target = $region32
      $region31: #{nerf_forward_pallas.1} parent=11 // pred_region
        _
      $region32: #{nerf_forward_pallas.1} parent=11 // pred_fallthru
        _
      // Predicated region
      $region33: #{nerf_forward_pallas.1} parent=11 // pred_check
        %p666 = pneg %p211
      $region34: #{nerf_forward_pallas.1} parent=11 // pred_check_branch
        %668 = sbr.rel (%p666) target = $region36
      $region35: #{nerf_forward_pallas.1} parent=11 // pred_region
        _
      $region36: #{nerf_forward_pallas.1} parent=11 // pred_fallthru
        _
      // Predicated region
      $region37: #{nerf_forward_pallas.1} parent=11 // pred_check
        %p669 = pneg %p232
      $region38: #{nerf_forward_pallas.1} parent=11 // pred_check_branch
        %671 = sbr.rel (%p669) target = $region40
      $region39: #{nerf_forward_pallas.1} parent=11 // pred_region
        _
      $region40: #{nerf_forward_pallas.1} parent=11 // pred_fallthru
        _
      // Predicated region
      $region41: #{nerf_forward_pallas.1} parent=11 // pred_check
        %p672 = pneg %p253
      $region42: #{nerf_forward_pallas.1} parent=11 // pred_check_branch
        %674 = sbr.rel (%p672) target = $region44
      $region43: #{nerf_forward_pallas.1} parent=11 // pred_region
        _
      $region44: #{nerf_forward_pallas.1} parent=11 // pred_fallthru
        _
      // Predicated region
      $region45: #{nerf_forward_pallas.1} parent=11 // pred_check
        %p675 = pneg %p274
      $region46: #{nerf_forward_pallas.1} parent=11 // pred_check_branch
        %677 = sbr.rel (%p675) target = $region48
      $region47: #{nerf_forward_pallas.1} parent=11 // pred_region
        _
      $region48: #{nerf_forward_pallas.1} parent=11 // pred_fallthru
        _
      // Predicated region
      $region49: #{nerf_forward_pallas.1} parent=11 // pred_check
        %p678 = pneg %p295
      $region50: #{nerf_forward_pallas.1} parent=11 // pred_check_branch
        %680 = sbr.rel (%p678) target = $region52
      $region51: #{nerf_forward_pallas.1} parent=11 // pred_region
        _
      $region52: #{nerf_forward_pallas.1} parent=11 // pred_fallthru
        _
      // Predicated region
      $region53: #{nerf_forward_pallas.1} parent=11 // pred_check
        %p681 = pneg %p316
      $region54: #{nerf_forward_pallas.1} parent=11 // pred_check_branch
        %683 = sbr.rel (%p681) target = $region56
      $region55: #{nerf_forward_pallas.1} parent=11 // pred_region
        _
      $region56: #{nerf_forward_pallas.1} parent=11 // pred_fallthru
        _
      // Predicated region
      $region57: #{nerf_forward_pallas.1} parent=11 // pred_check
        %p684 = pneg %p337
      $region58: #{nerf_forward_pallas.1} parent=11 // pred_check_branch
        %686 = sbr.rel (%p684) target = $region60
      $region59: #{nerf_forward_pallas.1} parent=11 // pred_region
        _
      $region60: #{nerf_forward_pallas.1} parent=11 // pred_fallthru
        _
      // Predicated region
      $region61: #{nerf_forward_pallas.1} parent=11 // pred_check
        %p687 = pneg %p358
      $region62: #{nerf_forward_pallas.1} parent=11 // pred_check_branch
        %689 = sbr.rel (%p687) target = $region64
      $region63: #{nerf_forward_pallas.1} parent=11 // pred_region
        _
      $region64: #{nerf_forward_pallas.1} parent=11 // pred_fallthru
        _
      // Predicated region
      $region65: #{nerf_forward_pallas.1} parent=11 // pred_check
        %p690 = pneg %p379
      $region66: #{nerf_forward_pallas.1} parent=11 // pred_check_branch
        %692 = sbr.rel (%p690) target = $region68
      $region67: #{nerf_forward_pallas.1} parent=11 // pred_region
        _
      $region68: #{nerf_forward_pallas.1} parent=11 // pred_fallthru
        _
      // Predicated region
      $region69: #{nerf_forward_pallas.1} parent=11 // pred_check
        %p693 = pneg %p400
      $region70: #{nerf_forward_pallas.1} parent=11 // pred_check_branch
        %695 = sbr.rel (%p693) target = $region72
      $region71: #{nerf_forward_pallas.1} parent=11 // pred_region
        _
      $region72: #{nerf_forward_pallas.1} parent=11 // pred_fallthru
        _
      // Predicated region
      $region73: #{nerf_forward_pallas.1} parent=11 // pred_check
        %p696 = pneg %p421
      $region74: #{nerf_forward_pallas.1} parent=11 // pred_check_branch
        %698 = sbr.rel (%p696) target = $region76
      $region75: #{nerf_forward_pallas.1} parent=11 // pred_region
        _
      $region76: #{nerf_forward_pallas.1} parent=11 // pred_fallthru
        _
      // Predicated region
      $region77: #{nerf_forward_pallas.1} parent=11 // pred_check
        %p699 = pneg %p442
      $region78: #{nerf_forward_pallas.1} parent=11 // pred_check_branch
        %701 = sbr.rel (%p699) target = $region80
      $region79: #{nerf_forward_pallas.1} parent=11 // pred_region
        _
      $region80: #{nerf_forward_pallas.1} parent=11 // pred_fallthru
        _
      // Predicated region
      $region81: #{nerf_forward_pallas.1} parent=11 // pred_check
        %p702 = pneg %p463
      $region82: #{nerf_forward_pallas.1} parent=11 // pred_check_branch
        %704 = sbr.rel (%p702) target = $region84
      $region83: #{nerf_forward_pallas.1} parent=11 // pred_region
        _
      $region84: #{nerf_forward_pallas.1} parent=11 // pred_fallthru
        _
      // Predicated region
      $region85: #{nerf_forward_pallas.1} parent=11 // pred_check
        %p705 = pneg %p484
      $region86: #{nerf_forward_pallas.1} parent=11 // pred_check_branch
        %707 = sbr.rel (%p705) target = $region88
      $region87: #{nerf_forward_pallas.1} parent=11 // pred_region
        _
      $region88: #{nerf_forward_pallas.1} parent=11 // pred_fallthru
        _
      // Predicated region
      $region89: #{nerf_forward_pallas.1} parent=11 // pred_check
        %p708 = pneg %p505
      $region90: #{nerf_forward_pallas.1} parent=11 // pred_check_branch
        %710 = sbr.rel (%p708) target = $region92
      $region91: #{nerf_forward_pallas.1} parent=11 // pred_region
        _
      $region92: #{nerf_forward_pallas.1} parent=11 // pred_fallthru
        _
      // Predicated region
      $region93: #{nerf_forward_pallas.1} parent=11 // pred_check
        %p711 = pneg %p526
      $region94: #{nerf_forward_pallas.1} parent=11 // pred_check_branch
        %713 = sbr.rel (%p711) target = $region96
      $region95: #{nerf_forward_pallas.1} parent=11 // pred_region
        _
      $region96: #{nerf_forward_pallas.1} parent=11 // pred_fallthru
        _
      // Predicated region
      $region97: #{nerf_forward_pallas.1} parent=11 // pred_check
        %p714 = pneg %p547
      $region98: #{nerf_forward_pallas.1} parent=11 // pred_check_branch
        %716 = sbr.rel (%p714) target = $region100
      $region99: #{nerf_forward_pallas.1} parent=11 // pred_region
        _
      $region100: #{nerf_forward_pallas.1} parent=11 // pred_fallthru
        _
      // Predicated region
      $region101: #{nerf_forward_pallas.1} parent=11 // pred_check
        %p717 = pneg %p568
      $region102: #{nerf_forward_pallas.1} parent=11 // pred_check_branch
        %719 = sbr.rel (%p717) target = $region104
      $region103: #{nerf_forward_pallas.1} parent=11 // pred_region
        _
      $region104: #{nerf_forward_pallas.1} parent=11 // pred_fallthru
        _
      // Predicated region
      $region105: #{nerf_forward_pallas.1} parent=11 // pred_check
        %p720 = pneg %p589
      $region106: #{nerf_forward_pallas.1} parent=11 // pred_check_branch
        %722 = sbr.rel (%p720) target = $region108
      $region107: #{nerf_forward_pallas.1} parent=11 // pred_region
        _
      $region108: #{nerf_forward_pallas.1} parent=11 // pred_fallthru
        _
      // Predicated region
      $region109: #{nerf_forward_pallas.1} parent=11 // pred_check
        %p723 = pneg %p610
      $region110: #{nerf_forward_pallas.1} parent=11 // pred_check_branch
        %725 = sbr.rel (%p723) target = $region112
      $region111: #{nerf_forward_pallas.1} parent=11 // pred_region
        _
      $region112: #{nerf_forward_pallas.1} parent=11 // pred_fallthru
        _
    $region12: #{nerf_forward_pallas.1} parent=5 // pred_fallthru
      _
    %p726 = scmp.lt.s32.totalorder %s33, 2
    // Predicated region
    $region113: #{nerf_forward_pallas.1} parent=5 // pred_check
      %p727 = pneg %p726
    $region114: #{nerf_forward_pallas.1} parent=5 // pred_check_branch
      %729 = sbr.rel (%p727) target = $region116
    $region115: #{nerf_forward_pallas.1} parent=5 // pred_region
      // Predicated region
      $region117: #{nerf_forward_pallas.1} parent=115 // pred_check
        %p730 = pneg %p53
      $region118: #{nerf_forward_pallas.1} parent=115 // pred_check_branch
        %732 = sbr.rel (%p730) target = $region120
      $region119: #{nerf_forward_pallas.1} parent=115 // pred_region
        %s733 = smul.u32 32, %s33
        %p734 = scmp.lt.s32.totalorder %s733, 63
        %s735 = scalar_select %p734, %s733, 63
        %s736 = smul.addr %s735, 8
        %s737 = scalar_lea.vmem %s0, %s736
        %s738 = smul.u32 32, %s33
      $region120: #{nerf_forward_pallas.1} parent=115 // pred_fallthru
        _
      // Predicated region
      $region121: #{nerf_forward_pallas.1} parent=115 // pred_check
        %p739 = pneg %p79
      $region122: #{nerf_forward_pallas.1} parent=115 // pred_check_branch
        %741 = sbr.rel (%p739) target = $region124
      $region123: #{nerf_forward_pallas.1} parent=115 // pred_region
        %s742 = smul.u32 32, %s33
        %p743 = scmp.lt.s32.totalorder %s742, 63
        %s744 = scalar_select %p743, %s742, 63
        %s745 = smul.addr %s744, 8
        %s746 = scalar_lea.vmem %s1, %s745
        %s747 = smul.u32 32, %s33
      $region124: #{nerf_forward_pallas.1} parent=115 // pred_fallthru
        _
    $region116: #{nerf_forward_pallas.1} parent=5 // pred_fallthru
      _
    %p748 = scmp.le.s32.totalorder 1, %s33
    %p749 = scmp.lt.s32.totalorder %s33, 3
    %p750 = pnand %p748, %p749
    %p751 = pneg %p750
    // Predicated region
    $region125: #{nerf_forward_pallas.1} parent=5 // pred_check
      _
    $region126: #{nerf_forward_pallas.1} parent=5 // pred_check_branch
      %753 = sbr.rel (%p750) target = $region128
    $region127: #{nerf_forward_pallas.1} parent=5 // pred_region
      %s754 = ssub.s32 %s33, 1
      %s755 = smul.u32 32, %s38
      %p756 = scmp.lt.s32.totalorder %s755, 63
      %s757 = scalar_select %p756, %s755, 63
      %s758 = smul.addr %s757, 8
      %s759 = scalar_lea.vmem %s0, %s758
      %p760 = pneg %p59
      %p761 = pneg %p56
      %s762 = smul.u32 32, %s38
      %p763 = scmp.lt.s32.totalorder %s762, 63
      %s764 = scalar_select %p763, %s762, 63
      %s765 = smul.addr %s764, 8
      %s766 = scalar_lea.vmem %s1, %s765
      %p767 = pneg %p85
      %p768 = pneg %p82
      %p769 = pneg %p106
      %p770 = pneg %p103
      %p771 = pneg %p127
      %p772 = pneg %p124
      %p773 = pneg %p148
      %p774 = pneg %p145
      %p775 = pneg %p169
      %p776 = pneg %p166
      %p777 = pneg %p190
      %p778 = pneg %p187
      %p779 = pneg %p211
      %p780 = pneg %p208
      %p781 = pneg %p232
      %p782 = pneg %p229
      %p783 = pneg %p253
      %p784 = pneg %p250
      %p785 = pneg %p274
      %p786 = pneg %p271
      %p787 = pneg %p295
      %p788 = pneg %p292
      %p789 = pneg %p316
      %p790 = pneg %p313
      %p791 = pneg %p337
      %p792 = pneg %p334
      %p793 = pneg %p358
      %p794 = pneg %p355
      %p795 = pneg %p379
      %p796 = pneg %p376
      %p797 = pneg %p400
      %p798 = pneg %p397
      %p799 = pneg %p421
      %p800 = pneg %p418
      %p801 = pneg %p442
      %p802 = pneg %p439
      %p803 = pneg %p463
      %p804 = pneg %p460
      %p805 = pneg %p484
      %p806 = pneg %p481
      %p807 = pneg %p505
      %p808 = pneg %p502
      %p809 = pneg %p526
      %p810 = pneg %p523
      %p811 = pneg %p547
      %p812 = pneg %p544
      %p813 = pneg %p568
      %p814 = pneg %p565
      %p815 = pneg %p589
      %p816 = pneg %p586
      %p817 = pneg %p610
      %p818 = pneg %p607
      %p819 = pneg %p636
      %p820 = pneg %p633
      %s821 = smul.u32 32, %s38
      %p822 = scmp.lt.s32.totalorder %s821, 63
      %s823 = scalar_select %p822, %s821, 63
      %s824 = smul.addr %s823, 8
      %s825 = scalar_lea.vmem %s27, %s824
      %s826 = smul.u32 32, %s38
      %p827 = scmp.lt.s32.totalorder %s826, 63
      %s828 = scalar_select %p827, %s826, 63
      %s829 = smul.addr %s828, 8
      %s830 = scalar_lea.vmem %s0, %s829
      %s831 = smul.u32 32, %s38
      %s832 = smul.u32 32, %s38
      %p833 = scmp.lt.s32.totalorder %s832, 63
      %s834 = scalar_select %p833, %s832, 63
      %s835 = smul.addr %s834, 8
      %s836 = scalar_lea.vmem %s1, %s835
      %s837 = smul.u32 32, %s38
      %s838 = smul.u32 32, %s38
      %p839 = scmp.lt.s32.totalorder %s838, 63
      %s840 = scalar_select %p839, %s838, 63
      %s841 = smul.addr %s840, 8
      %s842 = scalar_lea.vmem %s27, %s841
      %s843 = smul.u32 32, %s38
      %v845 = vld [vmem:[%s830] sm:$0xff]
      %v846 = vld [vmem:[%s830 + $0x8] sm:$0xff]
      %v847 = vld [vmem:[%s830 + $0x10] sm:$0xff]
      %v848 = vld [vmem:[%s830 + $0x18] sm:$0xff]
      %v849 = vld [vmem:[%s830 + $0x20] sm:$0xff]
      %v850 = vld [vmem:[%s830 + $0x28] sm:$0xff]
      %v851 = vld [vmem:[%s830 + $0x30] sm:$0xff]
      %v852 = vld [vmem:[%s830 + $0x38] sm:$0xff]
      %v853 = vld [vmem:[%s830 + $0x40] sm:$0xff]
      %v854 = vld [vmem:[%s830 + $0x48] sm:$0xff]
      %v855 = vld [vmem:[%s830 + $0x50] sm:$0xff]
      %v856 = vld [vmem:[%s830 + $0x58] sm:$0xff]
      %v857 = vld [vmem:[%s830 + $0x60] sm:$0xff]
      %v858 = vld [vmem:[%s830 + $0x68] sm:$0xff]
      %v859 = vld [vmem:[%s830 + $0x70] sm:$0xff]
      %v860 = vld [vmem:[%s830 + $0x78] sm:$0xff]
      %v861 = vld [vmem:[%s830 + $0x80] sm:$0xff]
      %v862 = vld [vmem:[%s830 + $0x88] sm:$0xff]
      %v863 = vld [vmem:[%s830 + $0x90] sm:$0xff]
      %v864 = vld [vmem:[%s830 + $0x98] sm:$0xff]
      %v865 = vld [vmem:[%s830 + $0xa0] sm:$0xff]
      %v866 = vld [vmem:[%s830 + $0xa8] sm:$0xff]
      %v867 = vld [vmem:[%s830 + $0xb0] sm:$0xff]
      %v868 = vld [vmem:[%s830 + $0xb8] sm:$0xff]
      %v869 = vld [vmem:[%s830 + $0xc0] sm:$0xff]
      %v870 = vld [vmem:[%s830 + $0xc8] sm:$0xff]
      %v871 = vld [vmem:[%s830 + $0xd0] sm:$0xff]
      %v872 = vld [vmem:[%s830 + $0xd8] sm:$0xff]
      %v873 = vld [vmem:[%s830 + $0xe0] sm:$0xff]
      %v874 = vld [vmem:[%s830 + $0xe8] sm:$0xff]
      %v875 = vld [vmem:[%s830 + $0xf0] sm:$0xff]
      %v876 = vld [vmem:[%s830 + $0xf8] sm:$0xff]
      %v877 = vld [vmem:[%s836] sm:$0xff]
      %v878 = vld [vmem:[%s836 + $0x8] sm:$0xff]
      %v879 = vld [vmem:[%s836 + $0x10] sm:$0xff]
      %v880 = vld [vmem:[%s836 + $0x18] sm:$0xff]
      %v881 = vld [vmem:[%s836 + $0x20] sm:$0xff]
      %v882 = vld [vmem:[%s836 + $0x28] sm:$0xff]
      %v883 = vld [vmem:[%s836 + $0x30] sm:$0xff]
      %v884 = vld [vmem:[%s836 + $0x38] sm:$0xff]
      %v885 = vld [vmem:[%s836 + $0x40] sm:$0xff]
      %v886 = vld [vmem:[%s836 + $0x48] sm:$0xff]
      %v887 = vld [vmem:[%s836 + $0x50] sm:$0xff]
      %v888 = vld [vmem:[%s836 + $0x58] sm:$0xff]
      %v889 = vld [vmem:[%s836 + $0x60] sm:$0xff]
      %v890 = vld [vmem:[%s836 + $0x68] sm:$0xff]
      %v891 = vld [vmem:[%s836 + $0x70] sm:$0xff]
      %v892 = vld [vmem:[%s836 + $0x78] sm:$0xff]
      %v893 = vld [vmem:[%s836 + $0x80] sm:$0xff]
      %v894 = vld [vmem:[%s836 + $0x88] sm:$0xff]
      %v895 = vld [vmem:[%s836 + $0x90] sm:$0xff]
      %v896 = vld [vmem:[%s836 + $0x98] sm:$0xff]
      %v897 = vld [vmem:[%s836 + $0xa0] sm:$0xff]
      %v898 = vld [vmem:[%s836 + $0xa8] sm:$0xff]
      %v899 = vld [vmem:[%s836 + $0xb0] sm:$0xff]
      %v900 = vld [vmem:[%s836 + $0xb8] sm:$0xff]
      %v901 = vld [vmem:[%s836 + $0xc0] sm:$0xff]
      %v902 = vld [vmem:[%s836 + $0xc8] sm:$0xff]
      %v903 = vld [vmem:[%s836 + $0xd0] sm:$0xff]
      %v904 = vld [vmem:[%s836 + $0xd8] sm:$0xff]
      %v905 = vld [vmem:[%s836 + $0xe0] sm:$0xff]
      %v906 = vld [vmem:[%s836 + $0xe8] sm:$0xff]
      %v907 = vld [vmem:[%s836 + $0xf0] sm:$0xff]
      %v908 = vld [vmem:[%s836 + $0xf8] sm:$0xff]
      %v909 = vpack.c.bf16 %v846, %v845
      %v910 = vpack.c.bf16 %v848, %v847
      %v911 = vpack.c.bf16 %v850, %v849
      %v912 = vpack.c.bf16 %v852, %v851
      %v913 = vpack.c.bf16 %v854, %v853
      %v914 = vpack.c.bf16 %v856, %v855
      %v915 = vpack.c.bf16 %v858, %v857
      %v916 = vpack.c.bf16 %v860, %v859
      %v917 = vpack.c.bf16 %v862, %v861
      %v918 = vpack.c.bf16 %v864, %v863
      %v919 = vpack.c.bf16 %v866, %v865
      %v920 = vpack.c.bf16 %v868, %v867
      %v921 = vpack.c.bf16 %v870, %v869
      %v922 = vpack.c.bf16 %v872, %v871
      %v923 = vpack.c.bf16 %v874, %v873
      %v924 = vpack.c.bf16 %v876, %v875
      %v925 = vpack.c.bf16 %v878, %v877
      %v926 = vpack.c.bf16 %v880, %v879
      %v927 = vpack.c.bf16 %v882, %v881
      %v928 = vpack.c.bf16 %v884, %v883
      %v929 = vpack.c.bf16 %v886, %v885
      %v930 = vpack.c.bf16 %v888, %v887
      %v931 = vpack.c.bf16 %v890, %v889
      %v932 = vpack.c.bf16 %v892, %v891
      %v933 = vpack.c.bf16 %v894, %v893
      %v934 = vpack.c.bf16 %v896, %v895
      %v935 = vpack.c.bf16 %v898, %v897
      %v936 = vpack.c.bf16 %v900, %v899
      %v937 = vpack.c.bf16 %v902, %v901
      %v938 = vpack.c.bf16 %v904, %v903
      %v939 = vpack.c.bf16 %v906, %v905
      %v940 = vpack.c.bf16 %v908, %v907
      %v941 = vld [vmem:[%s2] sm:$0xf]
      %v942 = vld [vmem:[%s2 + $0x4] sm:$0xf]
      %v943 = vld [vmem:[%s3] sm:$0x1]
      %v945 = vperm.slane %v943, 0
      %v949 = vunpack.c.l.b16 %v941
      %v950 = vunpack.c.l.b16 %v942
      %v951 = vpack.c.b16 %v950, %v949
      %vm953 = vcmask 130048
      %v955 = vsel %vm953, %v909, 0
      %v958 = vsel %vm953, %v910, 0
      %v961 = vsel %vm953, %v911, 0
      %v964 = vsel %vm953, %v912, 0
      %v967 = vsel %vm953, %v913, 0
      %v970 = vsel %vm953, %v914, 0
      %v973 = vsel %vm953, %v915, 0
      %v976 = vsel %vm953, %v916, 0
      %v979 = vsel %vm953, %v917, 0
      %v982 = vsel %vm953, %v918, 0
      %v985 = vsel %vm953, %v919, 0
      %v988 = vsel %vm953, %v920, 0
      %v991 = vsel %vm953, %v921, 0
      %v994 = vsel %vm953, %v922, 0
      %v997 = vsel %vm953, %v923, 0
      %v1000 = vsel %vm953, %v924, 0
      %1002 = vmatpush.bf16.msra.mxu0 0
      %1003 = vmatpush.bf16.msra.mxu0 0
      %1004 = vmatpush.bf16.msra.mxu0 0
      %1005 = vmatpush.bf16.msra.mxu0 0
      %1006 = vmatpush.bf16.msra.mxu0 0
      %1007 = vmatpush.bf16.msra.mxu0 0
      %1008 = vmatpush.bf16.msra.mxu0 0
      %1009 = vmatpush.bf16.msra.mxu0 %v951
      %1010 = vmatmul.bf16.gmra.mxu0 %v955
      %v1011 = vpop.f32.mrf.mxu0
      %v1012 = vadd.f32 %v945, %v1011
      %v1013 = vpop.f32.mrf.mxu0
      %v1014 = vadd.f32 %v945, %v1013
      %1015 = vmatmul.bf16.gmra.mxu0 %v958
      %v1016 = vpop.f32.mrf.mxu0
      %v1017 = vadd.f32 %v945, %v1016
      %v1018 = vpop.f32.mrf.mxu0
      %v1019 = vadd.f32 %v945, %v1018
      %1020 = vmatmul.bf16.gmra.mxu0 %v961
      %v1021 = vpop.f32.mrf.mxu0
      %v1022 = vadd.f32 %v945, %v1021
      %v1023 = vpop.f32.mrf.mxu0
      %v1024 = vadd.f32 %v945, %v1023
      %1025 = vmatmul.bf16.gmra.mxu0 %v964
      %v1026 = vpop.f32.mrf.mxu0
      %v1027 = vadd.f32 %v945, %v1026
      %v1028 = vpop.f32.mrf.mxu0
      %v1029 = vadd.f32 %v945, %v1028
      %1030 = vmatmul.bf16.gmra.mxu0 %v967
      %v1031 = vpop.f32.mrf.mxu0
      %v1032 = vadd.f32 %v945, %v1031
      %v1033 = vpop.f32.mrf.mxu0
      %v1034 = vadd.f32 %v945, %v1033
      %1035 = vmatmul.bf16.gmra.mxu0 %v970
      %v1036 = vpop.f32.mrf.mxu0
      %v1037 = vadd.f32 %v945, %v1036
      %v1038 = vpop.f32.mrf.mxu0
      %v1039 = vadd.f32 %v945, %v1038
      %1040 = vmatmul.bf16.gmra.mxu0 %v973
      %v1041 = vpop.f32.mrf.mxu0
      %v1042 = vadd.f32 %v945, %v1041
      %v1043 = vpop.f32.mrf.mxu0
      %v1044 = vadd.f32 %v945, %v1043
      %1045 = vmatmul.bf16.gmra.mxu0 %v976
      %v1046 = vpop.f32.mrf.mxu0
      %v1047 = vadd.f32 %v945, %v1046
      %v1048 = vpop.f32.mrf.mxu0
      %v1049 = vadd.f32 %v945, %v1048
      %1050 = vmatmul.bf16.gmra.mxu0 %v979
      %v1051 = vpop.f32.mrf.mxu0
      %v1052 = vadd.f32 %v945, %v1051
      %v1053 = vpop.f32.mrf.mxu0
      %v1054 = vadd.f32 %v945, %v1053
      %1055 = vmatmul.bf16.gmra.mxu0 %v982
      %v1056 = vpop.f32.mrf.mxu0
      %v1057 = vadd.f32 %v945, %v1056
      %v1058 = vpop.f32.mrf.mxu0
      %v1059 = vadd.f32 %v945, %v1058
      %1060 = vmatmul.bf16.gmra.mxu0 %v985
      %v1061 = vpop.f32.mrf.mxu0
      %v1062 = vadd.f32 %v945, %v1061
      %v1063 = vpop.f32.mrf.mxu0
      %v1064 = vadd.f32 %v945, %v1063
      %1065 = vmatmul.bf16.gmra.mxu0 %v988
      %v1066 = vpop.f32.mrf.mxu0
      %v1067 = vadd.f32 %v945, %v1066
      %v1068 = vpop.f32.mrf.mxu0
      %v1069 = vadd.f32 %v945, %v1068
      %1070 = vmatmul.bf16.gmra.mxu0 %v991
      %v1071 = vpop.f32.mrf.mxu0
      %v1072 = vadd.f32 %v945, %v1071
      %v1073 = vpop.f32.mrf.mxu0
      %v1074 = vadd.f32 %v945, %v1073
      %1075 = vmatmul.bf16.gmra.mxu0 %v994
      %v1076 = vpop.f32.mrf.mxu0
      %v1077 = vadd.f32 %v945, %v1076
      %v1078 = vpop.f32.mrf.mxu0
      %v1079 = vadd.f32 %v945, %v1078
      %1080 = vmatmul.bf16.gmra.mxu0 %v997
      %v1081 = vpop.f32.mrf.mxu0
      %v1082 = vadd.f32 %v945, %v1081
      %v1083 = vpop.f32.mrf.mxu0
      %v1084 = vadd.f32 %v945, %v1083
      %1085 = vmatmul.bf16.gmra.mxu0 %v1000
      %v1086 = vpop.f32.mrf.mxu0
      %v1087 = vadd.f32 %v945, %v1086
      %v1088 = vpop.f32.mrf.mxu0
      %v1089 = vadd.f32 %v945, %v1088
      %1090 = vdwg.mxu0
      %v1091 = vmax.f32 %v1012, 0.0
      %v1092 = vmax.f32 %v1014, 0.0
      %v1093 = vmax.f32 %v1017, 0.0
      %v1094 = vmax.f32 %v1019, 0.0
      %v1095 = vmax.f32 %v1022, 0.0
      %v1096 = vmax.f32 %v1024, 0.0
      %v1097 = vmax.f32 %v1027, 0.0
      %v1098 = vmax.f32 %v1029, 0.0
      %v1099 = vmax.f32 %v1032, 0.0
      %v1100 = vmax.f32 %v1034, 0.0
      %v1101 = vmax.f32 %v1037, 0.0
      %v1102 = vmax.f32 %v1039, 0.0
      %v1103 = vmax.f32 %v1042, 0.0
      %v1104 = vmax.f32 %v1044, 0.0
      %v1105 = vmax.f32 %v1047, 0.0
      %v1106 = vmax.f32 %v1049, 0.0
      %v1107 = vmax.f32 %v1052, 0.0
      %v1108 = vmax.f32 %v1054, 0.0
      %v1109 = vmax.f32 %v1057, 0.0
      %v1110 = vmax.f32 %v1059, 0.0
      %v1111 = vmax.f32 %v1062, 0.0
      %v1112 = vmax.f32 %v1064, 0.0
      %v1113 = vmax.f32 %v1067, 0.0
      %v1114 = vmax.f32 %v1069, 0.0
      %v1115 = vmax.f32 %v1072, 0.0
      %v1116 = vmax.f32 %v1074, 0.0
      %v1117 = vmax.f32 %v1077, 0.0
      %v1118 = vmax.f32 %v1079, 0.0
      %v1119 = vmax.f32 %v1082, 0.0
      %v1120 = vmax.f32 %v1084, 0.0
      %v1121 = vmax.f32 %v1087, 0.0
      %v1122 = vmax.f32 %v1089, 0.0
      %v1123 = vpack.c.bf16 %v1092, %v1091
      %v1124 = vpack.c.bf16 %v1094, %v1093
      %v1125 = vpack.c.bf16 %v1096, %v1095
      %v1126 = vpack.c.bf16 %v1098, %v1097
      %v1127 = vpack.c.bf16 %v1100, %v1099
      %v1128 = vpack.c.bf16 %v1102, %v1101
      %v1129 = vpack.c.bf16 %v1104, %v1103
      %v1130 = vpack.c.bf16 %v1106, %v1105
      %v1131 = vpack.c.bf16 %v1108, %v1107
      %v1132 = vpack.c.bf16 %v1110, %v1109
      %v1133 = vpack.c.bf16 %v1112, %v1111
      %v1134 = vpack.c.bf16 %v1114, %v1113
      %v1135 = vpack.c.bf16 %v1116, %v1115
      %v1136 = vpack.c.bf16 %v1118, %v1117
      %v1137 = vpack.c.bf16 %v1120, %v1119
      %v1138 = vpack.c.bf16 %v1122, %v1121
      %v1139 = vld [vmem:[%s4] sm:$0xf]
      %v1140 = vld [vmem:[%s4 + $0x4] sm:$0xf]
      %v1141 = vld [vmem:[%s4 + $0x8] sm:$0xf]
      %v1142 = vld [vmem:[%s4 + $0xc] sm:$0xf]
      %v1143 = vld [vmem:[%s5] sm:$0x1]
      %v1145 = vperm.slane %v1143, 0
      %v1151 = vunpack.c.l.b16 %v1139
      %v1152 = vunpack.c.l.b16 %v1140
      %v1153 = vunpack.c.l.b16 %v1141
      %v1154 = vunpack.c.l.b16 %v1142
      %v1155 = vpack.c.b16 %v1152, %v1151
      %v1156 = vpack.c.b16 %v1154, %v1153
      %vm1159 = vcmask 261120
      %v1161 = vsel %vm1159, %v1123, 0
      %v1164 = vsel %vm1159, %v1124, 0
      %v1167 = vsel %vm1159, %v1125, 0
      %v1170 = vsel %vm1159, %v1126, 0
      %v1173 = vsel %vm1159, %v1127, 0
      %v1176 = vsel %vm1159, %v1128, 0
      %v1179 = vsel %vm1159, %v1129, 0
      %v1182 = vsel %vm1159, %v1130, 0
      %v1185 = vsel %vm1159, %v1131, 0
      %v1188 = vsel %vm1159, %v1132, 0
      %v1191 = vsel %vm1159, %v1133, 0
      %v1194 = vsel %vm1159, %v1134, 0
      %v1197 = vsel %vm1159, %v1135, 0
      %v1200 = vsel %vm1159, %v1136, 0
      %v1203 = vsel %vm1159, %v1137, 0
      %v1206 = vsel %vm1159, %v1138, 0
      %1208 = vmatpush.bf16.msra.mxu0 0
      %1209 = vmatpush.bf16.msra.mxu0 0
      %1210 = vmatpush.bf16.msra.mxu0 0
      %1211 = vmatpush.bf16.msra.mxu0 0
      %1212 = vmatpush.bf16.msra.mxu0 0
      %1213 = vmatpush.bf16.msra.mxu0 0
      %1214 = vmatpush.bf16.msra.mxu0 %v1156
      %1215 = vmatpush.bf16.msra.mxu0 %v1155
      %1216 = vmatmul.bf16.gmra.mxu0 %v1161
      %v1217 = vpop.f32.mrf.mxu0
      %v1218 = vadd.f32 %v1145, %v1217
      %v1219 = vpop.f32.mrf.mxu0
      %v1220 = vadd.f32 %v1145, %v1219
      %1221 = vmatmul.bf16.gmra.mxu0 %v1164
      %v1222 = vpop.f32.mrf.mxu0
      %v1223 = vadd.f32 %v1145, %v1222
      %v1224 = vpop.f32.mrf.mxu0
      %v1225 = vadd.f32 %v1145, %v1224
      %1226 = vmatmul.bf16.gmra.mxu0 %v1167
      %v1227 = vpop.f32.mrf.mxu0
      %v1228 = vadd.f32 %v1145, %v1227
      %v1229 = vpop.f32.mrf.mxu0
      %v1230 = vadd.f32 %v1145, %v1229
      %1231 = vmatmul.bf16.gmra.mxu0 %v1170
      %v1232 = vpop.f32.mrf.mxu0
      %v1233 = vadd.f32 %v1145, %v1232
      %v1234 = vpop.f32.mrf.mxu0
      %v1235 = vadd.f32 %v1145, %v1234
      %1236 = vmatmul.bf16.gmra.mxu0 %v1173
      %v1237 = vpop.f32.mrf.mxu0
      %v1238 = vadd.f32 %v1145, %v1237
      %v1239 = vpop.f32.mrf.mxu0
      %v1240 = vadd.f32 %v1145, %v1239
      %1241 = vmatmul.bf16.gmra.mxu0 %v1176
      %v1242 = vpop.f32.mrf.mxu0
      %v1243 = vadd.f32 %v1145, %v1242
      %v1244 = vpop.f32.mrf.mxu0
      %v1245 = vadd.f32 %v1145, %v1244
      %1246 = vmatmul.bf16.gmra.mxu0 %v1179
      %v1247 = vpop.f32.mrf.mxu0
      %v1248 = vadd.f32 %v1145, %v1247
      %v1249 = vpop.f32.mrf.mxu0
      %v1250 = vadd.f32 %v1145, %v1249
      %1251 = vmatmul.bf16.gmra.mxu0 %v1182
      %v1252 = vpop.f32.mrf.mxu0
      %v1253 = vadd.f32 %v1145, %v1252
      %v1254 = vpop.f32.mrf.mxu0
      %v1255 = vadd.f32 %v1145, %v1254
      %1256 = vmatmul.bf16.gmra.mxu0 %v1185
      %v1257 = vpop.f32.mrf.mxu0
      %v1258 = vadd.f32 %v1145, %v1257
      %v1259 = vpop.f32.mrf.mxu0
      %v1260 = vadd.f32 %v1145, %v1259
      %1261 = vmatmul.bf16.gmra.mxu0 %v1188
      %v1262 = vpop.f32.mrf.mxu0
      %v1263 = vadd.f32 %v1145, %v1262
      %v1264 = vpop.f32.mrf.mxu0
      %v1265 = vadd.f32 %v1145, %v1264
      %1266 = vmatmul.bf16.gmra.mxu0 %v1191
      %v1267 = vpop.f32.mrf.mxu0
      %v1268 = vadd.f32 %v1145, %v1267
      %v1269 = vpop.f32.mrf.mxu0
      %v1270 = vadd.f32 %v1145, %v1269
      %1271 = vmatmul.bf16.gmra.mxu0 %v1194
      %v1272 = vpop.f32.mrf.mxu0
      %v1273 = vadd.f32 %v1145, %v1272
      %v1274 = vpop.f32.mrf.mxu0
      %v1275 = vadd.f32 %v1145, %v1274
      %1276 = vmatmul.bf16.gmra.mxu0 %v1197
      %v1277 = vpop.f32.mrf.mxu0
      %v1278 = vadd.f32 %v1145, %v1277
      %v1279 = vpop.f32.mrf.mxu0
      %v1280 = vadd.f32 %v1145, %v1279
      %1281 = vmatmul.bf16.gmra.mxu0 %v1200
      %v1282 = vpop.f32.mrf.mxu0
      %v1283 = vadd.f32 %v1145, %v1282
      %v1284 = vpop.f32.mrf.mxu0
      %v1285 = vadd.f32 %v1145, %v1284
      %1286 = vmatmul.bf16.gmra.mxu0 %v1203
      %v1287 = vpop.f32.mrf.mxu0
      %v1288 = vadd.f32 %v1145, %v1287
      %v1289 = vpop.f32.mrf.mxu0
      %v1290 = vadd.f32 %v1145, %v1289
      %1291 = vmatmul.bf16.gmra.mxu0 %v1206
      %v1292 = vpop.f32.mrf.mxu0
      %v1293 = vadd.f32 %v1145, %v1292
      %v1294 = vpop.f32.mrf.mxu0
      %v1295 = vadd.f32 %v1145, %v1294
      %1296 = vdwg.mxu0
      %v1297 = vmax.f32 %v1218, 0.0
      %v1298 = vmax.f32 %v1220, 0.0
      %v1299 = vmax.f32 %v1223, 0.0
      %v1300 = vmax.f32 %v1225, 0.0
      %v1301 = vmax.f32 %v1228, 0.0
      %v1302 = vmax.f32 %v1230, 0.0
      %v1303 = vmax.f32 %v1233, 0.0
      %v1304 = vmax.f32 %v1235, 0.0
      %v1305 = vmax.f32 %v1238, 0.0
      %v1306 = vmax.f32 %v1240, 0.0
      %v1307 = vmax.f32 %v1243, 0.0
      %v1308 = vmax.f32 %v1245, 0.0
      %v1309 = vmax.f32 %v1248, 0.0
      %v1310 = vmax.f32 %v1250, 0.0
      %v1311 = vmax.f32 %v1253, 0.0
      %v1312 = vmax.f32 %v1255, 0.0
      %v1313 = vmax.f32 %v1258, 0.0
      %v1314 = vmax.f32 %v1260, 0.0
      %v1315 = vmax.f32 %v1263, 0.0
      %v1316 = vmax.f32 %v1265, 0.0
      %v1317 = vmax.f32 %v1268, 0.0
      %v1318 = vmax.f32 %v1270, 0.0
      %v1319 = vmax.f32 %v1273, 0.0
      %v1320 = vmax.f32 %v1275, 0.0
      %v1321 = vmax.f32 %v1278, 0.0
      %v1322 = vmax.f32 %v1280, 0.0
      %v1323 = vmax.f32 %v1283, 0.0
      %v1324 = vmax.f32 %v1285, 0.0
      %v1325 = vmax.f32 %v1288, 0.0
      %v1326 = vmax.f32 %v1290, 0.0
      %v1327 = vmax.f32 %v1293, 0.0
      %v1328 = vmax.f32 %v1295, 0.0
      %v1329 = vpack.c.bf16 %v1298, %v1297
      %v1330 = vpack.c.bf16 %v1300, %v1299
      %v1331 = vpack.c.bf16 %v1302, %v1301
      %v1332 = vpack.c.bf16 %v1304, %v1303
      %v1333 = vpack.c.bf16 %v1306, %v1305
      %v1334 = vpack.c.bf16 %v1308, %v1307
      %v1335 = vpack.c.bf16 %v1310, %v1309
      %v1336 = vpack.c.bf16 %v1312, %v1311
      %v1337 = vpack.c.bf16 %v1314, %v1313
      %v1338 = vpack.c.bf16 %v1316, %v1315
      %v1339 = vpack.c.bf16 %v1318, %v1317
      %v1340 = vpack.c.bf16 %v1320, %v1319
      %v1341 = vpack.c.bf16 %v1322, %v1321
      %v1342 = vpack.c.bf16 %v1324, %v1323
      %v1343 = vpack.c.bf16 %v1326, %v1325
      %v1344 = vpack.c.bf16 %v1328, %v1327
      %v1345 = vld [vmem:[%s6] sm:$0xf]
      %v1346 = vld [vmem:[%s6 + $0x4] sm:$0xf]
      %v1347 = vld [vmem:[%s6 + $0x8] sm:$0xf]
      %v1348 = vld [vmem:[%s6 + $0xc] sm:$0xf]
      %v1349 = vld [vmem:[%s7] sm:$0x1]
      %v1351 = vperm.slane %v1349, 0
      %v1357 = vunpack.c.l.b16 %v1345
      %v1358 = vunpack.c.l.b16 %v1346
      %v1359 = vunpack.c.l.b16 %v1347
      %v1360 = vunpack.c.l.b16 %v1348
      %v1361 = vpack.c.b16 %v1358, %v1357
      %v1362 = vpack.c.b16 %v1360, %v1359
      %v1366 = vsel %vm1159, %v1329, 0
      %v1369 = vsel %vm1159, %v1330, 0
      %v1372 = vsel %vm1159, %v1331, 0
      %v1375 = vsel %vm1159, %v1332, 0
      %v1378 = vsel %vm1159, %v1333, 0
      %v1381 = vsel %vm1159, %v1334, 0
      %v1384 = vsel %vm1159, %v1335, 0
      %v1387 = vsel %vm1159, %v1336, 0
      %v1390 = vsel %vm1159, %v1337, 0
      %v1393 = vsel %vm1159, %v1338, 0
      %v1396 = vsel %vm1159, %v1339, 0
      %v1399 = vsel %vm1159, %v1340, 0
      %v1402 = vsel %vm1159, %v1341, 0
      %v1405 = vsel %vm1159, %v1342, 0
      %v1408 = vsel %vm1159, %v1343, 0
      %v1411 = vsel %vm1159, %v1344, 0
      %1413 = vmatpush.bf16.msra.mxu0 0
      %1414 = vmatpush.bf16.msra.mxu0 0
      %1415 = vmatpush.bf16.msra.mxu0 0
      %1416 = vmatpush.bf16.msra.mxu0 0
      %1417 = vmatpush.bf16.msra.mxu0 0
      %1418 = vmatpush.bf16.msra.mxu0 0
      %1419 = vmatpush.bf16.msra.mxu0 %v1362
      %1420 = vmatpush.bf16.msra.mxu0 %v1361
      %1421 = vmatmul.bf16.gmra.mxu0 %v1366
      %v1422 = vpop.f32.mrf.mxu0
      %v1423 = vadd.f32 %v1351, %v1422
      %v1424 = vpop.f32.mrf.mxu0
      %v1425 = vadd.f32 %v1351, %v1424
      %1426 = vmatmul.bf16.gmra.mxu0 %v1369
      %v1427 = vpop.f32.mrf.mxu0
      %v1428 = vadd.f32 %v1351, %v1427
      %v1429 = vpop.f32.mrf.mxu0
      %v1430 = vadd.f32 %v1351, %v1429
      %1431 = vmatmul.bf16.gmra.mxu0 %v1372
      %v1432 = vpop.f32.mrf.mxu0
      %v1433 = vadd.f32 %v1351, %v1432
      %v1434 = vpop.f32.mrf.mxu0
      %v1435 = vadd.f32 %v1351, %v1434
      %1436 = vmatmul.bf16.gmra.mxu0 %v1375
      %v1437 = vpop.f32.mrf.mxu0
      %v1438 = vadd.f32 %v1351, %v1437
      %v1439 = vpop.f32.mrf.mxu0
      %v1440 = vadd.f32 %v1351, %v1439
      %1441 = vmatmul.bf16.gmra.mxu0 %v1378
      %v1442 = vpop.f32.mrf.mxu0
      %v1443 = vadd.f32 %v1351, %v1442
      %v1444 = vpop.f32.mrf.mxu0
      %v1445 = vadd.f32 %v1351, %v1444
      %1446 = vmatmul.bf16.gmra.mxu0 %v1381
      %v1447 = vpop.f32.mrf.mxu0
      %v1448 = vadd.f32 %v1351, %v1447
      %v1449 = vpop.f32.mrf.mxu0
      %v1450 = vadd.f32 %v1351, %v1449
      %1451 = vmatmul.bf16.gmra.mxu0 %v1384
      %v1452 = vpop.f32.mrf.mxu0
      %v1453 = vadd.f32 %v1351, %v1452
      %v1454 = vpop.f32.mrf.mxu0
      %v1455 = vadd.f32 %v1351, %v1454
      %1456 = vmatmul.bf16.gmra.mxu0 %v1387
      %v1457 = vpop.f32.mrf.mxu0
      %v1458 = vadd.f32 %v1351, %v1457
      %v1459 = vpop.f32.mrf.mxu0
      %v1460 = vadd.f32 %v1351, %v1459
      %1461 = vmatmul.bf16.gmra.mxu0 %v1390
      %v1462 = vpop.f32.mrf.mxu0
      %v1463 = vadd.f32 %v1351, %v1462
      %v1464 = vpop.f32.mrf.mxu0
      %v1465 = vadd.f32 %v1351, %v1464
      %1466 = vmatmul.bf16.gmra.mxu0 %v1393
      %v1467 = vpop.f32.mrf.mxu0
      %v1468 = vadd.f32 %v1351, %v1467
      %v1469 = vpop.f32.mrf.mxu0
      %v1470 = vadd.f32 %v1351, %v1469
      %1471 = vmatmul.bf16.gmra.mxu0 %v1396
      %v1472 = vpop.f32.mrf.mxu0
      %v1473 = vadd.f32 %v1351, %v1472
      %v1474 = vpop.f32.mrf.mxu0
      %v1475 = vadd.f32 %v1351, %v1474
      %1476 = vmatmul.bf16.gmra.mxu0 %v1399
      %v1477 = vpop.f32.mrf.mxu0
      %v1478 = vadd.f32 %v1351, %v1477
      %v1479 = vpop.f32.mrf.mxu0
      %v1480 = vadd.f32 %v1351, %v1479
      %1481 = vmatmul.bf16.gmra.mxu0 %v1402
      %v1482 = vpop.f32.mrf.mxu0
      %v1483 = vadd.f32 %v1351, %v1482
      %v1484 = vpop.f32.mrf.mxu0
      %v1485 = vadd.f32 %v1351, %v1484
      %1486 = vmatmul.bf16.gmra.mxu0 %v1405
      %v1487 = vpop.f32.mrf.mxu0
      %v1488 = vadd.f32 %v1351, %v1487
      %v1489 = vpop.f32.mrf.mxu0
      %v1490 = vadd.f32 %v1351, %v1489
      %1491 = vmatmul.bf16.gmra.mxu0 %v1408
      %v1492 = vpop.f32.mrf.mxu0
      %v1493 = vadd.f32 %v1351, %v1492
      %v1494 = vpop.f32.mrf.mxu0
      %v1495 = vadd.f32 %v1351, %v1494
      %1496 = vmatmul.bf16.gmra.mxu0 %v1411
      %v1497 = vpop.f32.mrf.mxu0
      %v1498 = vadd.f32 %v1351, %v1497
      %v1499 = vpop.f32.mrf.mxu0
      %v1500 = vadd.f32 %v1351, %v1499
      %1501 = vdwg.mxu0
      %v1502 = vmax.f32 %v1423, 0.0
      %v1503 = vmax.f32 %v1425, 0.0
      %v1504 = vmax.f32 %v1428, 0.0
      %v1505 = vmax.f32 %v1430, 0.0
      %v1506 = vmax.f32 %v1433, 0.0
      %v1507 = vmax.f32 %v1435, 0.0
      %v1508 = vmax.f32 %v1438, 0.0
      %v1509 = vmax.f32 %v1440, 0.0
      %v1510 = vmax.f32 %v1443, 0.0
      %v1511 = vmax.f32 %v1445, 0.0
      %v1512 = vmax.f32 %v1448, 0.0
      %v1513 = vmax.f32 %v1450, 0.0
      %v1514 = vmax.f32 %v1453, 0.0
      %v1515 = vmax.f32 %v1455, 0.0
      %v1516 = vmax.f32 %v1458, 0.0
      %v1517 = vmax.f32 %v1460, 0.0
      %v1518 = vmax.f32 %v1463, 0.0
      %v1519 = vmax.f32 %v1465, 0.0
      %v1520 = vmax.f32 %v1468, 0.0
      %v1521 = vmax.f32 %v1470, 0.0
      %v1522 = vmax.f32 %v1473, 0.0
      %v1523 = vmax.f32 %v1475, 0.0
      %v1524 = vmax.f32 %v1478, 0.0
      %v1525 = vmax.f32 %v1480, 0.0
      %v1526 = vmax.f32 %v1483, 0.0
      %v1527 = vmax.f32 %v1485, 0.0
      %v1528 = vmax.f32 %v1488, 0.0
      %v1529 = vmax.f32 %v1490, 0.0
      %v1530 = vmax.f32 %v1493, 0.0
      %v1531 = vmax.f32 %v1495, 0.0
      %v1532 = vmax.f32 %v1498, 0.0
      %v1533 = vmax.f32 %v1500, 0.0
      %v1534 = vpack.c.bf16 %v1503, %v1502
      %v1535 = vpack.c.bf16 %v1505, %v1504
      %v1536 = vpack.c.bf16 %v1507, %v1506
      %v1537 = vpack.c.bf16 %v1509, %v1508
      %v1538 = vpack.c.bf16 %v1511, %v1510
      %v1539 = vpack.c.bf16 %v1513, %v1512
      %v1540 = vpack.c.bf16 %v1515, %v1514
      %v1541 = vpack.c.bf16 %v1517, %v1516
      %v1542 = vpack.c.bf16 %v1519, %v1518
      %v1543 = vpack.c.bf16 %v1521, %v1520
      %v1544 = vpack.c.bf16 %v1523, %v1522
      %v1545 = vpack.c.bf16 %v1525, %v1524
      %v1546 = vpack.c.bf16 %v1527, %v1526
      %v1547 = vpack.c.bf16 %v1529, %v1528
      %v1548 = vpack.c.bf16 %v1531, %v1530
      %v1549 = vpack.c.bf16 %v1533, %v1532
      %v1550 = vld [vmem:[%s8] sm:$0xf]
      %v1551 = vld [vmem:[%s8 + $0x4] sm:$0xf]
      %v1552 = vld [vmem:[%s8 + $0x8] sm:$0xf]
      %v1553 = vld [vmem:[%s8 + $0xc] sm:$0xf]
      %v1554 = vld [vmem:[%s9] sm:$0x1]
      %v1556 = vperm.slane %v1554, 0
      %v1562 = vunpack.c.l.b16 %v1550
      %v1563 = vunpack.c.l.b16 %v1551
      %v1564 = vunpack.c.l.b16 %v1552
      %v1565 = vunpack.c.l.b16 %v1553
      %v1566 = vpack.c.b16 %v1563, %v1562
      %v1567 = vpack.c.b16 %v1565, %v1564
      %v1571 = vsel %vm1159, %v1534, 0
      %v1574 = vsel %vm1159, %v1535, 0
      %v1577 = vsel %vm1159, %v1536, 0
      %v1580 = vsel %vm1159, %v1537, 0
      %v1583 = vsel %vm1159, %v1538, 0
      %v1586 = vsel %vm1159, %v1539, 0
      %v1589 = vsel %vm1159, %v1540, 0
      %v1592 = vsel %vm1159, %v1541, 0
      %v1595 = vsel %vm1159, %v1542, 0
      %v1598 = vsel %vm1159, %v1543, 0
      %v1601 = vsel %vm1159, %v1544, 0
      %v1604 = vsel %vm1159, %v1545, 0
      %v1607 = vsel %vm1159, %v1546, 0
      %v1610 = vsel %vm1159, %v1547, 0
      %v1613 = vsel %vm1159, %v1548, 0
      %v1616 = vsel %vm1159, %v1549, 0
      %1618 = vmatpush.bf16.msra.mxu0 0
      %1619 = vmatpush.bf16.msra.mxu0 0
      %1620 = vmatpush.bf16.msra.mxu0 0
      %1621 = vmatpush.bf16.msra.mxu0 0
      %1622 = vmatpush.bf16.msra.mxu0 0
      %1623 = vmatpush.bf16.msra.mxu0 0
      %1624 = vmatpush.bf16.msra.mxu0 %v1567
      %1625 = vmatpush.bf16.msra.mxu0 %v1566
      %1626 = vmatmul.bf16.gmra.mxu0 %v1571
      %v1627 = vpop.f32.mrf.mxu0
      %v1628 = vadd.f32 %v1556, %v1627
      %v1629 = vpop.f32.mrf.mxu0
      %v1630 = vadd.f32 %v1556, %v1629
      %1631 = vmatmul.bf16.gmra.mxu0 %v1574
      %v1632 = vpop.f32.mrf.mxu0
      %v1633 = vadd.f32 %v1556, %v1632
      %v1634 = vpop.f32.mrf.mxu0
      %v1635 = vadd.f32 %v1556, %v1634
      %1636 = vmatmul.bf16.gmra.mxu0 %v1577
      %v1637 = vpop.f32.mrf.mxu0
      %v1638 = vadd.f32 %v1556, %v1637
      %v1639 = vpop.f32.mrf.mxu0
      %v1640 = vadd.f32 %v1556, %v1639
      %1641 = vmatmul.bf16.gmra.mxu0 %v1580
      %v1642 = vpop.f32.mrf.mxu0
      %v1643 = vadd.f32 %v1556, %v1642
      %v1644 = vpop.f32.mrf.mxu0
      %v1645 = vadd.f32 %v1556, %v1644
      %1646 = vmatmul.bf16.gmra.mxu0 %v1583
      %v1647 = vpop.f32.mrf.mxu0
      %v1648 = vadd.f32 %v1556, %v1647
      %v1649 = vpop.f32.mrf.mxu0
      %v1650 = vadd.f32 %v1556, %v1649
      %1651 = vmatmul.bf16.gmra.mxu0 %v1586
      %v1652 = vpop.f32.mrf.mxu0
      %v1653 = vadd.f32 %v1556, %v1652
      %v1654 = vpop.f32.mrf.mxu0
      %v1655 = vadd.f32 %v1556, %v1654
      %1656 = vmatmul.bf16.gmra.mxu0 %v1589
      %v1657 = vpop.f32.mrf.mxu0
      %v1658 = vadd.f32 %v1556, %v1657
      %v1659 = vpop.f32.mrf.mxu0
      %v1660 = vadd.f32 %v1556, %v1659
      %1661 = vmatmul.bf16.gmra.mxu0 %v1592
      %v1662 = vpop.f32.mrf.mxu0
      %v1663 = vadd.f32 %v1556, %v1662
      %v1664 = vpop.f32.mrf.mxu0
      %v1665 = vadd.f32 %v1556, %v1664
      %1666 = vmatmul.bf16.gmra.mxu0 %v1595
      %v1667 = vpop.f32.mrf.mxu0
      %v1668 = vadd.f32 %v1556, %v1667
      %v1669 = vpop.f32.mrf.mxu0
      %v1670 = vadd.f32 %v1556, %v1669
      %1671 = vmatmul.bf16.gmra.mxu0 %v1598
      %v1672 = vpop.f32.mrf.mxu0
      %v1673 = vadd.f32 %v1556, %v1672
      %v1674 = vpop.f32.mrf.mxu0
      %v1675 = vadd.f32 %v1556, %v1674
      %1676 = vmatmul.bf16.gmra.mxu0 %v1601
      %v1677 = vpop.f32.mrf.mxu0
      %v1678 = vadd.f32 %v1556, %v1677
      %v1679 = vpop.f32.mrf.mxu0
      %v1680 = vadd.f32 %v1556, %v1679
      %1681 = vmatmul.bf16.gmra.mxu0 %v1604
      %v1682 = vpop.f32.mrf.mxu0
      %v1683 = vadd.f32 %v1556, %v1682
      %v1684 = vpop.f32.mrf.mxu0
      %v1685 = vadd.f32 %v1556, %v1684
      %1686 = vmatmul.bf16.gmra.mxu0 %v1607
      %v1687 = vpop.f32.mrf.mxu0
      %v1688 = vadd.f32 %v1556, %v1687
      %v1689 = vpop.f32.mrf.mxu0
      %v1690 = vadd.f32 %v1556, %v1689
      %1691 = vmatmul.bf16.gmra.mxu0 %v1610
      %v1692 = vpop.f32.mrf.mxu0
      %v1693 = vadd.f32 %v1556, %v1692
      %v1694 = vpop.f32.mrf.mxu0
      %v1695 = vadd.f32 %v1556, %v1694
      %1696 = vmatmul.bf16.gmra.mxu0 %v1613
      %v1697 = vpop.f32.mrf.mxu0
      %v1698 = vadd.f32 %v1556, %v1697
      %v1699 = vpop.f32.mrf.mxu0
      %v1700 = vadd.f32 %v1556, %v1699
      %1701 = vmatmul.bf16.gmra.mxu0 %v1616
      %v1702 = vpop.f32.mrf.mxu0
      %v1703 = vadd.f32 %v1556, %v1702
      %v1704 = vpop.f32.mrf.mxu0
      %v1705 = vadd.f32 %v1556, %v1704
      %1706 = vdwg.mxu0
      %v1707 = vmax.f32 %v1628, 0.0
      %v1708 = vmax.f32 %v1630, 0.0
      %v1709 = vmax.f32 %v1633, 0.0
      %v1710 = vmax.f32 %v1635, 0.0
      %v1711 = vmax.f32 %v1638, 0.0
      %v1712 = vmax.f32 %v1640, 0.0
      %v1713 = vmax.f32 %v1643, 0.0
      %v1714 = vmax.f32 %v1645, 0.0
      %v1715 = vmax.f32 %v1648, 0.0
      %v1716 = vmax.f32 %v1650, 0.0
      %v1717 = vmax.f32 %v1653, 0.0
      %v1718 = vmax.f32 %v1655, 0.0
      %v1719 = vmax.f32 %v1658, 0.0
      %v1720 = vmax.f32 %v1660, 0.0
      %v1721 = vmax.f32 %v1663, 0.0
      %v1722 = vmax.f32 %v1665, 0.0
      %v1723 = vmax.f32 %v1668, 0.0
      %v1724 = vmax.f32 %v1670, 0.0
      %v1725 = vmax.f32 %v1673, 0.0
      %v1726 = vmax.f32 %v1675, 0.0
      %v1727 = vmax.f32 %v1678, 0.0
      %v1728 = vmax.f32 %v1680, 0.0
      %v1729 = vmax.f32 %v1683, 0.0
      %v1730 = vmax.f32 %v1685, 0.0
      %v1731 = vmax.f32 %v1688, 0.0
      %v1732 = vmax.f32 %v1690, 0.0
      %v1733 = vmax.f32 %v1693, 0.0
      %v1734 = vmax.f32 %v1695, 0.0
      %v1735 = vmax.f32 %v1698, 0.0
      %v1736 = vmax.f32 %v1700, 0.0
      %v1737 = vmax.f32 %v1703, 0.0
      %v1738 = vmax.f32 %v1705, 0.0
      %v1739 = vpack.c.bf16 %v1708, %v1707
      %v1740 = vpack.c.bf16 %v1710, %v1709
      %v1741 = vpack.c.bf16 %v1712, %v1711
      %v1742 = vpack.c.bf16 %v1714, %v1713
      %v1743 = vpack.c.bf16 %v1716, %v1715
      %v1744 = vpack.c.bf16 %v1718, %v1717
      %v1745 = vpack.c.bf16 %v1720, %v1719
      %v1746 = vpack.c.bf16 %v1722, %v1721
      %v1747 = vpack.c.bf16 %v1724, %v1723
      %v1748 = vpack.c.bf16 %v1726, %v1725
      %v1749 = vpack.c.bf16 %v1728, %v1727
      %v1750 = vpack.c.bf16 %v1730, %v1729
      %v1751 = vpack.c.bf16 %v1732, %v1731
      %v1752 = vpack.c.bf16 %v1734, %v1733
      %v1753 = vpack.c.bf16 %v1736, %v1735
      %v1754 = vpack.c.bf16 %v1738, %v1737
      %v1755 = vld [vmem:[%s10] sm:$0xf]
      %v1756 = vld [vmem:[%s10 + $0x4] sm:$0xf]
      %v1757 = vld [vmem:[%s10 + $0x8] sm:$0xf]
      %v1758 = vld [vmem:[%s10 + $0xc] sm:$0xf]
      %v1759 = vld [vmem:[%s11] sm:$0x1]
      %v1761 = vperm.slane %v1759, 0
      %v1767 = vunpack.c.l.b16 %v1755
      %v1768 = vunpack.c.l.b16 %v1756
      %v1769 = vunpack.c.l.b16 %v1757
      %v1770 = vunpack.c.l.b16 %v1758
      %v1771 = vpack.c.b16 %v1768, %v1767
      %v1772 = vpack.c.b16 %v1770, %v1769
      %v1776 = vsel %vm1159, %v1739, 0
      %v1779 = vsel %vm1159, %v1740, 0
      %v1782 = vsel %vm1159, %v1741, 0
      %v1785 = vsel %vm1159, %v1742, 0
      %v1788 = vsel %vm1159, %v1743, 0
      %v1791 = vsel %vm1159, %v1744, 0
      %v1794 = vsel %vm1159, %v1745, 0
      %v1797 = vsel %vm1159, %v1746, 0
      %v1800 = vsel %vm1159, %v1747, 0
      %v1803 = vsel %vm1159, %v1748, 0
      %v1806 = vsel %vm1159, %v1749, 0
      %v1809 = vsel %vm1159, %v1750, 0
      %v1812 = vsel %vm1159, %v1751, 0
      %v1815 = vsel %vm1159, %v1752, 0
      %v1818 = vsel %vm1159, %v1753, 0
      %v1821 = vsel %vm1159, %v1754, 0
      %1823 = vmatpush.bf16.msra.mxu0 0
      %1824 = vmatpush.bf16.msra.mxu0 0
      %1825 = vmatpush.bf16.msra.mxu0 0
      %1826 = vmatpush.bf16.msra.mxu0 0
      %1827 = vmatpush.bf16.msra.mxu0 0
      %1828 = vmatpush.bf16.msra.mxu0 0
      %1829 = vmatpush.bf16.msra.mxu0 %v1772
      %1830 = vmatpush.bf16.msra.mxu0 %v1771
      %1831 = vmatmul.bf16.gmra.mxu0 %v1776
      %v1832 = vpop.f32.mrf.mxu0
      %v1833 = vadd.f32 %v1761, %v1832
      %v1834 = vpop.f32.mrf.mxu0
      %v1835 = vadd.f32 %v1761, %v1834
      %1836 = vmatmul.bf16.gmra.mxu0 %v1779
      %v1837 = vpop.f32.mrf.mxu0
      %v1838 = vadd.f32 %v1761, %v1837
      %v1839 = vpop.f32.mrf.mxu0
      %v1840 = vadd.f32 %v1761, %v1839
      %1841 = vmatmul.bf16.gmra.mxu0 %v1782
      %v1842 = vpop.f32.mrf.mxu0
      %v1843 = vadd.f32 %v1761, %v1842
      %v1844 = vpop.f32.mrf.mxu0
      %v1845 = vadd.f32 %v1761, %v1844
      %1846 = vmatmul.bf16.gmra.mxu0 %v1785
      %v1847 = vpop.f32.mrf.mxu0
      %v1848 = vadd.f32 %v1761, %v1847
      %v1849 = vpop.f32.mrf.mxu0
      %v1850 = vadd.f32 %v1761, %v1849
      %1851 = vmatmul.bf16.gmra.mxu0 %v1788
      %v1852 = vpop.f32.mrf.mxu0
      %v1853 = vadd.f32 %v1761, %v1852
      %v1854 = vpop.f32.mrf.mxu0
      %v1855 = vadd.f32 %v1761, %v1854
      %1856 = vmatmul.bf16.gmra.mxu0 %v1791
      %v1857 = vpop.f32.mrf.mxu0
      %v1858 = vadd.f32 %v1761, %v1857
      %v1859 = vpop.f32.mrf.mxu0
      %v1860 = vadd.f32 %v1761, %v1859
      %1861 = vmatmul.bf16.gmra.mxu0 %v1794
      %v1862 = vpop.f32.mrf.mxu0
      %v1863 = vadd.f32 %v1761, %v1862
      %v1864 = vpop.f32.mrf.mxu0
      %v1865 = vadd.f32 %v1761, %v1864
      %1866 = vmatmul.bf16.gmra.mxu0 %v1797
      %v1867 = vpop.f32.mrf.mxu0
      %v1868 = vadd.f32 %v1761, %v1867
      %v1869 = vpop.f32.mrf.mxu0
      %v1870 = vadd.f32 %v1761, %v1869
      %1871 = vmatmul.bf16.gmra.mxu0 %v1800
      %v1872 = vpop.f32.mrf.mxu0
      %v1873 = vadd.f32 %v1761, %v1872
      %v1874 = vpop.f32.mrf.mxu0
      %v1875 = vadd.f32 %v1761, %v1874
      %1876 = vmatmul.bf16.gmra.mxu0 %v1803
      %v1877 = vpop.f32.mrf.mxu0
      %v1878 = vadd.f32 %v1761, %v1877
      %v1879 = vpop.f32.mrf.mxu0
      %v1880 = vadd.f32 %v1761, %v1879
      %1881 = vmatmul.bf16.gmra.mxu0 %v1806
      %v1882 = vpop.f32.mrf.mxu0
      %v1883 = vadd.f32 %v1761, %v1882
      %v1884 = vpop.f32.mrf.mxu0
      %v1885 = vadd.f32 %v1761, %v1884
      %1886 = vmatmul.bf16.gmra.mxu0 %v1809
      %v1887 = vpop.f32.mrf.mxu0
      %v1888 = vadd.f32 %v1761, %v1887
      %v1889 = vpop.f32.mrf.mxu0
      %v1890 = vadd.f32 %v1761, %v1889
      %1891 = vmatmul.bf16.gmra.mxu0 %v1812
      %v1892 = vpop.f32.mrf.mxu0
      %v1893 = vadd.f32 %v1761, %v1892
      %v1894 = vpop.f32.mrf.mxu0
      %v1895 = vadd.f32 %v1761, %v1894
      %1896 = vmatmul.bf16.gmra.mxu0 %v1815
      %v1897 = vpop.f32.mrf.mxu0
      %v1898 = vadd.f32 %v1761, %v1897
      %v1899 = vpop.f32.mrf.mxu0
      %v1900 = vadd.f32 %v1761, %v1899
      %1901 = vmatmul.bf16.gmra.mxu0 %v1818
      %v1902 = vpop.f32.mrf.mxu0
      %v1903 = vadd.f32 %v1761, %v1902
      %v1904 = vpop.f32.mrf.mxu0
      %v1905 = vadd.f32 %v1761, %v1904
      %1906 = vmatmul.bf16.gmra.mxu0 %v1821
      %v1907 = vpop.f32.mrf.mxu0
      %v1908 = vadd.f32 %v1761, %v1907
      %v1909 = vpop.f32.mrf.mxu0
      %v1910 = vadd.f32 %v1761, %v1909
      %1911 = vdwg.mxu0
      %v1912 = vmax.f32 %v1833, 0.0
      %v1913 = vmax.f32 %v1835, 0.0
      %v1914 = vmax.f32 %v1838, 0.0
      %v1915 = vmax.f32 %v1840, 0.0
      %v1916 = vmax.f32 %v1843, 0.0
      %v1917 = vmax.f32 %v1845, 0.0
      %v1918 = vmax.f32 %v1848, 0.0
      %v1919 = vmax.f32 %v1850, 0.0
      %v1920 = vmax.f32 %v1853, 0.0
      %v1921 = vmax.f32 %v1855, 0.0
      %v1922 = vmax.f32 %v1858, 0.0
      %v1923 = vmax.f32 %v1860, 0.0
      %v1924 = vmax.f32 %v1863, 0.0
      %v1925 = vmax.f32 %v1865, 0.0
      %v1926 = vmax.f32 %v1868, 0.0
      %v1927 = vmax.f32 %v1870, 0.0
      %v1928 = vmax.f32 %v1873, 0.0
      %v1929 = vmax.f32 %v1875, 0.0
      %v1930 = vmax.f32 %v1878, 0.0
      %v1931 = vmax.f32 %v1880, 0.0
      %v1932 = vmax.f32 %v1883, 0.0
      %v1933 = vmax.f32 %v1885, 0.0
      %v1934 = vmax.f32 %v1888, 0.0
      %v1935 = vmax.f32 %v1890, 0.0
      %v1936 = vmax.f32 %v1893, 0.0
      %v1937 = vmax.f32 %v1895, 0.0
      %v1938 = vmax.f32 %v1898, 0.0
      %v1939 = vmax.f32 %v1900, 0.0
      %v1940 = vmax.f32 %v1903, 0.0
      %v1941 = vmax.f32 %v1905, 0.0
      %v1942 = vmax.f32 %v1908, 0.0
      %v1943 = vmax.f32 %v1910, 0.0
      %v1944 = vpack.c.bf16 %v1913, %v1912
      %v1945 = vpack.c.bf16 %v1915, %v1914
      %v1946 = vpack.c.bf16 %v1917, %v1916
      %v1947 = vpack.c.bf16 %v1919, %v1918
      %v1948 = vpack.c.bf16 %v1921, %v1920
      %v1949 = vpack.c.bf16 %v1923, %v1922
      %v1950 = vpack.c.bf16 %v1925, %v1924
      %v1951 = vpack.c.bf16 %v1927, %v1926
      %v1952 = vpack.c.bf16 %v1929, %v1928
      %v1953 = vpack.c.bf16 %v1931, %v1930
      %v1954 = vpack.c.bf16 %v1933, %v1932
      %v1955 = vpack.c.bf16 %v1935, %v1934
      %v1956 = vpack.c.bf16 %v1937, %v1936
      %v1957 = vpack.c.bf16 %v1939, %v1938
      %v1958 = vpack.c.bf16 %v1941, %v1940
      %v1959 = vpack.c.bf16 %v1943, %v1942
      %v1960 = vld [vmem:[%s12] sm:$0xf]
      %v1961 = vld [vmem:[%s12 + $0x4] sm:$0xf]
      %v1962 = vld [vmem:[%s12 + $0x8] sm:$0xf]
      %v1963 = vld [vmem:[%s12 + $0xc] sm:$0xf]
      %v1964 = vld [vmem:[%s13] sm:$0xf]
      %v1965 = vld [vmem:[%s13 + $0x4] sm:$0xf]
      %v1968 = vunpack.c.l.b16 %v1964
      %v1969 = vunpack.c.l.b16 %v1965
      %v1970 = vpack.c.b16 %v1969, %v1968
      %1972 = vmatpush.bf16.msra.mxu0 0
      %1973 = vmatpush.bf16.msra.mxu0 0
      %1974 = vmatpush.bf16.msra.mxu0 0
      %1975 = vmatpush.bf16.msra.mxu0 0
      %1976 = vmatpush.bf16.msra.mxu0 0
      %1977 = vmatpush.bf16.msra.mxu0 0
      %1978 = vmatpush.bf16.msra.mxu0 0
      %1979 = vmatpush.bf16.msra.mxu0 %v1970
      %1980 = vmatmul.bf16.gmra.mxu0 %v955
      %v1981 = vpop.f32.mrf.mxu0
      %v1982 = vadd.f32 0.0, %v1981
      %v1983 = vpop.f32.mrf.mxu0
      %v1984 = vadd.f32 0.0, %v1983
      %1985 = vmatmul.bf16.gmra.mxu0 %v958
      %v1986 = vpop.f32.mrf.mxu0
      %v1987 = vadd.f32 0.0, %v1986
      %v1988 = vpop.f32.mrf.mxu0
      %v1989 = vadd.f32 0.0, %v1988
      %1990 = vmatmul.bf16.gmra.mxu0 %v961
      %v1991 = vpop.f32.mrf.mxu0
      %v1992 = vadd.f32 0.0, %v1991
      %v1993 = vpop.f32.mrf.mxu0
      %v1994 = vadd.f32 0.0, %v1993
      %1995 = vmatmul.bf16.gmra.mxu0 %v964
      %v1996 = vpop.f32.mrf.mxu0
      %v1997 = vadd.f32 0.0, %v1996
      %v1998 = vpop.f32.mrf.mxu0
      %v1999 = vadd.f32 0.0, %v1998
      %2000 = vmatmul.bf16.gmra.mxu0 %v967
      %v2001 = vpop.f32.mrf.mxu0
      %v2002 = vadd.f32 0.0, %v2001
      %v2003 = vpop.f32.mrf.mxu0
      %v2004 = vadd.f32 0.0, %v2003
      %2005 = vmatmul.bf16.gmra.mxu0 %v970
      %v2006 = vpop.f32.mrf.mxu0
      %v2007 = vadd.f32 0.0, %v2006
      %v2008 = vpop.f32.mrf.mxu0
      %v2009 = vadd.f32 0.0, %v2008
      %2010 = vmatmul.bf16.gmra.mxu0 %v973
      %v2011 = vpop.f32.mrf.mxu0
      %v2012 = vadd.f32 0.0, %v2011
      %v2013 = vpop.f32.mrf.mxu0
      %v2014 = vadd.f32 0.0, %v2013
      %2015 = vmatmul.bf16.gmra.mxu0 %v976
      %v2016 = vpop.f32.mrf.mxu0
      %v2017 = vadd.f32 0.0, %v2016
      %v2018 = vpop.f32.mrf.mxu0
      %v2019 = vadd.f32 0.0, %v2018
      %2020 = vmatmul.bf16.gmra.mxu0 %v979
      %v2021 = vpop.f32.mrf.mxu0
      %v2022 = vadd.f32 0.0, %v2021
      %v2023 = vpop.f32.mrf.mxu0
      %v2024 = vadd.f32 0.0, %v2023
      %2025 = vmatmul.bf16.gmra.mxu0 %v982
      %v2026 = vpop.f32.mrf.mxu0
      %v2027 = vadd.f32 0.0, %v2026
      %v2028 = vpop.f32.mrf.mxu0
      %v2029 = vadd.f32 0.0, %v2028
      %2030 = vmatmul.bf16.gmra.mxu0 %v985
      %v2031 = vpop.f32.mrf.mxu0
      %v2032 = vadd.f32 0.0, %v2031
      %v2033 = vpop.f32.mrf.mxu0
      %v2034 = vadd.f32 0.0, %v2033
      %2035 = vmatmul.bf16.gmra.mxu0 %v988
      %v2036 = vpop.f32.mrf.mxu0
      %v2037 = vadd.f32 0.0, %v2036
      %v2038 = vpop.f32.mrf.mxu0
      %v2039 = vadd.f32 0.0, %v2038
      %2040 = vmatmul.bf16.gmra.mxu0 %v991
      %v2041 = vpop.f32.mrf.mxu0
      %v2042 = vadd.f32 0.0, %v2041
      %v2043 = vpop.f32.mrf.mxu0
      %v2044 = vadd.f32 0.0, %v2043
      %2045 = vmatmul.bf16.gmra.mxu0 %v994
      %v2046 = vpop.f32.mrf.mxu0
      %v2047 = vadd.f32 0.0, %v2046
      %v2048 = vpop.f32.mrf.mxu0
      %v2049 = vadd.f32 0.0, %v2048
      %2050 = vmatmul.bf16.gmra.mxu0 %v997
      %v2051 = vpop.f32.mrf.mxu0
      %v2052 = vadd.f32 0.0, %v2051
      %v2053 = vpop.f32.mrf.mxu0
      %v2054 = vadd.f32 0.0, %v2053
      %2055 = vmatmul.bf16.gmra.mxu0 %v1000
      %v2056 = vpop.f32.mrf.mxu0
      %v2057 = vadd.f32 0.0, %v2056
      %v2058 = vpop.f32.mrf.mxu0
      %v2059 = vadd.f32 0.0, %v2058
      %2060 = vdwg.mxu0
      %v2065 = vunpack.c.l.b16 %v1960
      %v2066 = vunpack.c.l.b16 %v1961
      %v2067 = vunpack.c.l.b16 %v1962
      %v2068 = vunpack.c.l.b16 %v1963
      %v2069 = vpack.c.b16 %v2066, %v2065
      %v2070 = vpack.c.b16 %v2068, %v2067
      %v2074 = vsel %vm1159, %v1944, 0
      %v2077 = vsel %vm1159, %v1945, 0
      %v2080 = vsel %vm1159, %v1946, 0
      %v2083 = vsel %vm1159, %v1947, 0
      %v2086 = vsel %vm1159, %v1948, 0
      %v2089 = vsel %vm1159, %v1949, 0
      %v2092 = vsel %vm1159, %v1950, 0
      %v2095 = vsel %vm1159, %v1951, 0
      %v2098 = vsel %vm1159, %v1952, 0
      %v2101 = vsel %vm1159, %v1953, 0
      %v2104 = vsel %vm1159, %v1954, 0
      %v2107 = vsel %vm1159, %v1955, 0
      %v2110 = vsel %vm1159, %v1956, 0
      %v2113 = vsel %vm1159, %v1957, 0
      %v2116 = vsel %vm1159, %v1958, 0
      %v2119 = vsel %vm1159, %v1959, 0
      %2121 = vmatpush.bf16.msra.mxu0 0
      %2122 = vmatpush.bf16.msra.mxu0 0
      %2123 = vmatpush.bf16.msra.mxu0 0
      %2124 = vmatpush.bf16.msra.mxu0 0
      %2125 = vmatpush.bf16.msra.mxu0 0
      %2126 = vmatpush.bf16.msra.mxu0 0
      %2127 = vmatpush.bf16.msra.mxu0 %v2070
      %2128 = vmatpush.bf16.msra.mxu0 %v2069
      %2129 = vmatmul.bf16.gmra.mxu0 %v2074
      %v2130 = vpop.f32.mrf.mxu0
      %v2131 = vadd.f32 %v1982, %v2130
      %v2132 = vpop.f32.mrf.mxu0
      %v2133 = vadd.f32 %v1984, %v2132
      %2134 = vmatmul.bf16.gmra.mxu0 %v2077
      %v2135 = vpop.f32.mrf.mxu0
      %v2136 = vadd.f32 %v1987, %v2135
      %v2137 = vpop.f32.mrf.mxu0
      %v2138 = vadd.f32 %v1989, %v2137
      %2139 = vmatmul.bf16.gmra.mxu0 %v2080
      %v2140 = vpop.f32.mrf.mxu0
      %v2141 = vadd.f32 %v1992, %v2140
      %v2142 = vpop.f32.mrf.mxu0
      %v2143 = vadd.f32 %v1994, %v2142
      %2144 = vmatmul.bf16.gmra.mxu0 %v2083
      %v2145 = vpop.f32.mrf.mxu0
      %v2146 = vadd.f32 %v1997, %v2145
      %v2147 = vpop.f32.mrf.mxu0
      %v2148 = vadd.f32 %v1999, %v2147
      %2149 = vmatmul.bf16.gmra.mxu0 %v2086
      %v2150 = vpop.f32.mrf.mxu0
      %v2151 = vadd.f32 %v2002, %v2150
      %v2152 = vpop.f32.mrf.mxu0
      %v2153 = vadd.f32 %v2004, %v2152
      %2154 = vmatmul.bf16.gmra.mxu0 %v2089
      %v2155 = vpop.f32.mrf.mxu0
      %v2156 = vadd.f32 %v2007, %v2155
      %v2157 = vpop.f32.mrf.mxu0
      %v2158 = vadd.f32 %v2009, %v2157
      %2159 = vmatmul.bf16.gmra.mxu0 %v2092
      %v2160 = vpop.f32.mrf.mxu0
      %v2161 = vadd.f32 %v2012, %v2160
      %v2162 = vpop.f32.mrf.mxu0
      %v2163 = vadd.f32 %v2014, %v2162
      %2164 = vmatmul.bf16.gmra.mxu0 %v2095
      %v2165 = vpop.f32.mrf.mxu0
      %v2166 = vadd.f32 %v2017, %v2165
      %v2167 = vpop.f32.mrf.mxu0
      %v2168 = vadd.f32 %v2019, %v2167
      %2169 = vmatmul.bf16.gmra.mxu0 %v2098
      %v2170 = vpop.f32.mrf.mxu0
      %v2171 = vadd.f32 %v2022, %v2170
      %v2172 = vpop.f32.mrf.mxu0
      %v2173 = vadd.f32 %v2024, %v2172
      %2174 = vmatmul.bf16.gmra.mxu0 %v2101
      %v2175 = vpop.f32.mrf.mxu0
      %v2176 = vadd.f32 %v2027, %v2175
      %v2177 = vpop.f32.mrf.mxu0
      %v2178 = vadd.f32 %v2029, %v2177
      %2179 = vmatmul.bf16.gmra.mxu0 %v2104
      %v2180 = vpop.f32.mrf.mxu0
      %v2181 = vadd.f32 %v2032, %v2180
      %v2182 = vpop.f32.mrf.mxu0
      %v2183 = vadd.f32 %v2034, %v2182
      %2184 = vmatmul.bf16.gmra.mxu0 %v2107
      %v2185 = vpop.f32.mrf.mxu0
      %v2186 = vadd.f32 %v2037, %v2185
      %v2187 = vpop.f32.mrf.mxu0
      %v2188 = vadd.f32 %v2039, %v2187
      %2189 = vmatmul.bf16.gmra.mxu0 %v2110
      %v2190 = vpop.f32.mrf.mxu0
      %v2191 = vadd.f32 %v2042, %v2190
      %v2192 = vpop.f32.mrf.mxu0
      %v2193 = vadd.f32 %v2044, %v2192
      %2194 = vmatmul.bf16.gmra.mxu0 %v2113
      %v2195 = vpop.f32.mrf.mxu0
      %v2196 = vadd.f32 %v2047, %v2195
      %v2197 = vpop.f32.mrf.mxu0
      %v2198 = vadd.f32 %v2049, %v2197
      %2199 = vmatmul.bf16.gmra.mxu0 %v2116
      %v2200 = vpop.f32.mrf.mxu0
      %v2201 = vadd.f32 %v2052, %v2200
      %v2202 = vpop.f32.mrf.mxu0
      %v2203 = vadd.f32 %v2054, %v2202
      %2204 = vmatmul.bf16.gmra.mxu0 %v2119
      %v2205 = vpop.f32.mrf.mxu0
      %v2206 = vadd.f32 %v2057, %v2205
      %v2207 = vpop.f32.mrf.mxu0
      %v2208 = vadd.f32 %v2059, %v2207
      %2209 = vdwg.mxu0
      %v2210 = vld [vmem:[%s14] sm:$0x1]
      %v2212 = vperm.slane %v2210, 0
      %v2214 = vadd.f32 %v2131, %v2212
      %v2215 = vadd.f32 %v2133, %v2212
      %v2216 = vadd.f32 %v2136, %v2212
      %v2217 = vadd.f32 %v2138, %v2212
      %v2218 = vadd.f32 %v2141, %v2212
      %v2219 = vadd.f32 %v2143, %v2212
      %v2220 = vadd.f32 %v2146, %v2212
      %v2221 = vadd.f32 %v2148, %v2212
      %v2222 = vadd.f32 %v2151, %v2212
      %v2223 = vadd.f32 %v2153, %v2212
      %v2224 = vadd.f32 %v2156, %v2212
      %v2225 = vadd.f32 %v2158, %v2212
      %v2226 = vadd.f32 %v2161, %v2212
      %v2227 = vadd.f32 %v2163, %v2212
      %v2228 = vadd.f32 %v2166, %v2212
      %v2229 = vadd.f32 %v2168, %v2212
      %v2230 = vadd.f32 %v2171, %v2212
      %v2231 = vadd.f32 %v2173, %v2212
      %v2232 = vadd.f32 %v2176, %v2212
      %v2233 = vadd.f32 %v2178, %v2212
      %v2234 = vadd.f32 %v2181, %v2212
      %v2235 = vadd.f32 %v2183, %v2212
      %v2236 = vadd.f32 %v2186, %v2212
      %v2237 = vadd.f32 %v2188, %v2212
      %v2238 = vadd.f32 %v2191, %v2212
      %v2239 = vadd.f32 %v2193, %v2212
      %v2240 = vadd.f32 %v2196, %v2212
      %v2241 = vadd.f32 %v2198, %v2212
      %v2242 = vadd.f32 %v2201, %v2212
      %v2243 = vadd.f32 %v2203, %v2212
      %v2244 = vadd.f32 %v2206, %v2212
      %v2245 = vadd.f32 %v2208, %v2212
      %v2246 = vmax.f32 %v2214, 0.0
      %v2247 = vmax.f32 %v2215, 0.0
      %v2248 = vmax.f32 %v2216, 0.0
      %v2249 = vmax.f32 %v2217, 0.0
      %v2250 = vmax.f32 %v2218, 0.0
      %v2251 = vmax.f32 %v2219, 0.0
      %v2252 = vmax.f32 %v2220, 0.0
      %v2253 = vmax.f32 %v2221, 0.0
      %v2254 = vmax.f32 %v2222, 0.0
      %v2255 = vmax.f32 %v2223, 0.0
      %v2256 = vmax.f32 %v2224, 0.0
      %v2257 = vmax.f32 %v2225, 0.0
      %v2258 = vmax.f32 %v2226, 0.0
      %v2259 = vmax.f32 %v2227, 0.0
      %v2260 = vmax.f32 %v2228, 0.0
      %v2261 = vmax.f32 %v2229, 0.0
      %v2262 = vmax.f32 %v2230, 0.0
      %v2263 = vmax.f32 %v2231, 0.0
      %v2264 = vmax.f32 %v2232, 0.0
      %v2265 = vmax.f32 %v2233, 0.0
      %v2266 = vmax.f32 %v2234, 0.0
      %v2267 = vmax.f32 %v2235, 0.0
      %v2268 = vmax.f32 %v2236, 0.0
      %v2269 = vmax.f32 %v2237, 0.0
      %v2270 = vmax.f32 %v2238, 0.0
      %v2271 = vmax.f32 %v2239, 0.0
      %v2272 = vmax.f32 %v2240, 0.0
      %v2273 = vmax.f32 %v2241, 0.0
      %v2274 = vmax.f32 %v2242, 0.0
      %v2275 = vmax.f32 %v2243, 0.0
      %v2276 = vmax.f32 %v2244, 0.0
      %v2277 = vmax.f32 %v2245, 0.0
      %v2278 = vpack.c.bf16 %v2247, %v2246
      %v2279 = vpack.c.bf16 %v2249, %v2248
      %v2280 = vpack.c.bf16 %v2251, %v2250
      %v2281 = vpack.c.bf16 %v2253, %v2252
      %v2282 = vpack.c.bf16 %v2255, %v2254
      %v2283 = vpack.c.bf16 %v2257, %v2256
      %v2284 = vpack.c.bf16 %v2259, %v2258
      %v2285 = vpack.c.bf16 %v2261, %v2260
      %v2286 = vpack.c.bf16 %v2263, %v2262
      %v2287 = vpack.c.bf16 %v2265, %v2264
      %v2288 = vpack.c.bf16 %v2267, %v2266
      %v2289 = vpack.c.bf16 %v2269, %v2268
      %v2290 = vpack.c.bf16 %v2271, %v2270
      %v2291 = vpack.c.bf16 %v2273, %v2272
      %v2292 = vpack.c.bf16 %v2275, %v2274
      %v2293 = vpack.c.bf16 %v2277, %v2276
      %v2294 = vld [vmem:[%s15] sm:$0xf]
      %v2295 = vld [vmem:[%s15 + $0x4] sm:$0xf]
      %v2296 = vld [vmem:[%s15 + $0x8] sm:$0xf]
      %v2297 = vld [vmem:[%s15 + $0xc] sm:$0xf]
      %v2298 = vld [vmem:[%s16] sm:$0x1]
      %v2300 = vperm.slane %v2298, 0
      %v2306 = vunpack.c.l.b16 %v2294
      %v2307 = vunpack.c.l.b16 %v2295
      %v2308 = vunpack.c.l.b16 %v2296
      %v2309 = vunpack.c.l.b16 %v2297
      %v2310 = vpack.c.b16 %v2307, %v2306
      %v2311 = vpack.c.b16 %v2309, %v2308
      %v2315 = vsel %vm1159, %v2278, 0
      %v2318 = vsel %vm1159, %v2279, 0
      %v2321 = vsel %vm1159, %v2280, 0
      %v2324 = vsel %vm1159, %v2281, 0
      %v2327 = vsel %vm1159, %v2282, 0
      %v2330 = vsel %vm1159, %v2283, 0
      %v2333 = vsel %vm1159, %v2284, 0
      %v2336 = vsel %vm1159, %v2285, 0
      %v2339 = vsel %vm1159, %v2286, 0
      %v2342 = vsel %vm1159, %v2287, 0
      %v2345 = vsel %vm1159, %v2288, 0
      %v2348 = vsel %vm1159, %v2289, 0
      %v2351 = vsel %vm1159, %v2290, 0
      %v2354 = vsel %vm1159, %v2291, 0
      %v2357 = vsel %vm1159, %v2292, 0
      %v2360 = vsel %vm1159, %v2293, 0
      %2362 = vmatpush.bf16.msra.mxu0 0
      %2363 = vmatpush.bf16.msra.mxu0 0
      %2364 = vmatpush.bf16.msra.mxu0 0
      %2365 = vmatpush.bf16.msra.mxu0 0
      %2366 = vmatpush.bf16.msra.mxu0 0
      %2367 = vmatpush.bf16.msra.mxu0 0
      %2368 = vmatpush.bf16.msra.mxu0 %v2311
      %2369 = vmatpush.bf16.msra.mxu0 %v2310
      %2370 = vmatmul.bf16.gmra.mxu0 %v2315
      %v2371 = vpop.f32.mrf.mxu0
      %v2372 = vadd.f32 %v2300, %v2371
      %v2373 = vpop.f32.mrf.mxu0
      %v2374 = vadd.f32 %v2300, %v2373
      %2375 = vmatmul.bf16.gmra.mxu0 %v2318
      %v2376 = vpop.f32.mrf.mxu0
      %v2377 = vadd.f32 %v2300, %v2376
      %v2378 = vpop.f32.mrf.mxu0
      %v2379 = vadd.f32 %v2300, %v2378
      %2380 = vmatmul.bf16.gmra.mxu0 %v2321
      %v2381 = vpop.f32.mrf.mxu0
      %v2382 = vadd.f32 %v2300, %v2381
      %v2383 = vpop.f32.mrf.mxu0
      %v2384 = vadd.f32 %v2300, %v2383
      %2385 = vmatmul.bf16.gmra.mxu0 %v2324
      %v2386 = vpop.f32.mrf.mxu0
      %v2387 = vadd.f32 %v2300, %v2386
      %v2388 = vpop.f32.mrf.mxu0
      %v2389 = vadd.f32 %v2300, %v2388
      %2390 = vmatmul.bf16.gmra.mxu0 %v2327
      %v2391 = vpop.f32.mrf.mxu0
      %v2392 = vadd.f32 %v2300, %v2391
      %v2393 = vpop.f32.mrf.mxu0
      %v2394 = vadd.f32 %v2300, %v2393
      %2395 = vmatmul.bf16.gmra.mxu0 %v2330
      %v2396 = vpop.f32.mrf.mxu0
      %v2397 = vadd.f32 %v2300, %v2396
      %v2398 = vpop.f32.mrf.mxu0
      %v2399 = vadd.f32 %v2300, %v2398
      %2400 = vmatmul.bf16.gmra.mxu0 %v2333
      %v2401 = vpop.f32.mrf.mxu0
      %v2402 = vadd.f32 %v2300, %v2401
      %v2403 = vpop.f32.mrf.mxu0
      %v2404 = vadd.f32 %v2300, %v2403
      %2405 = vmatmul.bf16.gmra.mxu0 %v2336
      %v2406 = vpop.f32.mrf.mxu0
      %v2407 = vadd.f32 %v2300, %v2406
      %v2408 = vpop.f32.mrf.mxu0
      %v2409 = vadd.f32 %v2300, %v2408
      %2410 = vmatmul.bf16.gmra.mxu0 %v2339
      %v2411 = vpop.f32.mrf.mxu0
      %v2412 = vadd.f32 %v2300, %v2411
      %v2413 = vpop.f32.mrf.mxu0
      %v2414 = vadd.f32 %v2300, %v2413
      %2415 = vmatmul.bf16.gmra.mxu0 %v2342
      %v2416 = vpop.f32.mrf.mxu0
      %v2417 = vadd.f32 %v2300, %v2416
      %v2418 = vpop.f32.mrf.mxu0
      %v2419 = vadd.f32 %v2300, %v2418
      %2420 = vmatmul.bf16.gmra.mxu0 %v2345
      %v2421 = vpop.f32.mrf.mxu0
      %v2422 = vadd.f32 %v2300, %v2421
      %v2423 = vpop.f32.mrf.mxu0
      %v2424 = vadd.f32 %v2300, %v2423
      %2425 = vmatmul.bf16.gmra.mxu0 %v2348
      %v2426 = vpop.f32.mrf.mxu0
      %v2427 = vadd.f32 %v2300, %v2426
      %v2428 = vpop.f32.mrf.mxu0
      %v2429 = vadd.f32 %v2300, %v2428
      %2430 = vmatmul.bf16.gmra.mxu0 %v2351
      %v2431 = vpop.f32.mrf.mxu0
      %v2432 = vadd.f32 %v2300, %v2431
      %v2433 = vpop.f32.mrf.mxu0
      %v2434 = vadd.f32 %v2300, %v2433
      %2435 = vmatmul.bf16.gmra.mxu0 %v2354
      %v2436 = vpop.f32.mrf.mxu0
      %v2437 = vadd.f32 %v2300, %v2436
      %v2438 = vpop.f32.mrf.mxu0
      %v2439 = vadd.f32 %v2300, %v2438
      %2440 = vmatmul.bf16.gmra.mxu0 %v2357
      %v2441 = vpop.f32.mrf.mxu0
      %v2442 = vadd.f32 %v2300, %v2441
      %v2443 = vpop.f32.mrf.mxu0
      %v2444 = vadd.f32 %v2300, %v2443
      %2445 = vmatmul.bf16.gmra.mxu0 %v2360
      %v2446 = vpop.f32.mrf.mxu0
      %v2447 = vadd.f32 %v2300, %v2446
      %v2448 = vpop.f32.mrf.mxu0
      %v2449 = vadd.f32 %v2300, %v2448
      %2450 = vdwg.mxu0
      %v2451 = vmax.f32 %v2372, 0.0
      %v2452 = vmax.f32 %v2374, 0.0
      %v2453 = vmax.f32 %v2377, 0.0
      %v2454 = vmax.f32 %v2379, 0.0
      %v2455 = vmax.f32 %v2382, 0.0
      %v2456 = vmax.f32 %v2384, 0.0
      %v2457 = vmax.f32 %v2387, 0.0
      %v2458 = vmax.f32 %v2389, 0.0
      %v2459 = vmax.f32 %v2392, 0.0
      %v2460 = vmax.f32 %v2394, 0.0
      %v2461 = vmax.f32 %v2397, 0.0
      %v2462 = vmax.f32 %v2399, 0.0
      %v2463 = vmax.f32 %v2402, 0.0
      %v2464 = vmax.f32 %v2404, 0.0
      %v2465 = vmax.f32 %v2407, 0.0
      %v2466 = vmax.f32 %v2409, 0.0
      %v2467 = vmax.f32 %v2412, 0.0
      %v2468 = vmax.f32 %v2414, 0.0
      %v2469 = vmax.f32 %v2417, 0.0
      %v2470 = vmax.f32 %v2419, 0.0
      %v2471 = vmax.f32 %v2422, 0.0
      %v2472 = vmax.f32 %v2424, 0.0
      %v2473 = vmax.f32 %v2427, 0.0
      %v2474 = vmax.f32 %v2429, 0.0
      %v2475 = vmax.f32 %v2432, 0.0
      %v2476 = vmax.f32 %v2434, 0.0
      %v2477 = vmax.f32 %v2437, 0.0
      %v2478 = vmax.f32 %v2439, 0.0
      %v2479 = vmax.f32 %v2442, 0.0
      %v2480 = vmax.f32 %v2444, 0.0
      %v2481 = vmax.f32 %v2447, 0.0
      %v2482 = vmax.f32 %v2449, 0.0
      %v2483 = vpack.c.bf16 %v2452, %v2451
      %v2484 = vpack.c.bf16 %v2454, %v2453
      %v2485 = vpack.c.bf16 %v2456, %v2455
      %v2486 = vpack.c.bf16 %v2458, %v2457
      %v2487 = vpack.c.bf16 %v2460, %v2459
      %v2488 = vpack.c.bf16 %v2462, %v2461
      %v2489 = vpack.c.bf16 %v2464, %v2463
      %v2490 = vpack.c.bf16 %v2466, %v2465
      %v2491 = vpack.c.bf16 %v2468, %v2467
      %v2492 = vpack.c.bf16 %v2470, %v2469
      %v2493 = vpack.c.bf16 %v2472, %v2471
      %v2494 = vpack.c.bf16 %v2474, %v2473
      %v2495 = vpack.c.bf16 %v2476, %v2475
      %v2496 = vpack.c.bf16 %v2478, %v2477
      %v2497 = vpack.c.bf16 %v2480, %v2479
      %v2498 = vpack.c.bf16 %v2482, %v2481
      %v2499 = vld [vmem:[%s17] sm:$0xf]
      %v2500 = vld [vmem:[%s17 + $0x4] sm:$0xf]
      %v2501 = vld [vmem:[%s17 + $0x8] sm:$0xf]
      %v2502 = vld [vmem:[%s17 + $0xc] sm:$0xf]
      %v2503 = vld [vmem:[%s18] sm:$0x1]
      %v2505 = vperm.slane %v2503, 0
      %v2511 = vunpack.c.l.b16 %v2499
      %v2512 = vunpack.c.l.b16 %v2500
      %v2513 = vunpack.c.l.b16 %v2501
      %v2514 = vunpack.c.l.b16 %v2502
      %v2515 = vpack.c.b16 %v2512, %v2511
      %v2516 = vpack.c.b16 %v2514, %v2513
      %v2520 = vsel %vm1159, %v2483, 0
      %v2523 = vsel %vm1159, %v2484, 0
      %v2526 = vsel %vm1159, %v2485, 0
      %v2529 = vsel %vm1159, %v2486, 0
      %v2532 = vsel %vm1159, %v2487, 0
      %v2535 = vsel %vm1159, %v2488, 0
      %v2538 = vsel %vm1159, %v2489, 0
      %v2541 = vsel %vm1159, %v2490, 0
      %v2544 = vsel %vm1159, %v2491, 0
      %v2547 = vsel %vm1159, %v2492, 0
      %v2550 = vsel %vm1159, %v2493, 0
      %v2553 = vsel %vm1159, %v2494, 0
      %v2556 = vsel %vm1159, %v2495, 0
      %v2559 = vsel %vm1159, %v2496, 0
      %v2562 = vsel %vm1159, %v2497, 0
      %v2565 = vsel %vm1159, %v2498, 0
      %2567 = vmatpush.bf16.msra.mxu0 0
      %2568 = vmatpush.bf16.msra.mxu0 0
      %2569 = vmatpush.bf16.msra.mxu0 0
      %2570 = vmatpush.bf16.msra.mxu0 0
      %2571 = vmatpush.bf16.msra.mxu0 0
      %2572 = vmatpush.bf16.msra.mxu0 0
      %2573 = vmatpush.bf16.msra.mxu0 %v2516
      %2574 = vmatpush.bf16.msra.mxu0 %v2515
      %2575 = vmatmul.bf16.gmra.mxu0 %v2520
      %v2576 = vpop.f32.mrf.mxu0
      %v2577 = vadd.f32 %v2505, %v2576
      %v2578 = vpop.f32.mrf.mxu0
      %v2579 = vadd.f32 %v2505, %v2578
      %2580 = vmatmul.bf16.gmra.mxu0 %v2523
      %v2581 = vpop.f32.mrf.mxu0
      %v2582 = vadd.f32 %v2505, %v2581
      %v2583 = vpop.f32.mrf.mxu0
      %v2584 = vadd.f32 %v2505, %v2583
      %2585 = vmatmul.bf16.gmra.mxu0 %v2526
      %v2586 = vpop.f32.mrf.mxu0
      %v2587 = vadd.f32 %v2505, %v2586
      %v2588 = vpop.f32.mrf.mxu0
      %v2589 = vadd.f32 %v2505, %v2588
      %2590 = vmatmul.bf16.gmra.mxu0 %v2529
      %v2591 = vpop.f32.mrf.mxu0
      %v2592 = vadd.f32 %v2505, %v2591
      %v2593 = vpop.f32.mrf.mxu0
      %v2594 = vadd.f32 %v2505, %v2593
      %2595 = vmatmul.bf16.gmra.mxu0 %v2532
      %v2596 = vpop.f32.mrf.mxu0
      %v2597 = vadd.f32 %v2505, %v2596
      %v2598 = vpop.f32.mrf.mxu0
      %v2599 = vadd.f32 %v2505, %v2598
      %2600 = vmatmul.bf16.gmra.mxu0 %v2535
      %v2601 = vpop.f32.mrf.mxu0
      %v2602 = vadd.f32 %v2505, %v2601
      %v2603 = vpop.f32.mrf.mxu0
      %v2604 = vadd.f32 %v2505, %v2603
      %2605 = vmatmul.bf16.gmra.mxu0 %v2538
      %v2606 = vpop.f32.mrf.mxu0
      %v2607 = vadd.f32 %v2505, %v2606
      %v2608 = vpop.f32.mrf.mxu0
      %v2609 = vadd.f32 %v2505, %v2608
      %2610 = vmatmul.bf16.gmra.mxu0 %v2541
      %v2611 = vpop.f32.mrf.mxu0
      %v2612 = vadd.f32 %v2505, %v2611
      %v2613 = vpop.f32.mrf.mxu0
      %v2614 = vadd.f32 %v2505, %v2613
      %2615 = vmatmul.bf16.gmra.mxu0 %v2544
      %v2616 = vpop.f32.mrf.mxu0
      %v2617 = vadd.f32 %v2505, %v2616
      %v2618 = vpop.f32.mrf.mxu0
      %v2619 = vadd.f32 %v2505, %v2618
      %2620 = vmatmul.bf16.gmra.mxu0 %v2547
      %v2621 = vpop.f32.mrf.mxu0
      %v2622 = vadd.f32 %v2505, %v2621
      %v2623 = vpop.f32.mrf.mxu0
      %v2624 = vadd.f32 %v2505, %v2623
      %2625 = vmatmul.bf16.gmra.mxu0 %v2550
      %v2626 = vpop.f32.mrf.mxu0
      %v2627 = vadd.f32 %v2505, %v2626
      %v2628 = vpop.f32.mrf.mxu0
      %v2629 = vadd.f32 %v2505, %v2628
      %2630 = vmatmul.bf16.gmra.mxu0 %v2553
      %v2631 = vpop.f32.mrf.mxu0
      %v2632 = vadd.f32 %v2505, %v2631
      %v2633 = vpop.f32.mrf.mxu0
      %v2634 = vadd.f32 %v2505, %v2633
      %2635 = vmatmul.bf16.gmra.mxu0 %v2556
      %v2636 = vpop.f32.mrf.mxu0
      %v2637 = vadd.f32 %v2505, %v2636
      %v2638 = vpop.f32.mrf.mxu0
      %v2639 = vadd.f32 %v2505, %v2638
      %2640 = vmatmul.bf16.gmra.mxu0 %v2559
      %v2641 = vpop.f32.mrf.mxu0
      %v2642 = vadd.f32 %v2505, %v2641
      %v2643 = vpop.f32.mrf.mxu0
      %v2644 = vadd.f32 %v2505, %v2643
      %2645 = vmatmul.bf16.gmra.mxu0 %v2562
      %v2646 = vpop.f32.mrf.mxu0
      %v2647 = vadd.f32 %v2505, %v2646
      %v2648 = vpop.f32.mrf.mxu0
      %v2649 = vadd.f32 %v2505, %v2648
      %2650 = vmatmul.bf16.gmra.mxu0 %v2565
      %v2651 = vpop.f32.mrf.mxu0
      %v2652 = vadd.f32 %v2505, %v2651
      %v2653 = vpop.f32.mrf.mxu0
      %v2654 = vadd.f32 %v2505, %v2653
      %2655 = vdwg.mxu0
      %v2656 = vmax.f32 %v2577, 0.0
      %v2657 = vmax.f32 %v2579, 0.0
      %v2658 = vmax.f32 %v2582, 0.0
      %v2659 = vmax.f32 %v2584, 0.0
      %v2660 = vmax.f32 %v2587, 0.0
      %v2661 = vmax.f32 %v2589, 0.0
      %v2662 = vmax.f32 %v2592, 0.0
      %v2663 = vmax.f32 %v2594, 0.0
      %v2664 = vmax.f32 %v2597, 0.0
      %v2665 = vmax.f32 %v2599, 0.0
      %v2666 = vmax.f32 %v2602, 0.0
      %v2667 = vmax.f32 %v2604, 0.0
      %v2668 = vmax.f32 %v2607, 0.0
      %v2669 = vmax.f32 %v2609, 0.0
      %v2670 = vmax.f32 %v2612, 0.0
      %v2671 = vmax.f32 %v2614, 0.0
      %v2672 = vmax.f32 %v2617, 0.0
      %v2673 = vmax.f32 %v2619, 0.0
      %v2674 = vmax.f32 %v2622, 0.0
      %v2675 = vmax.f32 %v2624, 0.0
      %v2676 = vmax.f32 %v2627, 0.0
      %v2677 = vmax.f32 %v2629, 0.0
      %v2678 = vmax.f32 %v2632, 0.0
      %v2679 = vmax.f32 %v2634, 0.0
      %v2680 = vmax.f32 %v2637, 0.0
      %v2681 = vmax.f32 %v2639, 0.0
      %v2682 = vmax.f32 %v2642, 0.0
      %v2683 = vmax.f32 %v2644, 0.0
      %v2684 = vmax.f32 %v2647, 0.0
      %v2685 = vmax.f32 %v2649, 0.0
      %v2686 = vmax.f32 %v2652, 0.0
      %v2687 = vmax.f32 %v2654, 0.0
      %v2688 = vpack.c.bf16 %v2657, %v2656
      %v2689 = vpack.c.bf16 %v2659, %v2658
      %v2690 = vpack.c.bf16 %v2661, %v2660
      %v2691 = vpack.c.bf16 %v2663, %v2662
      %v2692 = vpack.c.bf16 %v2665, %v2664
      %v2693 = vpack.c.bf16 %v2667, %v2666
      %v2694 = vpack.c.bf16 %v2669, %v2668
      %v2695 = vpack.c.bf16 %v2671, %v2670
      %v2696 = vpack.c.bf16 %v2673, %v2672
      %v2697 = vpack.c.bf16 %v2675, %v2674
      %v2698 = vpack.c.bf16 %v2677, %v2676
      %v2699 = vpack.c.bf16 %v2679, %v2678
      %v2700 = vpack.c.bf16 %v2681, %v2680
      %v2701 = vpack.c.bf16 %v2683, %v2682
      %v2702 = vpack.c.bf16 %v2685, %v2684
      %v2703 = vpack.c.bf16 %v2687, %v2686
      %v2704 = vld [vmem:[%s19] sm:$0xf]
      %v2705 = vld [vmem:[%s19 + $0x4] sm:$0xf]
      %v2706 = vld [vmem:[%s19 + $0x8] sm:$0xf]
      %v2707 = vld [vmem:[%s19 + $0xc] sm:$0xf]
      %v2712 = vunpack.c.l.b16 %v2704
      %v2713 = vunpack.c.l.b16 %v2705
      %v2714 = vunpack.c.l.b16 %v2706
      %v2715 = vunpack.c.l.b16 %v2707
      %v2716 = vpack.c.b16 %v2713, %v2712
      %v2717 = vpack.c.b16 %v2715, %v2714
      %v2721 = vsel %vm1159, %v2688, 0
      %v2724 = vsel %vm1159, %v2689, 0
      %v2727 = vsel %vm1159, %v2690, 0
      %v2730 = vsel %vm1159, %v2691, 0
      %v2733 = vsel %vm1159, %v2692, 0
      %v2736 = vsel %vm1159, %v2693, 0
      %v2739 = vsel %vm1159, %v2694, 0
      %v2742 = vsel %vm1159, %v2695, 0
      %v2745 = vsel %vm1159, %v2696, 0
      %v2748 = vsel %vm1159, %v2697, 0
      %v2751 = vsel %vm1159, %v2698, 0
      %v2754 = vsel %vm1159, %v2699, 0
      %v2757 = vsel %vm1159, %v2700, 0
      %v2760 = vsel %vm1159, %v2701, 0
      %v2763 = vsel %vm1159, %v2702, 0
      %v2766 = vsel %vm1159, %v2703, 0
      %2768 = vmatpush.bf16.msra.mxu0 0
      %2769 = vmatpush.bf16.msra.mxu0 0
      %2770 = vmatpush.bf16.msra.mxu0 0
      %2771 = vmatpush.bf16.msra.mxu0 0
      %2772 = vmatpush.bf16.msra.mxu0 0
      %2773 = vmatpush.bf16.msra.mxu0 0
      %2774 = vmatpush.bf16.msra.mxu0 %v2717
      %2775 = vmatpush.bf16.msra.mxu0 %v2716
      %2776 = vmatmul.bf16.gmra.mxu0 %v2721
      %v2777 = vpop.f32.mrf.mxu0
      %v2778 = vadd.f32 0.0, %v2777
      %v2779 = vpop.f32.mrf.mxu0
      %v2780 = vadd.f32 0.0, %v2779
      %2781 = vmatmul.bf16.gmra.mxu0 %v2724
      %v2782 = vpop.f32.mrf.mxu0
      %v2783 = vadd.f32 0.0, %v2782
      %v2784 = vpop.f32.mrf.mxu0
      %v2785 = vadd.f32 0.0, %v2784
      %2786 = vmatmul.bf16.gmra.mxu0 %v2727
      %v2787 = vpop.f32.mrf.mxu0
      %v2788 = vadd.f32 0.0, %v2787
      %v2789 = vpop.f32.mrf.mxu0
      %v2790 = vadd.f32 0.0, %v2789
      %2791 = vmatmul.bf16.gmra.mxu0 %v2730
      %v2792 = vpop.f32.mrf.mxu0
      %v2793 = vadd.f32 0.0, %v2792
      %v2794 = vpop.f32.mrf.mxu0
      %v2795 = vadd.f32 0.0, %v2794
      %2796 = vmatmul.bf16.gmra.mxu0 %v2733
      %v2797 = vpop.f32.mrf.mxu0
      %v2798 = vadd.f32 0.0, %v2797
      %v2799 = vpop.f32.mrf.mxu0
      %v2800 = vadd.f32 0.0, %v2799
      %2801 = vmatmul.bf16.gmra.mxu0 %v2736
      %v2802 = vpop.f32.mrf.mxu0
      %v2803 = vadd.f32 0.0, %v2802
      %v2804 = vpop.f32.mrf.mxu0
      %v2805 = vadd.f32 0.0, %v2804
      %2806 = vmatmul.bf16.gmra.mxu0 %v2739
      %v2807 = vpop.f32.mrf.mxu0
      %v2808 = vadd.f32 0.0, %v2807
      %v2809 = vpop.f32.mrf.mxu0
      %v2810 = vadd.f32 0.0, %v2809
      %2811 = vmatmul.bf16.gmra.mxu0 %v2742
      %v2812 = vpop.f32.mrf.mxu0
      %v2813 = vadd.f32 0.0, %v2812
      %v2814 = vpop.f32.mrf.mxu0
      %v2815 = vadd.f32 0.0, %v2814
      %2816 = vmatmul.bf16.gmra.mxu0 %v2745
      %v2817 = vpop.f32.mrf.mxu0
      %v2818 = vadd.f32 0.0, %v2817
      %v2819 = vpop.f32.mrf.mxu0
      %v2820 = vadd.f32 0.0, %v2819
      %2821 = vmatmul.bf16.gmra.mxu0 %v2748
      %v2822 = vpop.f32.mrf.mxu0
      %v2823 = vadd.f32 0.0, %v2822
      %v2824 = vpop.f32.mrf.mxu0
      %v2825 = vadd.f32 0.0, %v2824
      %2826 = vmatmul.bf16.gmra.mxu0 %v2751
      %v2827 = vpop.f32.mrf.mxu0
      %v2828 = vadd.f32 0.0, %v2827
      %v2829 = vpop.f32.mrf.mxu0
      %v2830 = vadd.f32 0.0, %v2829
      %2831 = vmatmul.bf16.gmra.mxu0 %v2754
      %v2832 = vpop.f32.mrf.mxu0
      %v2833 = vadd.f32 0.0, %v2832
      %v2834 = vpop.f32.mrf.mxu0
      %v2835 = vadd.f32 0.0, %v2834
      %2836 = vmatmul.bf16.gmra.mxu0 %v2757
      %v2837 = vpop.f32.mrf.mxu0
      %v2838 = vadd.f32 0.0, %v2837
      %v2839 = vpop.f32.mrf.mxu0
      %v2840 = vadd.f32 0.0, %v2839
      %2841 = vmatmul.bf16.gmra.mxu0 %v2760
      %v2842 = vpop.f32.mrf.mxu0
      %v2843 = vadd.f32 0.0, %v2842
      %v2844 = vpop.f32.mrf.mxu0
      %v2845 = vadd.f32 0.0, %v2844
      %2846 = vmatmul.bf16.gmra.mxu0 %v2763
      %v2847 = vpop.f32.mrf.mxu0
      %v2848 = vadd.f32 0.0, %v2847
      %v2849 = vpop.f32.mrf.mxu0
      %v2850 = vadd.f32 0.0, %v2849
      %2851 = vmatmul.bf16.gmra.mxu0 %v2766
      %v2852 = vpop.f32.mrf.mxu0
      %v2853 = vadd.f32 0.0, %v2852
      %v2854 = vpop.f32.mrf.mxu0
      %v2855 = vadd.f32 0.0, %v2854
      %2856 = vdwg.mxu0
      %v2857 = vld [vmem:[%s20] sm:$0xf]
      %v2858 = vld [vmem:[%s20 + $0x4] sm:$0xf]
      %v2859 = vld [vmem:[%s20 + $0x8] sm:$0xf]
      %v2860 = vld [vmem:[%s20 + $0xc] sm:$0xf]
      %v2861 = vld [vmem:[%s21] sm:$0x1]
      %v2863 = vperm.slane %v2861, 0
      %v2869 = vunpack.c.l.b16 %v2857
      %v2870 = vunpack.c.l.b16 %v2858
      %v2871 = vunpack.c.l.b16 %v2859
      %v2872 = vunpack.c.l.b16 %v2860
      %v2873 = vpack.c.b16 %v2870, %v2869
      %v2874 = vpack.c.b16 %v2872, %v2871
      %2877 = vmatpush.bf16.msra.mxu0 0
      %2878 = vmatpush.bf16.msra.mxu0 0
      %2879 = vmatpush.bf16.msra.mxu0 0
      %2880 = vmatpush.bf16.msra.mxu0 0
      %2881 = vmatpush.bf16.msra.mxu0 0
      %2882 = vmatpush.bf16.msra.mxu0 0
      %2883 = vmatpush.bf16.msra.mxu0 %v2874
      %2884 = vmatpush.bf16.msra.mxu0 %v2873
      %2885 = vmatmul.bf16.gmra.mxu0 %v2721
      %v2886 = vpop.f32.mrf.mxu0
      %v2887 = vadd.f32 %v2863, %v2886
      %v2888 = vpop.f32.mrf.mxu0
      %v2889 = vadd.f32 %v2863, %v2888
      %2890 = vmatmul.bf16.gmra.mxu0 %v2724
      %v2891 = vpop.f32.mrf.mxu0
      %v2892 = vadd.f32 %v2863, %v2891
      %v2893 = vpop.f32.mrf.mxu0
      %v2894 = vadd.f32 %v2863, %v2893
      %2895 = vmatmul.bf16.gmra.mxu0 %v2727
      %v2896 = vpop.f32.mrf.mxu0
      %v2897 = vadd.f32 %v2863, %v2896
      %v2898 = vpop.f32.mrf.mxu0
      %v2899 = vadd.f32 %v2863, %v2898
      %2900 = vmatmul.bf16.gmra.mxu0 %v2730
      %v2901 = vpop.f32.mrf.mxu0
      %v2902 = vadd.f32 %v2863, %v2901
      %v2903 = vpop.f32.mrf.mxu0
      %v2904 = vadd.f32 %v2863, %v2903
      %2905 = vmatmul.bf16.gmra.mxu0 %v2733
      %v2906 = vpop.f32.mrf.mxu0
      %v2907 = vadd.f32 %v2863, %v2906
      %v2908 = vpop.f32.mrf.mxu0
      %v2909 = vadd.f32 %v2863, %v2908
      %2910 = vmatmul.bf16.gmra.mxu0 %v2736
      %v2911 = vpop.f32.mrf.mxu0
      %v2912 = vadd.f32 %v2863, %v2911
      %v2913 = vpop.f32.mrf.mxu0
      %v2914 = vadd.f32 %v2863, %v2913
      %2915 = vmatmul.bf16.gmra.mxu0 %v2739
      %v2916 = vpop.f32.mrf.mxu0
      %v2917 = vadd.f32 %v2863, %v2916
      %v2918 = vpop.f32.mrf.mxu0
      %v2919 = vadd.f32 %v2863, %v2918
      %2920 = vmatmul.bf16.gmra.mxu0 %v2742
      %v2921 = vpop.f32.mrf.mxu0
      %v2922 = vadd.f32 %v2863, %v2921
      %v2923 = vpop.f32.mrf.mxu0
      %v2924 = vadd.f32 %v2863, %v2923
      %2925 = vmatmul.bf16.gmra.mxu0 %v2745
      %v2926 = vpop.f32.mrf.mxu0
      %v2927 = vadd.f32 %v2863, %v2926
      %v2928 = vpop.f32.mrf.mxu0
      %v2929 = vadd.f32 %v2863, %v2928
      %2930 = vmatmul.bf16.gmra.mxu0 %v2748
      %v2931 = vpop.f32.mrf.mxu0
      %v2932 = vadd.f32 %v2863, %v2931
      %v2933 = vpop.f32.mrf.mxu0
      %v2934 = vadd.f32 %v2863, %v2933
      %2935 = vmatmul.bf16.gmra.mxu0 %v2751
      %v2936 = vpop.f32.mrf.mxu0
      %v2937 = vadd.f32 %v2863, %v2936
      %v2938 = vpop.f32.mrf.mxu0
      %v2939 = vadd.f32 %v2863, %v2938
      %2940 = vmatmul.bf16.gmra.mxu0 %v2754
      %v2941 = vpop.f32.mrf.mxu0
      %v2942 = vadd.f32 %v2863, %v2941
      %v2943 = vpop.f32.mrf.mxu0
      %v2944 = vadd.f32 %v2863, %v2943
      %2945 = vmatmul.bf16.gmra.mxu0 %v2757
      %v2946 = vpop.f32.mrf.mxu0
      %v2947 = vadd.f32 %v2863, %v2946
      %v2948 = vpop.f32.mrf.mxu0
      %v2949 = vadd.f32 %v2863, %v2948
      %2950 = vmatmul.bf16.gmra.mxu0 %v2760
      %v2951 = vpop.f32.mrf.mxu0
      %v2952 = vadd.f32 %v2863, %v2951
      %v2953 = vpop.f32.mrf.mxu0
      %v2954 = vadd.f32 %v2863, %v2953
      %2955 = vmatmul.bf16.gmra.mxu0 %v2763
      %v2956 = vpop.f32.mrf.mxu0
      %v2957 = vadd.f32 %v2863, %v2956
      %v2958 = vpop.f32.mrf.mxu0
      %v2959 = vadd.f32 %v2863, %v2958
      %2960 = vmatmul.bf16.gmra.mxu0 %v2766
      %v2961 = vpop.f32.mrf.mxu0
      %v2962 = vadd.f32 %v2863, %v2961
      %v2963 = vpop.f32.mrf.mxu0
      %v2964 = vadd.f32 %v2863, %v2963
      %2965 = vdwg.mxu0
      %v2966 = vpack.c.bf16 %v2889, %v2887
      %v2967 = vpack.c.bf16 %v2894, %v2892
      %v2968 = vpack.c.bf16 %v2899, %v2897
      %v2969 = vpack.c.bf16 %v2904, %v2902
      %v2970 = vpack.c.bf16 %v2909, %v2907
      %v2971 = vpack.c.bf16 %v2914, %v2912
      %v2972 = vpack.c.bf16 %v2919, %v2917
      %v2973 = vpack.c.bf16 %v2924, %v2922
      %v2974 = vpack.c.bf16 %v2929, %v2927
      %v2975 = vpack.c.bf16 %v2934, %v2932
      %v2976 = vpack.c.bf16 %v2939, %v2937
      %v2977 = vpack.c.bf16 %v2944, %v2942
      %v2978 = vpack.c.bf16 %v2949, %v2947
      %v2979 = vpack.c.bf16 %v2954, %v2952
      %v2980 = vpack.c.bf16 %v2959, %v2957
      %v2981 = vpack.c.bf16 %v2964, %v2962
      %v2982 = vld [vmem:[%s22] sm:$0xf]
      %v2983 = vld [vmem:[%s22 + $0x4] sm:$0xf]
      %v2984 = vld [vmem:[%s22 + $0x8] sm:$0xf]
      %v2985 = vld [vmem:[%s22 + $0xc] sm:$0xf]
      %v2986 = vld [vmem:[%s23] sm:$0xf]
      %vm2987 = vcmask 64512
      %v2989 = vsel %vm2987, %v925, 0
      %v2992 = vsel %vm2987, %v926, 0
      %v2995 = vsel %vm2987, %v927, 0
      %v2998 = vsel %vm2987, %v928, 0
      %v3001 = vsel %vm2987, %v929, 0
      %v3004 = vsel %vm2987, %v930, 0
      %v3007 = vsel %vm2987, %v931, 0
      %v3010 = vsel %vm2987, %v932, 0
      %v3013 = vsel %vm2987, %v933, 0
      %v3016 = vsel %vm2987, %v934, 0
      %v3019 = vsel %vm2987, %v935, 0
      %v3022 = vsel %vm2987, %v936, 0
      %v3025 = vsel %vm2987, %v937, 0
      %v3028 = vsel %vm2987, %v938, 0
      %v3031 = vsel %vm2987, %v939, 0
      %v3034 = vsel %vm2987, %v940, 0
      %vm3036 = vcmask 1043456
      %v3038 = vsel %vm3036, %v2986, 0
      %3040 = vmatpush.bf16.msra.mxu0 0
      %3041 = vmatpush.bf16.msra.mxu0 0
      %3042 = vmatpush.bf16.msra.mxu0 0
      %3043 = vmatpush.bf16.msra.mxu0 0
      %3044 = vmatpush.bf16.msra.mxu0 0
      %3045 = vmatpush.bf16.msra.mxu0 0
      %3046 = vmatpush.bf16.msra.mxu0 0
      %3047 = vmatpush.bf16.msra.mxu0 %v3038
      %3048 = vmatmul.bf16.gmra.mxu0 %v2989
      %v3049 = vpop.f32.mrf.mxu0
      %v3050 = vadd.f32 0.0, %v3049
      %v3051 = vpop.f32.mrf.mxu0
      %v3052 = vadd.f32 0.0, %v3051
      %3053 = vmatmul.bf16.gmra.mxu0 %v2992
      %v3054 = vpop.f32.mrf.mxu0
      %v3055 = vadd.f32 0.0, %v3054
      %v3056 = vpop.f32.mrf.mxu0
      %v3057 = vadd.f32 0.0, %v3056
      %3058 = vmatmul.bf16.gmra.mxu0 %v2995
      %v3059 = vpop.f32.mrf.mxu0
      %v3060 = vadd.f32 0.0, %v3059
      %v3061 = vpop.f32.mrf.mxu0
      %v3062 = vadd.f32 0.0, %v3061
      %3063 = vmatmul.bf16.gmra.mxu0 %v2998
      %v3064 = vpop.f32.mrf.mxu0
      %v3065 = vadd.f32 0.0, %v3064
      %v3066 = vpop.f32.mrf.mxu0
      %v3067 = vadd.f32 0.0, %v3066
      %3068 = vmatmul.bf16.gmra.mxu0 %v3001
      %v3069 = vpop.f32.mrf.mxu0
      %v3070 = vadd.f32 0.0, %v3069
      %v3071 = vpop.f32.mrf.mxu0
      %v3072 = vadd.f32 0.0, %v3071
      %3073 = vmatmul.bf16.gmra.mxu0 %v3004
      %v3074 = vpop.f32.mrf.mxu0
      %v3075 = vadd.f32 0.0, %v3074
      %v3076 = vpop.f32.mrf.mxu0
      %v3077 = vadd.f32 0.0, %v3076
      %3078 = vmatmul.bf16.gmra.mxu0 %v3007
      %v3079 = vpop.f32.mrf.mxu0
      %v3080 = vadd.f32 0.0, %v3079
      %v3081 = vpop.f32.mrf.mxu0
      %v3082 = vadd.f32 0.0, %v3081
      %3083 = vmatmul.bf16.gmra.mxu0 %v3010
      %v3084 = vpop.f32.mrf.mxu0
      %v3085 = vadd.f32 0.0, %v3084
      %v3086 = vpop.f32.mrf.mxu0
      %v3087 = vadd.f32 0.0, %v3086
      %3088 = vmatmul.bf16.gmra.mxu0 %v3013
      %v3089 = vpop.f32.mrf.mxu0
      %v3090 = vadd.f32 0.0, %v3089
      %v3091 = vpop.f32.mrf.mxu0
      %v3092 = vadd.f32 0.0, %v3091
      %3093 = vmatmul.bf16.gmra.mxu0 %v3016
      %v3094 = vpop.f32.mrf.mxu0
      %v3095 = vadd.f32 0.0, %v3094
      %v3096 = vpop.f32.mrf.mxu0
      %v3097 = vadd.f32 0.0, %v3096
      %3098 = vmatmul.bf16.gmra.mxu0 %v3019
      %v3099 = vpop.f32.mrf.mxu0
      %v3100 = vadd.f32 0.0, %v3099
      %v3101 = vpop.f32.mrf.mxu0
      %v3102 = vadd.f32 0.0, %v3101
      %3103 = vmatmul.bf16.gmra.mxu0 %v3022
      %v3104 = vpop.f32.mrf.mxu0
      %v3105 = vadd.f32 0.0, %v3104
      %v3106 = vpop.f32.mrf.mxu0
      %v3107 = vadd.f32 0.0, %v3106
      %3108 = vmatmul.bf16.gmra.mxu0 %v3025
      %v3109 = vpop.f32.mrf.mxu0
      %v3110 = vadd.f32 0.0, %v3109
      %v3111 = vpop.f32.mrf.mxu0
      %v3112 = vadd.f32 0.0, %v3111
      %3113 = vmatmul.bf16.gmra.mxu0 %v3028
      %v3114 = vpop.f32.mrf.mxu0
      %v3115 = vadd.f32 0.0, %v3114
      %v3116 = vpop.f32.mrf.mxu0
      %v3117 = vadd.f32 0.0, %v3116
      %3118 = vmatmul.bf16.gmra.mxu0 %v3031
      %v3119 = vpop.f32.mrf.mxu0
      %v3120 = vadd.f32 0.0, %v3119
      %v3121 = vpop.f32.mrf.mxu0
      %v3122 = vadd.f32 0.0, %v3121
      %3123 = vmatmul.bf16.gmra.mxu0 %v3034
      %v3124 = vpop.f32.mrf.mxu0
      %v3125 = vadd.f32 0.0, %v3124
      %v3126 = vpop.f32.mrf.mxu0
      %v3127 = vadd.f32 0.0, %v3126
      %3128 = vdwg.mxu0
      %v3133 = vunpack.c.l.b16 %v2982
      %v3134 = vunpack.c.l.b16 %v2983
      %v3135 = vunpack.c.l.b16 %v2984
      %v3136 = vunpack.c.l.b16 %v2985
      %v3137 = vpack.c.b16 %v3134, %v3133
      %v3138 = vpack.c.b16 %v3136, %v3135
      %v3142 = vsel %vm1159, %v2966, 0
      %v3145 = vsel %vm1159, %v2967, 0
      %v3148 = vsel %vm1159, %v2968, 0
      %v3151 = vsel %vm1159, %v2969, 0
      %v3154 = vsel %vm1159, %v2970, 0
      %v3157 = vsel %vm1159, %v2971, 0
      %v3160 = vsel %vm1159, %v2972, 0
      %v3163 = vsel %vm1159, %v2973, 0
      %v3166 = vsel %vm1159, %v2974, 0
      %v3169 = vsel %vm1159, %v2975, 0
      %v3172 = vsel %vm1159, %v2976, 0
      %v3175 = vsel %vm1159, %v2977, 0
      %v3178 = vsel %vm1159, %v2978, 0
      %v3181 = vsel %vm1159, %v2979, 0
      %v3184 = vsel %vm1159, %v2980, 0
      %v3187 = vsel %vm1159, %v2981, 0
      %3189 = vmatpush.bf16.msra.mxu0 0
      %3190 = vmatpush.bf16.msra.mxu0 0
      %3191 = vmatpush.bf16.msra.mxu0 0
      %3192 = vmatpush.bf16.msra.mxu0 0
      %3193 = vmatpush.bf16.msra.mxu0 0
      %3194 = vmatpush.bf16.msra.mxu0 0
      %3195 = vmatpush.bf16.msra.mxu0 %v3138
      %3196 = vmatpush.bf16.msra.mxu0 %v3137
      %3197 = vmatmul.bf16.gmra.mxu0 %v3142
      %v3198 = vpop.f32.mrf.mxu0
      %v3199 = vadd.f32 %v3050, %v3198
      %v3200 = vpop.f32.mrf.mxu0
      %v3201 = vadd.f32 %v3052, %v3200
      %3202 = vmatmul.bf16.gmra.mxu0 %v3145
      %v3203 = vpop.f32.mrf.mxu0
      %v3204 = vadd.f32 %v3055, %v3203
      %v3205 = vpop.f32.mrf.mxu0
      %v3206 = vadd.f32 %v3057, %v3205
      %3207 = vmatmul.bf16.gmra.mxu0 %v3148
      %v3208 = vpop.f32.mrf.mxu0
      %v3209 = vadd.f32 %v3060, %v3208
      %v3210 = vpop.f32.mrf.mxu0
      %v3211 = vadd.f32 %v3062, %v3210
      %3212 = vmatmul.bf16.gmra.mxu0 %v3151
      %v3213 = vpop.f32.mrf.mxu0
      %v3214 = vadd.f32 %v3065, %v3213
      %v3215 = vpop.f32.mrf.mxu0
      %v3216 = vadd.f32 %v3067, %v3215
      %3217 = vmatmul.bf16.gmra.mxu0 %v3154
      %v3218 = vpop.f32.mrf.mxu0
      %v3219 = vadd.f32 %v3070, %v3218
      %v3220 = vpop.f32.mrf.mxu0
      %v3221 = vadd.f32 %v3072, %v3220
      %3222 = vmatmul.bf16.gmra.mxu0 %v3157
      %v3223 = vpop.f32.mrf.mxu0
      %v3224 = vadd.f32 %v3075, %v3223
      %v3225 = vpop.f32.mrf.mxu0
      %v3226 = vadd.f32 %v3077, %v3225
      %3227 = vmatmul.bf16.gmra.mxu0 %v3160
      %v3228 = vpop.f32.mrf.mxu0
      %v3229 = vadd.f32 %v3080, %v3228
      %v3230 = vpop.f32.mrf.mxu0
      %v3231 = vadd.f32 %v3082, %v3230
      %3232 = vmatmul.bf16.gmra.mxu0 %v3163
      %v3233 = vpop.f32.mrf.mxu0
      %v3234 = vadd.f32 %v3085, %v3233
      %v3235 = vpop.f32.mrf.mxu0
      %v3236 = vadd.f32 %v3087, %v3235
      %3237 = vmatmul.bf16.gmra.mxu0 %v3166
      %v3238 = vpop.f32.mrf.mxu0
      %v3239 = vadd.f32 %v3090, %v3238
      %v3240 = vpop.f32.mrf.mxu0
      %v3241 = vadd.f32 %v3092, %v3240
      %3242 = vmatmul.bf16.gmra.mxu0 %v3169
      %v3243 = vpop.f32.mrf.mxu0
      %v3244 = vadd.f32 %v3095, %v3243
      %v3245 = vpop.f32.mrf.mxu0
      %v3246 = vadd.f32 %v3097, %v3245
      %3247 = vmatmul.bf16.gmra.mxu0 %v3172
      %v3248 = vpop.f32.mrf.mxu0
      %v3249 = vadd.f32 %v3100, %v3248
      %v3250 = vpop.f32.mrf.mxu0
      %v3251 = vadd.f32 %v3102, %v3250
      %3252 = vmatmul.bf16.gmra.mxu0 %v3175
      %v3253 = vpop.f32.mrf.mxu0
      %v3254 = vadd.f32 %v3105, %v3253
      %v3255 = vpop.f32.mrf.mxu0
      %v3256 = vadd.f32 %v3107, %v3255
      %3257 = vmatmul.bf16.gmra.mxu0 %v3178
      %v3258 = vpop.f32.mrf.mxu0
      %v3259 = vadd.f32 %v3110, %v3258
      %v3260 = vpop.f32.mrf.mxu0
      %v3261 = vadd.f32 %v3112, %v3260
      %3262 = vmatmul.bf16.gmra.mxu0 %v3181
      %v3263 = vpop.f32.mrf.mxu0
      %v3264 = vadd.f32 %v3115, %v3263
      %v3265 = vpop.f32.mrf.mxu0
      %v3266 = vadd.f32 %v3117, %v3265
      %3267 = vmatmul.bf16.gmra.mxu0 %v3184
      %v3268 = vpop.f32.mrf.mxu0
      %v3269 = vadd.f32 %v3120, %v3268
      %v3270 = vpop.f32.mrf.mxu0
      %v3271 = vadd.f32 %v3122, %v3270
      %3272 = vmatmul.bf16.gmra.mxu0 %v3187
      %v3273 = vpop.f32.mrf.mxu0
      %v3274 = vadd.f32 %v3125, %v3273
      %v3275 = vpop.f32.mrf.mxu0
      %v3276 = vadd.f32 %v3127, %v3275
      %3277 = vdwg.mxu0
      %v3278 = vld [vmem:[%s24] sm:$0x1]
      %v3280 = vperm.slane %v3278, 0
      %v3282 = vadd.f32 %v3199, %v3280
      %v3283 = vadd.f32 %v3201, %v3280
      %v3284 = vadd.f32 %v3204, %v3280
      %v3285 = vadd.f32 %v3206, %v3280
      %v3286 = vadd.f32 %v3209, %v3280
      %v3287 = vadd.f32 %v3211, %v3280
      %v3288 = vadd.f32 %v3214, %v3280
      %v3289 = vadd.f32 %v3216, %v3280
      %v3290 = vadd.f32 %v3219, %v3280
      %v3291 = vadd.f32 %v3221, %v3280
      %v3292 = vadd.f32 %v3224, %v3280
      %v3293 = vadd.f32 %v3226, %v3280
      %v3294 = vadd.f32 %v3229, %v3280
      %v3295 = vadd.f32 %v3231, %v3280
      %v3296 = vadd.f32 %v3234, %v3280
      %v3297 = vadd.f32 %v3236, %v3280
      %v3298 = vadd.f32 %v3239, %v3280
      %v3299 = vadd.f32 %v3241, %v3280
      %v3300 = vadd.f32 %v3244, %v3280
      %v3301 = vadd.f32 %v3246, %v3280
      %v3302 = vadd.f32 %v3249, %v3280
      %v3303 = vadd.f32 %v3251, %v3280
      %v3304 = vadd.f32 %v3254, %v3280
      %v3305 = vadd.f32 %v3256, %v3280
      %v3306 = vadd.f32 %v3259, %v3280
      %v3307 = vadd.f32 %v3261, %v3280
      %v3308 = vadd.f32 %v3264, %v3280
      %v3309 = vadd.f32 %v3266, %v3280
      %v3310 = vadd.f32 %v3269, %v3280
      %v3311 = vadd.f32 %v3271, %v3280
      %v3312 = vadd.f32 %v3274, %v3280
      %v3313 = vadd.f32 %v3276, %v3280
      %v3314 = vmax.f32 %v3282, 0.0
      %v3315 = vmax.f32 %v3283, 0.0
      %v3316 = vmax.f32 %v3284, 0.0
      %v3317 = vmax.f32 %v3285, 0.0
      %v3318 = vmax.f32 %v3286, 0.0
      %v3319 = vmax.f32 %v3287, 0.0
      %v3320 = vmax.f32 %v3288, 0.0
      %v3321 = vmax.f32 %v3289, 0.0
      %v3322 = vmax.f32 %v3290, 0.0
      %v3323 = vmax.f32 %v3291, 0.0
      %v3324 = vmax.f32 %v3292, 0.0
      %v3325 = vmax.f32 %v3293, 0.0
      %v3326 = vmax.f32 %v3294, 0.0
      %v3327 = vmax.f32 %v3295, 0.0
      %v3328 = vmax.f32 %v3296, 0.0
      %v3329 = vmax.f32 %v3297, 0.0
      %v3330 = vmax.f32 %v3298, 0.0
      %v3331 = vmax.f32 %v3299, 0.0
      %v3332 = vmax.f32 %v3300, 0.0
      %v3333 = vmax.f32 %v3301, 0.0
      %v3334 = vmax.f32 %v3302, 0.0
      %v3335 = vmax.f32 %v3303, 0.0
      %v3336 = vmax.f32 %v3304, 0.0
      %v3337 = vmax.f32 %v3305, 0.0
      %v3338 = vmax.f32 %v3306, 0.0
      %v3339 = vmax.f32 %v3307, 0.0
      %v3340 = vmax.f32 %v3308, 0.0
      %v3341 = vmax.f32 %v3309, 0.0
      %v3342 = vmax.f32 %v3310, 0.0
      %v3343 = vmax.f32 %v3311, 0.0
      %v3344 = vmax.f32 %v3312, 0.0
      %v3345 = vmax.f32 %v3313, 0.0
      %v3346 = vpack.c.bf16 %v3315, %v3314
      %v3347 = vpack.c.bf16 %v3317, %v3316
      %v3348 = vpack.c.bf16 %v3319, %v3318
      %v3349 = vpack.c.bf16 %v3321, %v3320
      %v3350 = vpack.c.bf16 %v3323, %v3322
      %v3351 = vpack.c.bf16 %v3325, %v3324
      %v3352 = vpack.c.bf16 %v3327, %v3326
      %v3353 = vpack.c.bf16 %v3329, %v3328
      %v3354 = vpack.c.bf16 %v3331, %v3330
      %v3355 = vpack.c.bf16 %v3333, %v3332
      %v3356 = vpack.c.bf16 %v3335, %v3334
      %v3357 = vpack.c.bf16 %v3337, %v3336
      %v3358 = vpack.c.bf16 %v3339, %v3338
      %v3359 = vpack.c.bf16 %v3341, %v3340
      %v3360 = vpack.c.bf16 %v3343, %v3342
      %v3361 = vpack.c.bf16 %v3345, %v3344
      %v3362 = vld [vmem:[%s25] sm:$0xf]
      %v3363 = vld [vmem:[%s25 + $0x4] sm:$0xf]
      %v3366 = vunpack.c.l.b16 %v3362
      %v3367 = vunpack.c.l.b16 %v3363
      %v3368 = vpack.c.b16 %v3367, %v3366
      %v3371 = vsel %vm953, %v3346, 0
      %v3374 = vsel %vm953, %v3347, 0
      %v3377 = vsel %vm953, %v3348, 0
      %v3380 = vsel %vm953, %v3349, 0
      %v3383 = vsel %vm953, %v3350, 0
      %v3386 = vsel %vm953, %v3351, 0
      %v3389 = vsel %vm953, %v3352, 0
      %v3392 = vsel %vm953, %v3353, 0
      %v3395 = vsel %vm953, %v3354, 0
      %v3398 = vsel %vm953, %v3355, 0
      %v3401 = vsel %vm953, %v3356, 0
      %v3404 = vsel %vm953, %v3357, 0
      %v3407 = vsel %vm953, %v3358, 0
      %v3410 = vsel %vm953, %v3359, 0
      %v3413 = vsel %vm953, %v3360, 0
      %v3416 = vsel %vm953, %v3361, 0
      %3418 = vmatpush.bf16.msra.mxu0 0
      %3419 = vmatpush.bf16.msra.mxu0 0
      %3420 = vmatpush.bf16.msra.mxu0 0
      %3421 = vmatpush.bf16.msra.mxu0 0
      %3422 = vmatpush.bf16.msra.mxu0 0
      %3423 = vmatpush.bf16.msra.mxu0 0
      %3424 = vmatpush.bf16.msra.mxu0 0
      %3425 = vmatpush.bf16.msra.mxu0 %v3368
      %3426 = vmatmul.bf16.gmra.mxu0 %v3371
      %v3427 = vpop.f32.mrf.mxu0
      %v3428 = vadd.f32 %v2778, %v3427
      %v3429 = vpop.f32.mrf.mxu0
      %v3430 = vadd.f32 %v2780, %v3429
      %3431 = vmatmul.bf16.gmra.mxu0 %v3374
      %v3432 = vpop.f32.mrf.mxu0
      %v3433 = vadd.f32 %v2783, %v3432
      %v3434 = vpop.f32.mrf.mxu0
      %v3435 = vadd.f32 %v2785, %v3434
      %3436 = vmatmul.bf16.gmra.mxu0 %v3377
      %v3437 = vpop.f32.mrf.mxu0
      %v3438 = vadd.f32 %v2788, %v3437
      %v3439 = vpop.f32.mrf.mxu0
      %v3440 = vadd.f32 %v2790, %v3439
      %3441 = vmatmul.bf16.gmra.mxu0 %v3380
      %v3442 = vpop.f32.mrf.mxu0
      %v3443 = vadd.f32 %v2793, %v3442
      %v3444 = vpop.f32.mrf.mxu0
      %v3445 = vadd.f32 %v2795, %v3444
      %3446 = vmatmul.bf16.gmra.mxu0 %v3383
      %v3447 = vpop.f32.mrf.mxu0
      %v3448 = vadd.f32 %v2798, %v3447
      %v3449 = vpop.f32.mrf.mxu0
      %v3450 = vadd.f32 %v2800, %v3449
      %3451 = vmatmul.bf16.gmra.mxu0 %v3386
      %v3452 = vpop.f32.mrf.mxu0
      %v3453 = vadd.f32 %v2803, %v3452
      %v3454 = vpop.f32.mrf.mxu0
      %v3455 = vadd.f32 %v2805, %v3454
      %3456 = vmatmul.bf16.gmra.mxu0 %v3389
      %v3457 = vpop.f32.mrf.mxu0
      %v3458 = vadd.f32 %v2808, %v3457
      %v3459 = vpop.f32.mrf.mxu0
      %v3460 = vadd.f32 %v2810, %v3459
      %3461 = vmatmul.bf16.gmra.mxu0 %v3392
      %v3462 = vpop.f32.mrf.mxu0
      %v3463 = vadd.f32 %v2813, %v3462
      %v3464 = vpop.f32.mrf.mxu0
      %v3465 = vadd.f32 %v2815, %v3464
      %3466 = vmatmul.bf16.gmra.mxu0 %v3395
      %v3467 = vpop.f32.mrf.mxu0
      %v3468 = vadd.f32 %v2818, %v3467
      %v3469 = vpop.f32.mrf.mxu0
      %v3470 = vadd.f32 %v2820, %v3469
      %3471 = vmatmul.bf16.gmra.mxu0 %v3398
      %v3472 = vpop.f32.mrf.mxu0
      %v3473 = vadd.f32 %v2823, %v3472
      %v3474 = vpop.f32.mrf.mxu0
      %v3475 = vadd.f32 %v2825, %v3474
      %3476 = vmatmul.bf16.gmra.mxu0 %v3401
      %v3477 = vpop.f32.mrf.mxu0
      %v3478 = vadd.f32 %v2828, %v3477
      %v3479 = vpop.f32.mrf.mxu0
      %v3480 = vadd.f32 %v2830, %v3479
      %3481 = vmatmul.bf16.gmra.mxu0 %v3404
      %v3482 = vpop.f32.mrf.mxu0
      %v3483 = vadd.f32 %v2833, %v3482
      %v3484 = vpop.f32.mrf.mxu0
      %v3485 = vadd.f32 %v2835, %v3484
      %3486 = vmatmul.bf16.gmra.mxu0 %v3407
      %v3487 = vpop.f32.mrf.mxu0
      %v3488 = vadd.f32 %v2838, %v3487
      %v3489 = vpop.f32.mrf.mxu0
      %v3490 = vadd.f32 %v2840, %v3489
      %3491 = vmatmul.bf16.gmra.mxu0 %v3410
      %v3492 = vpop.f32.mrf.mxu0
      %v3493 = vadd.f32 %v2843, %v3492
      %v3494 = vpop.f32.mrf.mxu0
      %v3495 = vadd.f32 %v2845, %v3494
      %3496 = vmatmul.bf16.gmra.mxu0 %v3413
      %v3497 = vpop.f32.mrf.mxu0
      %v3498 = vadd.f32 %v2848, %v3497
      %v3499 = vpop.f32.mrf.mxu0
      %v3500 = vadd.f32 %v2850, %v3499
      %3501 = vmatmul.bf16.gmra.mxu0 %v3416
      %v3502 = vpop.f32.mrf.mxu0
      %v3503 = vadd.f32 %v2853, %v3502
      %v3504 = vpop.f32.mrf.mxu0
      %v3505 = vadd.f32 %v2855, %v3504
      %3506 = vdwg.mxu0
      %v3507 = vld [vmem:[%s26] sm:$0x1]
      %v3509 = vperm.slane %v3507, 0
      %v3511 = vadd.f32 %v3428, %v3509
      %v3512 = vadd.f32 %v3430, %v3509
      %v3513 = vadd.f32 %v3433, %v3509
      %v3514 = vadd.f32 %v3435, %v3509
      %v3515 = vadd.f32 %v3438, %v3509
      %v3516 = vadd.f32 %v3440, %v3509
      %v3517 = vadd.f32 %v3443, %v3509
      %v3518 = vadd.f32 %v3445, %v3509
      %v3519 = vadd.f32 %v3448, %v3509
      %v3520 = vadd.f32 %v3450, %v3509
      %v3521 = vadd.f32 %v3453, %v3509
      %v3522 = vadd.f32 %v3455, %v3509
      %v3523 = vadd.f32 %v3458, %v3509
      %v3524 = vadd.f32 %v3460, %v3509
      %v3525 = vadd.f32 %v3463, %v3509
      %v3526 = vadd.f32 %v3465, %v3509
      %v3527 = vadd.f32 %v3468, %v3509
      %v3528 = vadd.f32 %v3470, %v3509
      %v3529 = vadd.f32 %v3473, %v3509
      %v3530 = vadd.f32 %v3475, %v3509
      %v3531 = vadd.f32 %v3478, %v3509
      %v3532 = vadd.f32 %v3480, %v3509
      %v3533 = vadd.f32 %v3483, %v3509
      %v3534 = vadd.f32 %v3485, %v3509
      %v3535 = vadd.f32 %v3488, %v3509
      %v3536 = vadd.f32 %v3490, %v3509
      %v3537 = vadd.f32 %v3493, %v3509
      %v3538 = vadd.f32 %v3495, %v3509
      %v3539 = vadd.f32 %v3498, %v3509
      %v3540 = vadd.f32 %v3500, %v3509
      %v3541 = vadd.f32 %v3503, %v3509
      %v3542 = vadd.f32 %v3505, %v3509
      %3543 = vst [vmem:[%s842] sm:$0xff] %v3511
      %3544 = vst [vmem:[%s842 + $0x8] sm:$0xff] %v3512
      %3545 = vst [vmem:[%s842 + $0x10] sm:$0xff] %v3513
      %3546 = vst [vmem:[%s842 + $0x18] sm:$0xff] %v3514
      %3547 = vst [vmem:[%s842 + $0x20] sm:$0xff] %v3515
      %3548 = vst [vmem:[%s842 + $0x28] sm:$0xff] %v3516
      %3549 = vst [vmem:[%s842 + $0x30] sm:$0xff] %v3517
      %3550 = vst [vmem:[%s842 + $0x38] sm:$0xff] %v3518
      %3551 = vst [vmem:[%s842 + $0x40] sm:$0xff] %v3519
      %3552 = vst [vmem:[%s842 + $0x48] sm:$0xff] %v3520
      %3553 = vst [vmem:[%s842 + $0x50] sm:$0xff] %v3521
      %3554 = vst [vmem:[%s842 + $0x58] sm:$0xff] %v3522
      %3555 = vst [vmem:[%s842 + $0x60] sm:$0xff] %v3523
      %3556 = vst [vmem:[%s842 + $0x68] sm:$0xff] %v3524
      %3557 = vst [vmem:[%s842 + $0x70] sm:$0xff] %v3525
      %3558 = vst [vmem:[%s842 + $0x78] sm:$0xff] %v3526
      %3559 = vst [vmem:[%s842 + $0x80] sm:$0xff] %v3527
      %3560 = vst [vmem:[%s842 + $0x88] sm:$0xff] %v3528
      %3561 = vst [vmem:[%s842 + $0x90] sm:$0xff] %v3529
      %3562 = vst [vmem:[%s842 + $0x98] sm:$0xff] %v3530
      %3563 = vst [vmem:[%s842 + $0xa0] sm:$0xff] %v3531
      %3564 = vst [vmem:[%s842 + $0xa8] sm:$0xff] %v3532
      %3565 = vst [vmem:[%s842 + $0xb0] sm:$0xff] %v3533
      %3566 = vst [vmem:[%s842 + $0xb8] sm:$0xff] %v3534
      %3567 = vst [vmem:[%s842 + $0xc0] sm:$0xff] %v3535
      %3568 = vst [vmem:[%s842 + $0xc8] sm:$0xff] %v3536
      %3569 = vst [vmem:[%s842 + $0xd0] sm:$0xff] %v3537
      %3570 = vst [vmem:[%s842 + $0xd8] sm:$0xff] %v3538
      %3571 = vst [vmem:[%s842 + $0xe0] sm:$0xff] %v3539
      %3572 = vst [vmem:[%s842 + $0xe8] sm:$0xff] %v3540
      %3573 = vst [vmem:[%s842 + $0xf0] sm:$0xff] %v3541
      %3574 = vst [vmem:[%s842 + $0xf8] sm:$0xff] %v3542
      %s3575 = smul.u32 32, %s38
      %p3576 = scmp.lt.s32.totalorder %s3575, 63
      %s3577 = scalar_select %p3576, %s3575, 63
      %s3578 = smul.addr %s3577, 8
      %s3579 = scalar_lea.vmem %s27, %s3578
      // Predicated region
      $region129: #{nerf_forward_pallas.1} parent=127 // pred_check
        %p3580 = pneg %p633
      $region130: #{nerf_forward_pallas.1} parent=127 // pred_check_branch
        %3582 = sbr.rel (%p3580) target = $region132
      $region131: #{nerf_forward_pallas.1} parent=127 // pred_region
        %s3583 = smul.u32 32, %s38
      $region132: #{nerf_forward_pallas.1} parent=127 // pred_fallthru
        _
    $region128: #{nerf_forward_pallas.1} parent=5 // pred_fallthru
      _
    %p3584 = scmp.le.s32.totalorder 2, %s33
    // Predicated region
    $region133: #{nerf_forward_pallas.1} parent=5 // pred_check
      %p3585 = pneg %p3584
    $region134: #{nerf_forward_pallas.1} parent=5 // pred_check_branch
      %3587 = sbr.rel (%p3585) target = $region136
    $region135: #{nerf_forward_pallas.1} parent=5 // pred_region
      %s3588 = ssub.s32 %s33, 2
      // Predicated region
      $region137: #{nerf_forward_pallas.1} parent=135 // pred_check
        %p3589 = pneg %p639
      $region138: #{nerf_forward_pallas.1} parent=135 // pred_check_branch
        %3591 = sbr.rel (%p3589) target = $region140
      $region139: #{nerf_forward_pallas.1} parent=135 // pred_region
        %s3592 = smul.u32 32, %s39
        %p3593 = scmp.lt.s32.totalorder %s3592, 63
        %s3594 = scalar_select %p3593, %s3592, 63
        %s3595 = smul.addr %s3594, 8
        %s3596 = scalar_lea.vmem %s27, %s3595
      $region140: #{nerf_forward_pallas.1} parent=135 // pred_fallthru
        _
    $region136: #{nerf_forward_pallas.1} parent=5 // pred_fallthru
      _
  $region6: #{nerf_forward_pallas.1} parent=0 // loop_footer
    %s37 = sadd.s32 1, %s33
  $region7: #{nerf_forward_pallas.1} parent=0 // loop_footer_branch
    %32 = sbr.rel target = $region3
  $region8: #{nerf_forward_pallas.1} parent=0 // loop_exit
    _

</llo_original>
